<compile_context>
chip_gen: v7x
topology: tpu7x:2x2x1
jax: 0.10.0
libtpu: 0.0.40
codegen_flags: <defaults>
</compile_context>

<pallas_src>
import functools

import jax
import jax.numpy as jnp
import numpy as np
from jax import lax
from jax.experimental import pallas as pl
from jax.experimental.pallas import tpu as pltpu

BN_EPS = 1e-5
MXU_DTYPE = jnp.bfloat16    # MXU operand dtype; accumulation is always f32
MAX_TILE_N = 256            # pixels per grid step (size to VMEM for real shapes)


def _pick_tile(n, max_tile=MAX_TILE_N):
    """Largest divisor of n that is <= max_tile and a multiple of 8."""
    for t in range(min(n, max_tile), 0, -1):
        if n % t == 0 and t % 8 == 0:
            return t
    return n


def _fold_groups(n, c):
    """Pixels to pack per row so the lane dim (g*c) becomes a multiple of 128."""
    if c % 128 == 0:
        return 1
    g = 128 // int(np.gcd(128, c))
    if n % g == 0 and (n // g) % 8 == 0:
        return g
    return 1


def _cparams():
    return pltpu.CompilerParams(
        dimension_semantics=("parallel",),
        vmem_limit_bytes=32 * 1024 * 1024)


# ----------------------------- Pallas kernels ------------------------------ #

def _conv_stats_kernel(n_in, *refs):
    """5x5 conv as one folded MXU matmul per taps input + per-tile BN partials.

    refs = taps_0..taps_{n-1}, w_0..w_{n-1}, bias, y_out, sum_out, sumsq_out
    """
    taps_refs = refs[:n_in]
    w_refs = refs[n_in:2 * n_in]
    b_ref = refs[2 * n_in]
    y_ref, sum_ref, sq_ref = refs[2 * n_in + 1:]

    acc = jnp.dot(taps_refs[0][...], w_refs[0][...],
                  preferred_element_type=jnp.float32)
    for t_ref, w_ref in zip(taps_refs[1:], w_refs[1:]):
        acc = acc + jnp.dot(t_ref[...], w_ref[...],
                            preferred_element_type=jnp.float32)
    acc = acc + b_ref[...]                      # conv bias (f32)
    y_ref[...] = acc                            # pre-BN conv output (f32)
    # Per-tile partial statistics for global (train-mode) BatchNorm.
    sum_ref[...] = jnp.sum(acc, axis=0, keepdims=True).reshape(1, 1, -1)
    sq_ref[...] = jnp.sum(acc * acc, axis=0, keepdims=True).reshape(1, 1, -1)


def _bn_prelu_kernel(y_ref, scale_ref, shift_ref, a_ref, o_ref):
    """Fused BN (per-channel scale/shift) + PReLU (scalar alpha from SMEM)."""
    yn = y_ref[...] * scale_ref[...] + shift_ref[...]
    a = a_ref[0]
    o_ref[...] = jnp.where(yn >= 0.0, yn, a * yn).astype(o_ref.dtype)


def _outconv_kernel(x_ref, x1_ref, y3_ref, scale_ref, shift_ref, a_ref,
                    wx_ref, wx1_ref, wx3_ref, b_ref, o_ref):
    """Fused BN2 + PReLU2 + concat-free 1x1 conv (weight split along K)."""
    yn = y3_ref[...] * scale_ref[...] + shift_ref[...]
    a = a_ref[0]
    x3 = jnp.where(yn >= 0.0, yn, a * yn)       # x3 stays in registers/VMEM
    acc = jnp.dot(x_ref[...], wx_ref[...], preferred_element_type=jnp.float32)
    acc = acc + jnp.dot(x1_ref[...], wx1_ref[...],
                        preferred_element_type=jnp.float32)
    acc = acc + jnp.dot(x3.astype(MXU_DTYPE), wx3_ref[...],
                        preferred_element_type=jnp.float32)
    o_ref[...] = acc + b_ref[...]


# ------------------------------ wrappers ----------------------------------- #

def conv_stats(taps_list, w_list, bias):
    """Tiled conv (+bias) over N pixels, emitting per-tile BN partial stats."""
    n_in = len(taps_list)
    N = taps_list[0].shape[0]
    Cout = w_list[0].shape[-1]
    tile = _pick_tile(N)
    T = N // tile

    in_specs = (
        [pl.BlockSpec((tile, t.shape[1]), lambda i: (i, 0)) for t in taps_list]
        + [pl.BlockSpec(w.shape, lambda i: (0, 0)) for w in w_list]
        + [pl.BlockSpec((1, Cout), lambda i: (0, 0))])
    out_shape = (jax.ShapeDtypeStruct((N, Cout), jnp.float32),
                 jax.ShapeDtypeStruct((T, 1, Cout), jnp.float32),
                 jax.ShapeDtypeStruct((T, 1, Cout), jnp.float32))
    out_specs = (pl.BlockSpec((tile, Cout), lambda i: (i, 0)),
                 pl.BlockSpec((1, 1, Cout), lambda i: (i, 0, 0)),
                 pl.BlockSpec((1, 1, Cout), lambda i: (i, 0, 0)))

    y, sums, sqs = pl.pallas_call(
        functools.partial(_conv_stats_kernel, n_in),
        grid=(T,), in_specs=in_specs, out_specs=out_specs, out_shape=out_shape,
        compiler_params=_cparams(),
    )(*taps_list, *w_list, bias.reshape(1, Cout).astype(jnp.float32))
    return y, jnp.sum(sums, axis=(0, 1)), jnp.sum(sqs, axis=(0, 1))


def bn_prelu(y, scale, shift, alpha, out_dtype):
    """Fused BN scale/shift + PReLU on a lane-folded [N/g, g*C] view.

    Packing g pixels per row makes the last dim a multiple of 128, so every
    load/store/VPU op uses dense 128-lane vregs instead of masked partial ones.
    The fold is a pure row-major reshape (no data movement); the per-channel
    scale/shift are tiled to match the packed lane order.
    """
    N, C = y.shape
    g = _fold_groups(N, C)
    Nf, Cf = N // g, g * C
    yf = y.reshape(Nf, Cf)
    scale_f = jnp.tile(scale.astype(jnp.float32), g).reshape(1, Cf)
    shift_f = jnp.tile(shift.astype(jnp.float32), g).reshape(1, Cf)
    tile = _pick_tile(Nf)
    T = Nf // tile
    out = pl.pallas_call(
        _bn_prelu_kernel,
        grid=(T,),
        in_specs=[pl.BlockSpec((tile, Cf), lambda i: (i, 0)),
                  pl.BlockSpec((1, Cf), lambda i: (0, 0)),
                  pl.BlockSpec((1, Cf), lambda i: (0, 0)),
                  pl.BlockSpec(memory_space=pltpu.MemorySpace.SMEM)],
        out_specs=pl.BlockSpec((tile, Cf), lambda i: (i, 0)),
        out_shape=jax.ShapeDtypeStruct((Nf, Cf), out_dtype),
        compiler_params=_cparams(),
    )(yf, scale_f, shift_f, alpha.reshape(1).astype(jnp.float32))
    return out.reshape(N, C)


def fused_outconv(x_flat, x1, y3, scale, shift, alpha, w3x, w3x1, w3x3, b3):
    N, Cin = x_flat.shape
    Cout = w3x.shape[-1]
    tile = _pick_tile(N)
    T = N // tile
    return pl.pallas_call(
        _outconv_kernel,
        grid=(T,),
        in_specs=[pl.BlockSpec((tile, Cin), lambda i: (i, 0)),
                  pl.BlockSpec((tile, Cout), lambda i: (i, 0)),
                  pl.BlockSpec((tile, Cout), lambda i: (i, 0)),
                  pl.BlockSpec((1, Cout), lambda i: (0, 0)),
                  pl.BlockSpec((1, Cout), lambda i: (0, 0)),
                  pl.BlockSpec(memory_space=pltpu.MemorySpace.SMEM),
                  pl.BlockSpec(w3x.shape, lambda i: (0, 0)),
                  pl.BlockSpec(w3x1.shape, lambda i: (0, 0)),
                  pl.BlockSpec(w3x3.shape, lambda i: (0, 0)),
                  pl.BlockSpec((1, Cout), lambda i: (0, 0))],
        out_specs=pl.BlockSpec((tile, Cout), lambda i: (i, 0)),
        out_shape=jax.ShapeDtypeStruct((N, Cout), jnp.float32),
        compiler_params=_cparams(),
    )(x_flat, x1, y3, scale.reshape(1, Cout), shift.reshape(1, Cout),
      alpha.reshape(1).astype(jnp.float32),
      w3x, w3x1, w3x3, b3.reshape(1, Cout).astype(jnp.float32))


# ------------------------------ JAX glue ------------------------------------ #

def extract_taps_lanefolded(x_nhwc, k=5, pad=2):
    """Lane-folded im2col: [B*H*W, k*k*C]; lane order = (tap, channel).

    TODO(synk): for large images, replace this HBM-materialized im2col with a
    halo-tiled in-kernel conv (manual DMA + in-kernel shifts) to cut traffic.
    """
    B, H, W, C = x_nhwc.shape
    xp = jnp.pad(x_nhwc, ((0, 0), (pad, pad), (pad, pad), (0, 0)))
    taps = [xp[:, dh:dh + H, dw:dw + W, :] for dh in range(k) for dw in range(k)]
    return jnp.concatenate(taps, axis=-1).reshape(B * H * W, k * k * C)


def _bn_scale_shift(s, sq, n, gamma, beta):
    mean = s / n
    var = jnp.maximum(sq / n - mean * mean, 0.0)    # biased batch variance
    scale = gamma * lax.rsqrt(var + BN_EPS)
    shift = beta - mean * scale
    return scale, shift


@jax.jit
def dense_block_forward(x_nchw, p):
    B, Cin, H, W = x_nchw.shape
    Cout = p["w1"].shape[-1]
    N = B * H * W

    x = jnp.transpose(x_nchw, (0, 2, 3, 1)).astype(MXU_DTYPE)      # NHWC bf16
    taps_x = extract_taps_lanefolded(x)                            # [N, 25*Cin]

    # block1: conv5x5 -> BN (global batch stats) -> PReLU
    w1 = p["w1"].reshape(25 * Cin, Cout).astype(MXU_DTYPE)
    y1, s1, sq1 = conv_stats([taps_x], [w1], p["b1"])
    sc1, sh1 = _bn_scale_shift(s1, sq1, N, p["g1"], p["be1"])
    x1 = bn_prelu(y1, sc1, sh1, p["a1"], MXU_DTYPE)                # [N, Cout]

    # block2 on concat(x, x1): concat never materialized (weight split along K)
    taps_x1 = extract_taps_lanefolded(x1.reshape(B, H, W, Cout))   # [N, 25*Cout]
    w2 = p["w2"]
    w2x = w2[:, :, :Cin, :].reshape(25 * Cin, Cout).astype(MXU_DTYPE)
    w2x1 = w2[:, :, Cin:, :].reshape(25 * Cout, Cout).astype(MXU_DTYPE)
    y3, s2, sq2 = conv_stats([taps_x, taps_x1], [w2x, w2x1], p["b2"])
    sc2, sh2 = _bn_scale_shift(s2, sq2, N, p["g2"], p["be2"])

    # fused BN2 + PReLU2 + 1x1 outconv on concat(x, x1, x3)
    w3 = p["w3"].reshape(Cin + 2 * Cout, Cout)
    w3x = w3[:Cin].astype(MXU_DTYPE)
    w3x1 = w3[Cin:Cin + Cout].astype(MXU_DTYPE)
    w3x3 = w3[Cin + Cout:].astype(MXU_DTYPE)
    out = fused_outconv(x.reshape(N, Cin), x1, y3, sc2, sh2, p["a2"],
                        w3x, w3x1, w3x3, p["b3"])
    return jnp.transpose(out.reshape(B, H, W, Cout), (0, 3, 1, 2))  # NCHW


# --------------------------- pure-JAX reference ----------------------------- #

@jax.jit
def dense_block_ref(x_nchw, p):
    """Same operand-precision policy: bf16 conv operands, f32 accum/BN/PReLU."""
    x = jnp.transpose(x_nchw, (0, 2, 3, 1)).astype(MXU_DTYPE)

    def conv(v, w, pad):
        return lax.conv_general_dilated(
            v.astype(MXU_DTYPE), w.astype(MXU_DTYPE), (1, 1),
            ((pad, pad), (pad, pad)),
            dimension_numbers=("NHWC", "HWIO", "NHWC"),
            preferred_element_type=jnp.float32)

    def bn_prelu_ref(y, g, beta, a):
        mean = jnp.mean(y, axis=(0, 1, 2))
        var = jnp.maximum(jnp.mean(y * y, axis=(0, 1, 2)) - mean * mean, 0.0)
        scale = g * lax.rsqrt(var + BN_EPS)
        shift = beta - mean * scale
        yn = y * scale + shift
        return jnp.where(yn >= 0.0, yn, a * yn)

    x1 = bn_prelu_ref(conv(x, p["w1"], 2) + p["b1"], p["g1"], p["be1"], p["a1"])
    x2 = jnp.concatenate([x, x1.astype(MXU_DTYPE)], axis=-1)
    x3 = bn_prelu_ref(conv(x2, p["w2"], 2) + p["b2"], p["g2"], p["be2"], p["a2"])
    x4 = jnp.concatenate([x, x1.astype(MXU_DTYPE), x3.astype(MXU_DTYPE)], axis=-1)
    w3 = p["w3"].reshape(1, 1, x4.shape[-1], -1)
    out = conv(x4, w3, 0) + p["b3"]
    return jnp.transpose(out, (0, 3, 1, 2))


# ------------------------------- params ------------------------------------ #

def init_params(key, cin, cout):
    ks = jax.random.split(key, 12)

    def conv_w(k, kh, kw, ci, co):
        fan_in = kh * kw * ci
        return jax.random.normal(k, (kh, kw, ci, co), jnp.float32) / np.sqrt(fan_in)

    return {
        # block1
        "w1": conv_w(ks[0], 5, 5, cin, cout),
        "b1": 0.1 * jax.random.normal(ks[1], (cout,), jnp.float32),
        "g1": 1.0 + 0.1 * jax.random.normal(ks[2], (cout,), jnp.float32),
        "be1": 0.1 * jax.random.normal(ks[3], (cout,), jnp.float32),
        "a1": jnp.array([0.25], jnp.float32),        # PReLU default init
        # block2
        "w2": conv_w(ks[4], 5, 5, cin + cout, cout),
        "b2": 0.1 * jax.random.normal(ks[5], (cout,), jnp.float32),
        "g2": 1.0 + 0.1 * jax.random.normal(ks[6], (cout,), jnp.float32),
        "be2": 0.1 * jax.random.normal(ks[7], (cout,), jnp.float32),
        "a2": jnp.array([0.25], jnp.float32),
        # outconv (1x1)
        "w3": conv_w(ks[8], 1, 1, cin + 2 * cout, cout),
        "b3": 0.1 * jax.random.normal(ks[9], (cout,), jnp.float32),
    }


if __name__ == "__main__":
    key = jax.random.PRNGKey(0)
    k_x, k_p = jax.random.split(key)
    B, Cin, Cout, H, W = 2, 4, 8, 16, 16

    x = jax.random.normal(k_x, (B, Cin, H, W), jnp.float32)
    params = init_params(k_p, Cin, Cout)

    out = jax.block_until_ready(dense_block_forward(x, params))
    ref = jax.block_until_ready(dense_block_ref(x, params))

    assert out.shape == (B, Cout, H, W)
    # bf16 MXU operands on both sides; remaining diffs are accumulation-order /
    # stats-reduction-order only.
    np.testing.assert_allclose(np.asarray(out), np.asarray(ref),
                               rtol=5e-3, atol=5e-3)
    print("KERNEL_OK")
</pallas_src>

<mosaic_0001>
module attributes {stable_mosaic.version = 11 : i64} {
  func.func @_conv_stats_kernel(%arg0: i32, %arg1: memref<256x100xbf16, #tpu.memory_space<vmem>>, %arg2: memref<100x8xbf16, #tpu.memory_space<vmem>>, %arg3: memref<1x8xf32, #tpu.memory_space<vmem>>, %arg4: memref<256x8xf32, #tpu.memory_space<vmem>>, %arg5: memref<1x1x8xf32, #tpu.memory_space<vmem>>, %arg6: memref<1x1x8xf32, #tpu.memory_space<vmem>>) attributes {dimension_semantics = [#tpu.dimension_semantics<parallel>], iteration_bounds = array<i64: 2>, scalar_prefetch = 0 : i64, scratch_operands = 0 : i64, tpu.core_type = #tpu.core_type<tc>, window_params = [{transform_indices = @transform_0, window_bounds = array<i64: 256, 100>}, {pipeline_mode = #tpu.pipeline_mode<synchronous>, transform_indices = @transform_1, window_bounds = array<i64: 100, 8>}, {pipeline_mode = #tpu.pipeline_mode<synchronous>, transform_indices = @transform_2, window_bounds = array<i64: 1, 8>}, {transform_indices = @transform_3, window_bounds = array<i64: 256, 8>}, {transform_indices = @transform_4, window_bounds = array<i64: 1, 1, 8>}, {transform_indices = @transform_5, window_bounds = array<i64: 1, 1, 8>}]} {
    %c0 = arith.constant 0 : index
    %c0_0 = arith.constant 0 : index
    %0 = vector.load %arg1[%c0, %c0_0] : memref<256x100xbf16, #tpu.memory_space<vmem>>, vector<256x100xbf16>
    %c0_1 = arith.constant 0 : index
    %c0_2 = arith.constant 0 : index
    %1 = vector.load %arg2[%c0_1, %c0_2] : memref<100x8xbf16, #tpu.memory_space<vmem>>, vector<100x8xbf16>
    %cst = arith.constant dense<0.000000e+00> : vector<256x8xf32>
    %2 = tpu.matmul %0, %1, %cst {dimension_numbers = #tpu.dot_dimension_numbers<[1], [0], [0], [1], [0, 0, 1, 1], [], []>} : vector<256x100xbf16>, vector<100x8xbf16>, vector<256x8xf32> -> vector<256x8xf32>
    %c0_3 = arith.constant 0 : index
    %c0_4 = arith.constant 0 : index
    %3 = vector.load %arg3[%c0_3, %c0_4] : memref<1x8xf32, #tpu.memory_space<vmem>>, vector<1x8xf32>
    %4 = vector.broadcast %3 : vector<1x8xf32> to vector<256x8xf32>
    %5 = arith.addf %2, %4 : vector<256x8xf32>
    %c0_5 = arith.constant 0 : index
    %c0_6 = arith.constant 0 : index
    %6 = vector.load %arg4[%c0_5, %c0_6] : memref<256x8xf32, #tpu.memory_space<vmem>>, vector<256x8xf32>
    tpu.vector_store %arg4[%c0_5, %c0_6], %5 {strides = array<i32>} : memref<256x8xf32, #tpu.memory_space<vmem>>, vector<256x8xf32>,
    %cst_7 = arith.constant dense<0.000000e+00> : vector<8xf32>
    %7 = vector.multi_reduction <add>, %5, %cst_7 [0] : vector<256x8xf32> to vector<8xf32>
    %8 = vector.shape_cast %7 : vector<8xf32> to vector<1x8xf32>
    %9 = vector.shape_cast %8 : vector<1x8xf32> to vector<1x1x8xf32>
    %c0_8 = arith.constant 0 : index
    %c0_9 = arith.constant 0 : index
    %c0_10 = arith.constant 0 : index
    %10 = vector.load %arg5[%c0_8, %c0_9, %c0_10] : memref<1x1x8xf32, #tpu.memory_space<vmem>>, vector<1x1x8xf32>
    tpu.vector_store %arg5[%c0_8, %c0_9, %c0_10], %9 {strides = array<i32>} : memref<1x1x8xf32, #tpu.memory_space<vmem>>, vector<1x1x8xf32>,
    %11 = arith.mulf %5, %5 : vector<256x8xf32>
    %cst_11 = arith.constant dense<0.000000e+00> : vector<8xf32>
    %12 = vector.multi_reduction <add>, %11, %cst_11 [0] : vector<256x8xf32> to vector<8xf32>
    %13 = vector.shape_cast %12 : vector<8xf32> to vector<1x8xf32>
    %14 = vector.shape_cast %13 : vector<1x8xf32> to vector<1x1x8xf32>
    %c0_12 = arith.constant 0 : index
    %c0_13 = arith.constant 0 : index
    %c0_14 = arith.constant 0 : index
    %15 = vector.load %arg6[%c0_12, %c0_13, %c0_14] : memref<1x1x8xf32, #tpu.memory_space<vmem>>, vector<1x1x8xf32>
    tpu.vector_store %arg6[%c0_12, %c0_13, %c0_14], %14 {strides = array<i32>} : memref<1x1x8xf32, #tpu.memory_space<vmem>>, vector<1x1x8xf32>,
    return
  }
  func.func @transform_0(%arg0: i32) -> (i32, i32) {
    %c0_i32 = arith.constant 0 : i32
    %c0_i32_0 = arith.constant 0 : i32
    return %arg0, %c0_i32 : i32, i32
  }
  func.func @transform_1(%arg0: i32) -> (i32, i32) {
    %c0_i32 = arith.constant 0 : i32
    %c0_i32_0 = arith.constant 0 : i32
    %c0_i32_1 = arith.constant 0 : i32
    return %c0_i32, %c0_i32_0 : i32, i32
  }
  func.func @transform_2(%arg0: i32) -> (i32, i32) {
    %c0_i32 = arith.constant 0 : i32
    %c0_i32_0 = arith.constant 0 : i32
    %c0_i32_1 = arith.constant 0 : i32
    return %c0_i32, %c0_i32_0 : i32, i32
  }
  func.func @transform_3(%arg0: i32) -> (i32, i32) {
    %c0_i32 = arith.constant 0 : i32
    %c0_i32_0 = arith.constant 0 : i32
    return %arg0, %c0_i32 : i32, i32
  }
  func.func @transform_4(%arg0: i32) -> (i32, i32, i32) {
    %c0_i32 = arith.constant 0 : i32
    %c0_i32_0 = arith.constant 0 : i32
    %c0_i32_1 = arith.constant 0 : i32
    return %arg0, %c0_i32, %c0_i32_0 : i32, i32, i32
  }
  func.func @transform_5(%arg0: i32) -> (i32, i32, i32) {
    %c0_i32 = arith.constant 0 : i32
    %c0_i32_0 = arith.constant 0 : i32
    %c0_i32_1 = arith.constant 0 : i32
    return %arg0, %c0_i32, %c0_i32_0 : i32, i32, i32
  }
}

module attributes {stable_mosaic.version = 11 : i64} {
  func.func @_bn_prelu_kernel(%arg0: i32, %arg1: memref<32x128xf32, #tpu.memory_space<vmem>>, %arg2: memref<1x128xf32, #tpu.memory_space<vmem>>, %arg3: memref<1x128xf32, #tpu.memory_space<vmem>>, %arg4: memref<1xf32, #tpu.memory_space<smem>>, %arg5: memref<32x128xbf16, #tpu.memory_space<vmem>>) attributes {dimension_semantics = [#tpu.dimension_semantics<parallel>], iteration_bounds = array<i64: 1>, scalar_prefetch = 0 : i64, scratch_operands = 0 : i64, tpu.core_type = #tpu.core_type<tc>, window_params = [{transform_indices = @transform_0, window_bounds = array<i64: 32, 128>}, {pipeline_mode = #tpu.pipeline_mode<synchronous>, transform_indices = @transform_1, window_bounds = array<i64: 1, 128>}, {pipeline_mode = #tpu.pipeline_mode<synchronous>, transform_indices = @transform_2, window_bounds = array<i64: 1, 128>}, {transform_indices = @transform_3, window_bounds = array<i64: 1>}, {transform_indices = @transform_4, window_bounds = array<i64: 32, 128>}]} {
    %c0 = arith.constant 0 : index
    %c0_0 = arith.constant 0 : index
    %0 = vector.load %arg1[%c0, %c0_0] : memref<32x128xf32, #tpu.memory_space<vmem>>, vector<32x128xf32>
    %c0_1 = arith.constant 0 : index
    %c0_2 = arith.constant 0 : index
    %1 = vector.load %arg2[%c0_1, %c0_2] : memref<1x128xf32, #tpu.memory_space<vmem>>, vector<1x128xf32>
    %2 = vector.broadcast %1 : vector<1x128xf32> to vector<32x128xf32>
    %3 = arith.mulf %0, %2 : vector<32x128xf32>
    %c0_3 = arith.constant 0 : index
    %c0_4 = arith.constant 0 : index
    %4 = vector.load %arg3[%c0_3, %c0_4] : memref<1x128xf32, #tpu.memory_space<vmem>>, vector<1x128xf32>
    %5 = vector.broadcast %4 : vector<1x128xf32> to vector<32x128xf32>
    %6 = arith.addf %3, %5 : vector<32x128xf32>
    %c0_5 = arith.constant 0 : index
    %7 = memref.load %arg4[%c0_5] : memref<1xf32, #tpu.memory_space<smem>>
    %cst = arith.constant 0.000000e+00 : f32
    %8 = vector.broadcast %cst : f32 to vector<32x128xf32>
    %9 = arith.cmpf oge, %6, %8 : vector<32x128xf32>
    %10 = vector.broadcast %7 : f32 to vector<32x128xf32>
    %11 = arith.mulf %10, %6 : vector<32x128xf32>
    %12 = arith.select %9, %6, %11 : vector<32x128xi1>, vector<32x128xf32>
    %13 = arith.truncf %12 : vector<32x128xf32> to vector<32x128xbf16>
    %c0_6 = arith.constant 0 : index
    %c0_7 = arith.constant 0 : index
    %14 = vector.load %arg5[%c0_6, %c0_7] : memref<32x128xbf16, #tpu.memory_space<vmem>>, vector<32x128xbf16>
    tpu.vector_store %arg5[%c0_6, %c0_7], %13 {strides = array<i32>} : memref<32x128xbf16, #tpu.memory_space<vmem>>, vector<32x128xbf16>,
    return
  }
  func.func @transform_0(%arg0: i32) -> (i32, i32) {
    %c0_i32 = arith.constant 0 : i32
    %c0_i32_0 = arith.constant 0 : i32
    return %arg0, %c0_i32 : i32, i32
  }
  func.func @transform_1(%arg0: i32) -> (i32, i32) {
    %c0_i32 = arith.constant 0 : i32
    %c0_i32_0 = arith.constant 0 : i32
    %c0_i32_1 = arith.constant 0 : i32
    return %c0_i32, %c0_i32_0 : i32, i32
  }
  func.func @transform_2(%arg0: i32) -> (i32, i32) {
    %c0_i32 = arith.constant 0 : i32
    %c0_i32_0 = arith.constant 0 : i32
    %c0_i32_1 = arith.constant 0 : i32
    return %c0_i32, %c0_i32_0 : i32, i32
  }
  func.func @transform_3(%arg0: i32) -> i32 {
    %c0_i32 = arith.constant 0 : i32
    %c0_i32_0 = arith.constant 0 : i32
    return %c0_i32 : i32
  }
  func.func @transform_4(%arg0: i32) -> (i32, i32) {
    %c0_i32 = arith.constant 0 : i32
    %c0_i32_0 = arith.constant 0 : i32
    return %arg0, %c0_i32 : i32, i32
  }
}

module attributes {stable_mosaic.version = 11 : i64} {
  func.func @_conv_stats_kernel(%arg0: i32, %arg1: memref<256x100xbf16, #tpu.memory_space<vmem>>, %arg2: memref<256x200xbf16, #tpu.memory_space<vmem>>, %arg3: memref<100x8xbf16, #tpu.memory_space<vmem>>, %arg4: memref<200x8xbf16, #tpu.memory_space<vmem>>, %arg5: memref<1x8xf32, #tpu.memory_space<vmem>>, %arg6: memref<256x8xf32, #tpu.memory_space<vmem>>, %arg7: memref<1x1x8xf32, #tpu.memory_space<vmem>>, %arg8: memref<1x1x8xf32, #tpu.memory_space<vmem>>) attributes {dimension_semantics = [#tpu.dimension_semantics<parallel>], iteration_bounds = array<i64: 2>, scalar_prefetch = 0 : i64, scratch_operands = 0 : i64, tpu.core_type = #tpu.core_type<tc>, window_params = [{transform_indices = @transform_0, window_bounds = array<i64: 256, 100>}, {transform_indices = @transform_1, window_bounds = array<i64: 256, 200>}, {pipeline_mode = #tpu.pipeline_mode<synchronous>, transform_indices = @transform_2, window_bounds = array<i64: 100, 8>}, {pipeline_mode = #tpu.pipeline_mode<synchronous>, transform_indices = @transform_3, window_bounds = array<i64: 200, 8>}, {pipeline_mode = #tpu.pipeline_mode<synchronous>, transform_indices = @transform_4, window_bounds = array<i64: 1, 8>}, {transform_indices = @transform_5, window_bounds = array<i64: 256, 8>}, {transform_indices = @transform_6, window_bounds = array<i64: 1, 1, 8>}, {transform_indices = @transform_7, window_bounds = array<i64: 1, 1, 8>}]} {
    %c0 = arith.constant 0 : index
    %c0_0 = arith.constant 0 : index
    %0 = vector.load %arg1[%c0, %c0_0] : memref<256x100xbf16, #tpu.memory_space<vmem>>, vector<256x100xbf16>
    %c0_1 = arith.constant 0 : index
    %c0_2 = arith.constant 0 : index
    %1 = vector.load %arg3[%c0_1, %c0_2] : memref<100x8xbf16, #tpu.memory_space<vmem>>, vector<100x8xbf16>
    %cst = arith.constant dense<0.000000e+00> : vector<256x8xf32>
    %2 = tpu.matmul %0, %1, %cst {dimension_numbers = #tpu.dot_dimension_numbers<[1], [0], [0], [1], [0, 0, 1, 1], [], []>} : vector<256x100xbf16>, vector<100x8xbf16>, vector<256x8xf32> -> vector<256x8xf32>
    %c0_3 = arith.constant 0 : index
    %c0_4 = arith.constant 0 : index
    %3 = vector.load %arg2[%c0_3, %c0_4] : memref<256x200xbf16, #tpu.memory_space<vmem>>, vector<256x200xbf16>
    %c0_5 = arith.constant 0 : index
    %c0_6 = arith.constant 0 : index
    %4 = vector.load %arg4[%c0_5, %c0_6] : memref<200x8xbf16, #tpu.memory_space<vmem>>, vector<200x8xbf16>
    %cst_7 = arith.constant dense<0.000000e+00> : vector<256x8xf32>
    %5 = tpu.matmul %3, %4, %cst_7 {dimension_numbers = #tpu.dot_dimension_numbers<[1], [0], [0], [1], [0, 0, 1, 1], [], []>} : vector<256x200xbf16>, vector<200x8xbf16>, vector<256x8xf32> -> vector<256x8xf32>
    %6 = arith.addf %2, %5 : vector<256x8xf32>
    %c0_8 = arith.constant 0 : index
    %c0_9 = arith.constant 0 : index
    %7 = vector.load %arg5[%c0_8, %c0_9] : memref<1x8xf32, #tpu.memory_space<vmem>>, vector<1x8xf32>
    %8 = vector.broadcast %7 : vector<1x8xf32> to vector<256x8xf32>
    %9 = arith.addf %6, %8 : vector<256x8xf32>
    %c0_10 = arith.constant 0 : index
    %c0_11 = arith.constant 0 : index
    %10 = vector.load %arg6[%c0_10, %c0_11] : memref<256x8xf32, #tpu.memory_space<vmem>>, vector<256x8xf32>
    tpu.vector_store %arg6[%c0_10, %c0_11], %9 {strides = array<i32>} : memref<256x8xf32, #tpu.memory_space<vmem>>, vector<256x8xf32>,
    %cst_12 = arith.constant dense<0.000000e+00> : vector<8xf32>
    %11 = vector.multi_reduction <add>, %9, %cst_12 [0] : vector<256x8xf32> to vector<8xf32>
    %12 = vector.shape_cast %11 : vector<8xf32> to vector<1x8xf32>
    %13 = vector.shape_cast %12 : vector<1x8xf32> to vector<1x1x8xf32>
    %c0_13 = arith.constant 0 : index
    %c0_14 = arith.constant 0 : index
    %c0_15 = arith.constant 0 : index
    %14 = vector.load %arg7[%c0_13, %c0_14, %c0_15] : memref<1x1x8xf32, #tpu.memory_space<vmem>>, vector<1x1x8xf32>
    tpu.vector_store %arg7[%c0_13, %c0_14, %c0_15], %13 {strides = array<i32>} : memref<1x1x8xf32, #tpu.memory_space<vmem>>, vector<1x1x8xf32>,
    %15 = arith.mulf %9, %9 : vector<256x8xf32>
    %cst_16 = arith.constant dense<0.000000e+00> : vector<8xf32>
    %16 = vector.multi_reduction <add>, %15, %cst_16 [0] : vector<256x8xf32> to vector<8xf32>
    %17 = vector.shape_cast %16 : vector<8xf32> to vector<1x8xf32>
    %18 = vector.shape_cast %17 : vector<1x8xf32> to vector<1x1x8xf32>
    %c0_17 = arith.constant 0 : index
    %c0_18 = arith.constant 0 : index
    %c0_19 = arith.constant 0 : index
    %19 = vector.load %arg8[%c0_17, %c0_18, %c0_19] : memref<1x1x8xf32, #tpu.memory_space<vmem>>, vector<1x1x8xf32>
    tpu.vector_store %arg8[%c0_17, %c0_18, %c0_19], %18 {strides = array<i32>} : memref<1x1x8xf32, #tpu.memory_space<vmem>>, vector<1x1x8xf32>,
    return
  }
  func.func @transform_0(%arg0: i32) -> (i32, i32) {
    %c0_i32 = arith.constant 0 : i32
    %c0_i32_0 = arith.constant 0 : i32
    return %arg0, %c0_i32 : i32, i32
  }
  func.func @transform_1(%arg0: i32) -> (i32, i32) {
    %c0_i32 = arith.constant 0 : i32
    %c0_i32_0 = arith.constant 0 : i32
    return %arg0, %c0_i32 : i32, i32
  }
  func.func @transform_2(%arg0: i32) -> (i32, i32) {
    %c0_i32 = arith.constant 0 : i32
    %c0_i32_0 = arith.constant 0 : i32
    %c0_i32_1 = arith.constant 0 : i32
    return %c0_i32, %c0_i32_0 : i32, i32
  }
  func.func @transform_3(%arg0: i32) -> (i32, i32) {
    %c0_i32 = arith.constant 0 : i32
    %c0_i32_0 = arith.constant 0 : i32
    %c0_i32_1 = arith.constant 0 : i32
    return %c0_i32, %c0_i32_0 : i32, i32
  }
  func.func @transform_4(%arg0: i32) -> (i32, i32) {
    %c0_i32 = arith.constant 0 : i32
    %c0_i32_0 = arith.constant 0 : i32
    %c0_i32_1 = arith.constant 0 : i32
    return %c0_i32, %c0_i32_0 : i32, i32
  }
  func.func @transform_5(%arg0: i32) -> (i32, i32) {
    %c0_i32 = arith.constant 0 : i32
    %c0_i32_0 = arith.constant 0 : i32
    return %arg0, %c0_i32 : i32, i32
  }
  func.func @transform_6(%arg0: i32) -> (i32, i32, i32) {
    %c0_i32 = arith.constant 0 : i32
    %c0_i32_0 = arith.constant 0 : i32
    %c0_i32_1 = arith.constant 0 : i32
    return %arg0, %c0_i32, %c0_i32_0 : i32, i32, i32
  }
  func.func @transform_7(%arg0: i32) -> (i32, i32, i32) {
    %c0_i32 = arith.constant 0 : i32
    %c0_i32_0 = arith.constant 0 : i32
    %c0_i32_1 = arith.constant 0 : i32
    return %arg0, %c0_i32, %c0_i32_0 : i32, i32, i32
  }
}

module attributes {stable_mosaic.version = 11 : i64} {
  func.func @_outconv_kernel(%arg0: i32, %arg1: memref<256x4xbf16, #tpu.memory_space<vmem>>, %arg2: memref<256x8xbf16, #tpu.memory_space<vmem>>, %arg3: memref<256x8xf32, #tpu.memory_space<vmem>>, %arg4: memref<1x8xf32, #tpu.memory_space<vmem>>, %arg5: memref<1x8xf32, #tpu.memory_space<vmem>>, %arg6: memref<1xf32, #tpu.memory_space<smem>>, %arg7: memref<4x8xbf16, #tpu.memory_space<vmem>>, %arg8: memref<8x8xbf16, #tpu.memory_space<vmem>>, %arg9: memref<8x8xbf16, #tpu.memory_space<vmem>>, %arg10: memref<1x8xf32, #tpu.memory_space<vmem>>, %arg11: memref<256x8xf32, #tpu.memory_space<vmem>>) attributes {dimension_semantics = [#tpu.dimension_semantics<parallel>], iteration_bounds = array<i64: 2>, scalar_prefetch = 0 : i64, scratch_operands = 0 : i64, tpu.core_type = #tpu.core_type<tc>, window_params = [{transform_indices = @transform_0, window_bounds = array<i64: 256, 4>}, {transform_indices = @transform_1, window_bounds = array<i64: 256, 8>}, {transform_indices = @transform_2, window_bounds = array<i64: 256, 8>}, {pipeline_mode = #tpu.pipeline_mode<synchronous>, transform_indices = @transform_3, window_bounds = array<i64: 1, 8>}, {pipeline_mode = #tpu.pipeline_mode<synchronous>, transform_indices = @transform_4, window_bounds = array<i64: 1, 8>}, {transform_indices = @transform_5, window_bounds = array<i64: 1>}, {pipeline_mode = #tpu.pipeline_mode<synchronous>, transform_indices = @transform_6, window_bounds = array<i64: 4, 8>}, {pipeline_mode = #tpu.pipeline_mode<synchronous>, transform_indices = @transform_7, window_bounds = array<i64: 8, 8>}, {pipeline_mode = #tpu.pipeline_mode<synchronous>, transform_indices = @transform_8, window_bounds = array<i64: 8, 8>}, {pipeline_mode = #tpu.pipeline_mode<synchronous>, transform_indices = @transform_9, window_bounds = array<i64: 1, 8>}, {transform_indices = @transform_10, window_bounds = array<i64: 256, 8>}]} {
    %c0 = arith.constant 0 : index
    %c0_0 = arith.constant 0 : index
    %0 = vector.load %arg3[%c0, %c0_0] : memref<256x8xf32, #tpu.memory_space<vmem>>, vector<256x8xf32>
    %c0_1 = arith.constant 0 : index
    %c0_2 = arith.constant 0 : index
    %1 = vector.load %arg4[%c0_1, %c0_2] : memref<1x8xf32, #tpu.memory_space<vmem>>, vector<1x8xf32>
    %2 = vector.broadcast %1 : vector<1x8xf32> to vector<256x8xf32>
    %3 = arith.mulf %0, %2 : vector<256x8xf32>
    %c0_3 = arith.constant 0 : index
    %c0_4 = arith.constant 0 : index
    %4 = vector.load %arg5[%c0_3, %c0_4] : memref<1x8xf32, #tpu.memory_space<vmem>>, vector<1x8xf32>
    %5 = vector.broadcast %4 : vector<1x8xf32> to vector<256x8xf32>
    %6 = arith.addf %3, %5 : vector<256x8xf32>
    %c0_5 = arith.constant 0 : index
    %7 = memref.load %arg6[%c0_5] : memref<1xf32, #tpu.memory_space<smem>>
    %cst = arith.constant 0.000000e+00 : f32
    %8 = vector.broadcast %cst : f32 to vector<256x8xf32>
    %9 = arith.cmpf oge, %6, %8 : vector<256x8xf32>
    %10 = vector.broadcast %7 : f32 to vector<256x8xf32>
    %11 = arith.mulf %10, %6 : vector<256x8xf32>
    %12 = arith.select %9, %6, %11 : vector<256x8xi1>, vector<256x8xf32>
    %c0_6 = arith.constant 0 : index
    %c0_7 = arith.constant 0 : index
    %13 = vector.load %arg1[%c0_6, %c0_7] : memref<256x4xbf16, #tpu.memory_space<vmem>>, vector<256x4xbf16>
    %c0_8 = arith.constant 0 : index
    %c0_9 = arith.constant 0 : index
    %14 = vector.load %arg7[%c0_8, %c0_9] : memref<4x8xbf16, #tpu.memory_space<vmem>>, vector<4x8xbf16>
    %cst_10 = arith.constant dense<0.000000e+00> : vector<256x8xf32>
    %15 = tpu.matmul %13, %14, %cst_10 {dimension_numbers = #tpu.dot_dimension_numbers<[1], [0], [0], [1], [0, 0, 1, 1], [], []>} : vector<256x4xbf16>, vector<4x8xbf16>, vector<256x8xf32> -> vector<256x8xf32>
    %c0_11 = arith.constant 0 : index
    %c0_12 = arith.constant 0 : index
    %16 = vector.load %arg2[%c0_11, %c0_12] : memref<256x8xbf16, #tpu.memory_space<vmem>>, vector<256x8xbf16>
    %c0_13 = arith.constant 0 : index
    %c0_14 = arith.constant 0 : index
    %17 = vector.load %arg8[%c0_13, %c0_14] : memref<8x8xbf16, #tpu.memory_space<vmem>>, vector<8x8xbf16>
    %cst_15 = arith.constant dense<0.000000e+00> : vector<256x8xf32>
    %18 = tpu.matmul %16, %17, %cst_15 {dimension_numbers = #tpu.dot_dimension_numbers<[1], [0], [0], [1], [0, 0, 1, 1], [], []>} : vector<256x8xbf16>, vector<8x8xbf16>, vector<256x8xf32> -> vector<256x8xf32>
    %19 = arith.addf %15, %18 : vector<256x8xf32>
    %20 = arith.truncf %12 : vector<256x8xf32> to vector<256x8xbf16>
    %c0_16 = arith.constant 0 : index
    %c0_17 = arith.constant 0 : index
    %21 = vector.load %arg9[%c0_16, %c0_17] : memref<8x8xbf16, #tpu.memory_space<vmem>>, vector<8x8xbf16>
    %cst_18 = arith.constant dense<0.000000e+00> : vector<256x8xf32>
    %22 = tpu.matmul %20, %21, %cst_18 {dimension_numbers = #tpu.dot_dimension_numbers<[1], [0], [0], [1], [0, 0, 1, 1], [], []>} : vector<256x8xbf16>, vector<8x8xbf16>, vector<256x8xf32> -> vector<256x8xf32>
    %23 = arith.addf %19, %22 : vector<256x8xf32>
    %c0_19 = arith.constant 0 : index
    %c0_20 = arith.constant 0 : index
    %24 = vector.load %arg10[%c0_19, %c0_20] : memref<1x8xf32, #tpu.memory_space<vmem>>, vector<1x8xf32>
    %25 = vector.broadcast %24 : vector<1x8xf32> to vector<256x8xf32>
    %26 = arith.addf %23, %25 : vector<256x8xf32>
    %c0_21 = arith.constant 0 : index
    %c0_22 = arith.constant 0 : index
    %27 = vector.load %arg11[%c0_21, %c0_22] : memref<256x8xf32, #tpu.memory_space<vmem>>, vector<256x8xf32>
    tpu.vector_store %arg11[%c0_21, %c0_22], %26 {strides = array<i32>} : memref<256x8xf32, #tpu.memory_space<vmem>>, vector<256x8xf32>,
    return
  }
  func.func @transform_0(%arg0: i32) -> (i32, i32) {
    %c0_i32 = arith.constant 0 : i32
    %c0_i32_0 = arith.constant 0 : i32
    return %arg0, %c0_i32 : i32, i32
  }
  func.func @transform_1(%arg0: i32) -> (i32, i32) {
    %c0_i32 = arith.constant 0 : i32
    %c0_i32_0 = arith.constant 0 : i32
    return %arg0, %c0_i32 : i32, i32
  }
  func.func @transform_2(%arg0: i32) -> (i32, i32) {
    %c0_i32 = arith.constant 0 : i32
    %c0_i32_0 = arith.constant 0 : i32
    return %arg0, %c0_i32 : i32, i32
  }
  func.func @transform_3(%arg0: i32) -> (i32, i32) {
    %c0_i32 = arith.constant 0 : i32
    %c0_i32_0 = arith.constant 0 : i32
    %c0_i32_1 = arith.constant 0 : i32
    return %c0_i32, %c0_i32_0 : i32, i32
  }
  func.func @transform_4(%arg0: i32) -> (i32, i32) {
    %c0_i32 = arith.constant 0 : i32
    %c0_i32_0 = arith.constant 0 : i32
    %c0_i32_1 = arith.constant 0 : i32
    return %c0_i32, %c0_i32_0 : i32, i32
  }
  func.func @transform_5(%arg0: i32) -> i32 {
    %c0_i32 = arith.constant 0 : i32
    %c0_i32_0 = arith.constant 0 : i32
    return %c0_i32 : i32
  }
  func.func @transform_6(%arg0: i32) -> (i32, i32) {
    %c0_i32 = arith.constant 0 : i32
    %c0_i32_0 = arith.constant 0 : i32
    %c0_i32_1 = arith.constant 0 : i32
    return %c0_i32, %c0_i32_0 : i32, i32
  }
  func.func @transform_7(%arg0: i32) -> (i32, i32) {
    %c0_i32 = arith.constant 0 : i32
    %c0_i32_0 = arith.constant 0 : i32
    %c0_i32_1 = arith.constant 0 : i32
    return %c0_i32, %c0_i32_0 : i32, i32
  }
  func.func @transform_8(%arg0: i32) -> (i32, i32) {
    %c0_i32 = arith.constant 0 : i32
    %c0_i32_0 = arith.constant 0 : i32
    %c0_i32_1 = arith.constant 0 : i32
    return %c0_i32, %c0_i32_0 : i32, i32
  }
  func.func @transform_9(%arg0: i32) -> (i32, i32) {
    %c0_i32 = arith.constant 0 : i32
    %c0_i32_0 = arith.constant 0 : i32
    %c0_i32_1 = arith.constant 0 : i32
    return %c0_i32, %c0_i32_0 : i32, i32
  }
  func.func @transform_10(%arg0: i32) -> (i32, i32) {
    %c0_i32 = arith.constant 0 : i32
    %c0_i32_0 = arith.constant 0 : i32
    return %arg0, %c0_i32 : i32, i32
  }
}

</mosaic_0001>

<llo_original>
// kernel: tile.13
$region0: #{tile.13}
  #allocation0 [shape = 's32[1]{0}', space=sflag, size = 0x4, scoped, tag = 'scoped memory for tile.13']
  %s0 = inlined_call_operand.vmem [shape: f32[8], index: 0, kind: input, shape index: {}]
  %s1 = inlined_call_operand.vmem [shape: f32[16,8], index: 1, kind: output, shape index: {}]
  // Predicated region
  $region2: #{tile.13} parent=0 // pred_check
    _
  $region3: #{tile.13} parent=0 // pred_check_branch
    %3 = sbr.rel (0) target = $region5
  $region4: #{tile.13} parent=0 // pred_region
    _
  $region5: #{tile.13} parent=0 // pred_fallthru
    _
  %v4 = vld [vmem:[%s0] ss:$0 sm:$0xff]
  %5 = vst [vmem:[%s1] sm:$0xff] %v4
  %s6 = scalar_lea.vmem %s1, 8
  %7 = vst [vmem:[%s6] sm:$0xff] %v4

// kernel: tile.14
$region0: #{tile.14}
  %s0 = inlined_call_operand.vmem [shape: f32[16,8], index: 0, kind: input, shape index: {}]
  %s1 = inlined_call_operand.vmem [shape: f32[1,128], index: 1, kind: output, shape index: {}]
  $region1: #{tile.14} parent=0
    #allocation0 [shape = 'u8[4096]{0}', space=vmem, size = 0x1000, scoped, tag = 'scoped mem for output reshape']
    %v2 = vld [vmem:[%s0] sm:$0x1]
    %vm3 = vcmask 64512
    %4 = vst.msk [vmem:[#allocation0] sm:$0x1] %vm3, %v2
    %s5 = scalar_lea.vmem %s0, 15
    %v6 = vld [vmem:[%s5] sm:$0x1]
    %7 = vrot.lane.b32.xlu0 %v6, 120
    %v8 = vpop.permute.xlu0 %7
    %vm9 = vcmask 1048512
    %10 = vst.msk [vmem:[#allocation0] sm:$0x1] %vm9, %v8
    %s11 = scalar_lea.vmem %s0, 14
    %v12 = vld [vmem:[%s11] sm:$0x1]
    %13 = vrot.lane.b32.xlu0 %v12, 112
    %v14 = vpop.permute.xlu0 %13
    %vm15 = vcmask 982912
    %16 = vst.msk [vmem:[#allocation0] sm:$0x1] %vm15, %v14
    %s17 = scalar_lea.vmem %s0, 13
    %v18 = vld [vmem:[%s17] sm:$0x1]
    %19 = vrot.lane.b32.xlu0 %v18, 104
    %v20 = vpop.permute.xlu0 %19
    %vm21 = vcmask 917312
    %22 = vst.msk [vmem:[#allocation0] sm:$0x1] %vm21, %v20
    %s23 = scalar_lea.vmem %s0, 12
    %v24 = vld [vmem:[%s23] sm:$0x1]
    %25 = vrot.lane.b32.xlu0 %v24, 96
    %v26 = vpop.permute.xlu0 %25
    %vm27 = vcmask 851712
    %28 = vst.msk [vmem:[#allocation0] sm:$0x1] %vm27, %v26
    %s29 = scalar_lea.vmem %s0, 11
    %v30 = vld [vmem:[%s29] sm:$0x1]
    %31 = vrot.lane.b32.xlu0 %v30, 88
    %v32 = vpop.permute.xlu0 %31
    %vm33 = vcmask 786112
    %34 = vst.msk [vmem:[#allocation0] sm:$0x1] %vm33, %v32
    %s35 = scalar_lea.vmem %s0, 10
    %v36 = vld [vmem:[%s35] sm:$0x1]
    %37 = vrot.lane.b32.xlu0 %v36, 80
    %v38 = vpop.permute.xlu0 %37
    %vm39 = vcmask 720512
    %40 = vst.msk [vmem:[#allocation0] sm:$0x1] %vm39, %v38
    %s41 = scalar_lea.vmem %s0, 9
    %v42 = vld [vmem:[%s41] sm:$0x1]
    %43 = vrot.lane.b32.xlu0 %v42, 72
    %v44 = vpop.permute.xlu0 %43
    %vm45 = vcmask 654912
    %46 = vst.msk [vmem:[#allocation0] sm:$0x1] %vm45, %v44
    %s47 = scalar_lea.vmem %s0, 8
    %v48 = vld [vmem:[%s47] sm:$0x1]
    %49 = vrot.lane.b32.xlu0 %v48, 64
    %v50 = vpop.permute.xlu0 %49
    %vm51 = vcmask 589312
    %52 = vst.msk [vmem:[#allocation0] sm:$0x1] %vm51, %v50
    %s53 = scalar_lea.vmem %s0, 7
    %v54 = vld [vmem:[%s53] sm:$0x1]
    %55 = vrot.lane.b32.xlu0 %v54, 56
    %v56 = vpop.permute.xlu0 %55
    %vm57 = vcmask 523712
    %58 = vst.msk [vmem:[#allocation0] sm:$0x1] %vm57, %v56
    %s59 = scalar_lea.vmem %s0, 6
    %v60 = vld [vmem:[%s59] sm:$0x1]
    %61 = vrot.lane.b32.xlu0 %v60, 48
    %v62 = vpop.permute.xlu0 %61
    %vm63 = vcmask 458112
    %64 = vst.msk [vmem:[#allocation0] sm:$0x1] %vm63, %v62
    %s65 = scalar_lea.vmem %s0, 5
    %v66 = vld [vmem:[%s65] sm:$0x1]
    %67 = vrot.lane.b32.xlu0 %v66, 40
    %v68 = vpop.permute.xlu0 %67
    %vm69 = vcmask 392512
    %70 = vst.msk [vmem:[#allocation0] sm:$0x1] %vm69, %v68
    %s71 = scalar_lea.vmem %s0, 4
    %v72 = vld [vmem:[%s71] sm:$0x1]
    %73 = vrot.lane.b32.xlu0 %v72, 32
    %v74 = vpop.permute.xlu0 %73
    %vm75 = vcmask 326912
    %76 = vst.msk [vmem:[#allocation0] sm:$0x1] %vm75, %v74
    %s77 = scalar_lea.vmem %s0, 3
    %v78 = vld [vmem:[%s77] sm:$0x1]
    %79 = vrot.lane.b32.xlu0 %v78, 24
    %v80 = vpop.permute.xlu0 %79
    %vm81 = vcmask 261312
    %82 = vst.msk [vmem:[#allocation0] sm:$0x1] %vm81, %v80
    %s83 = scalar_lea.vmem %s0, 2
    %v84 = vld [vmem:[%s83] sm:$0x1]
    %85 = vrot.lane.b32.xlu0 %v84, 16
    %v86 = vpop.permute.xlu0 %85
    %vm87 = vcmask 195712
    %88 = vst.msk [vmem:[#allocation0] sm:$0x1] %vm87, %v86
    %s89 = scalar_lea.vmem %s0, 1
    %v90 = vld [vmem:[%s89] sm:$0x1]
    %91 = vrot.lane.b32.xlu0 %v90, 8
    %v92 = vpop.permute.xlu0 %91
    %vm93 = vcmask 130112
    %94 = vst.msk [vmem:[#allocation0] sm:$0x1] %vm93, %v92
    %s96 = sshllo.u32 0, 1
    %v98 = vld [vmem:[#allocation0] sm:%s96]
    %s99 = sshllo.u32 0, 1
    %100 = vst [vmem:[%s1] sm:%s99] %v98

// kernel: dense_block_forward.4
$region0: #{dense_block_forward.4}
  #allocation0 [shape = 'u32[]', space=smem, size = 0x4, offset = 0x4, fixed_abs, tag = 'smem constant byte address 0x4 - core index']
  #allocation1 [shape = 'u32[144,128]{1,0:T(1,128)}', space=vmem, size = 0x12000, scoped, tag = 'internal scratch']
  %s0 = inlined_call_operand.vmem [shape: bf16[512,100], index: 0, kind: input, shape index: {}]
  %s1 = inlined_call_operand.vmem [shape: bf16[100,8], index: 1, kind: input, shape index: {}]
  %s2 = inlined_call_operand.vmem [shape: f32[1,8], index: 2, kind: input, shape index: {}]
  %s3 = inlined_call_operand.vmem [shape: f32[512,8], index: 3, kind: output, shape index: {0}]
  %s4 = inlined_call_operand.vmem [shape: f32[2,1,8], index: 4, kind: output, shape index: {1}]
  %s5 = inlined_call_operand.vmem [shape: f32[2,1,8], index: 5, kind: output, shape index: {2}]
  %6 = xla_tuple %s3, %s4, %s5
  %s7 = sld [smem:[#allocation0]]
  $region61: #{dense_block_forward.4} parent=0
    _
  %s9 = ssub.s32 1, %s7
  %s10 = scalar_select 0, %s9, %s7
  loop: start=0, step=1, limit=4
  $region2: #{dense_block_forward.4} parent=0 // loop_pre_header
    _
  $region3: #{dense_block_forward.4} parent=0 // loop_header
    %s12 = sphi 0, %s16
    %p13 = scmp.ge.s32.totalorder %s12, 4
    %s22 = sphi 0, %s24
    %s25 = sphi 0, %s22
    %s26 = sphi 0, %s25
    %s42 = sphi 0, %s26
    %s46 = sphi 0, %s46
    %s48 = sphi 0, %s46
    %s49 = sphi 0, %s48
    %s63 = sphi 0, %s49
    %s67 = sphi 0, %s67
    %s69 = sphi 0, %s67
    %s70 = sphi 0, %s69
    %s84 = sphi 0, %s70
    %s90 = sphi 0, %s92
    %s93 = sphi 0, %s90
    %s94 = sphi 0, %s93
    %s110 = sphi 0, %s94
    %s116 = sphi 0, %s118
    %s119 = sphi 0, %s116
    %s120 = sphi 0, %s119
    %s136 = sphi 0, %s120
    %s142 = sphi 0, %s144
    %s145 = sphi 0, %s142
    %s146 = sphi 0, %s145
    %s162 = sphi 0, %s146
  $region4: #{dense_block_forward.4} parent=0 // loop_header_branch
    %15 = sbr.rel (%p13) target = $region8
  $region5: #{dense_block_forward.4} parent=0 // loop_body
    %s17 = ssub.s32 %s12, 1
    %s18 = ssub.s32 %s12, 2
    %s19 = sadd.s32 %s12, 1
    %s20 = ssub.s32 %s12, %s19
    %p21 = scmp.eq.s32.totalorder %s20, 0
    %s23 = sadd.s32 %s22, 1
    %s24 = scalar_select %p21, %s22, %s23
    %p27 = pneg %p21
    %p28 = scmp.eq.s32.totalorder %s12, 1
    %p29 = por %p27, %p28
    %p30 = scmp.ne.s32.totalorder %s22, %s25
    %p31 = scmp.eq.s32.totalorder %s12, 0
    %p32 = por %p30, %p31
    %p33 = scmp.ne.s32.totalorder %s22, %s25
    %p34 = scmp.eq.s32.totalorder %s17, 1
    %p35 = por %p33, %p34
    %p36 = scmp.ne.s32.totalorder %s25, %s26
    %p37 = scmp.eq.s32.totalorder %s17, 0
    %p38 = por %p36, %p37
    %p39 = scmp.ne.s32.totalorder %s25, %s26
    %p40 = scmp.eq.s32.totalorder %s18, 1
    %p41 = por %p39, %p40
    %p43 = scmp.ne.s32.totalorder %s26, %s42
    %p44 = scmp.eq.s32.totalorder %s18, 0
    %p45 = por %p43, %p44
    %s47 = sadd.s32 %s46, 1
    %p50 = scmp.eq.s32.totalorder %s12, 1
    %p51 = scmp.ne.s32.totalorder %s46, %s48
    %p52 = scmp.eq.s32.totalorder %s12, 0
    %p53 = por %p51, %p52
    %p54 = scmp.ne.s32.totalorder %s46, %s48
    %p55 = scmp.eq.s32.totalorder %s17, 1
    %p56 = por %p54, %p55
    %p57 = scmp.ne.s32.totalorder %s48, %s49
    %p58 = scmp.eq.s32.totalorder %s17, 0
    %p59 = por %p57, %p58
    %p60 = scmp.ne.s32.totalorder %s48, %s49
    %p61 = scmp.eq.s32.totalorder %s18, 1
    %p62 = por %p60, %p61
    %p64 = scmp.ne.s32.totalorder %s49, %s63
    %p65 = scmp.eq.s32.totalorder %s18, 0
    %p66 = por %p64, %p65
    %s68 = sadd.s32 %s67, 1
    %p71 = scmp.eq.s32.totalorder %s12, 1
    %p72 = scmp.ne.s32.totalorder %s67, %s69
    %p73 = scmp.eq.s32.totalorder %s12, 0
    %p74 = por %p72, %p73
    %p75 = scmp.ne.s32.totalorder %s67, %s69
    %p76 = scmp.eq.s32.totalorder %s17, 1
    %p77 = por %p75, %p76
    %p78 = scmp.ne.s32.totalorder %s69, %s70
    %p79 = scmp.eq.s32.totalorder %s17, 0
    %p80 = por %p78, %p79
    %p81 = scmp.ne.s32.totalorder %s69, %s70
    %p82 = scmp.eq.s32.totalorder %s18, 1
    %p83 = por %p81, %p82
    %p85 = scmp.ne.s32.totalorder %s70, %s84
    %p86 = scmp.eq.s32.totalorder %s18, 0
    %p87 = por %p85, %p86
    %s88 = ssub.s32 %s12, %s19
    %p89 = scmp.eq.s32.totalorder %s88, 0
    %s91 = sadd.s32 %s90, 1
    %s92 = scalar_select %p89, %s90, %s91
    %p95 = pneg %p89
    %p96 = scmp.eq.s32.totalorder %s12, 1
    %p97 = por %p95, %p96
    %p98 = scmp.ne.s32.totalorder %s90, %s93
    %p99 = scmp.eq.s32.totalorder %s12, 0
    %p100 = por %p98, %p99
    %p101 = scmp.ne.s32.totalorder %s90, %s93
    %p102 = scmp.eq.s32.totalorder %s17, 1
    %p103 = por %p101, %p102
    %p104 = scmp.ne.s32.totalorder %s93, %s94
    %p105 = scmp.eq.s32.totalorder %s17, 0
    %p106 = por %p104, %p105
    %p107 = scmp.ne.s32.totalorder %s93, %s94
    %p108 = scmp.eq.s32.totalorder %s18, 1
    %p109 = por %p107, %p108
    %p111 = scmp.ne.s32.totalorder %s94, %s110
    %p112 = scmp.eq.s32.totalorder %s18, 0
    %p113 = por %p111, %p112
    %s114 = ssub.s32 %s12, %s19
    %p115 = scmp.eq.s32.totalorder %s114, 0
    %s117 = sadd.s32 %s116, 1
    %s118 = scalar_select %p115, %s116, %s117
    %p121 = pneg %p115
    %p122 = scmp.eq.s32.totalorder %s12, 1
    %p123 = por %p121, %p122
    %p124 = scmp.ne.s32.totalorder %s116, %s119
    %p125 = scmp.eq.s32.totalorder %s12, 0
    %p126 = por %p124, %p125
    %p127 = scmp.ne.s32.totalorder %s116, %s119
    %p128 = scmp.eq.s32.totalorder %s17, 1
    %p129 = por %p127, %p128
    %p130 = scmp.ne.s32.totalorder %s119, %s120
    %p131 = scmp.eq.s32.totalorder %s17, 0
    %p132 = por %p130, %p131
    %p133 = scmp.ne.s32.totalorder %s119, %s120
    %p134 = scmp.eq.s32.totalorder %s18, 1
    %p135 = por %p133, %p134
    %p137 = scmp.ne.s32.totalorder %s120, %s136
    %p138 = scmp.eq.s32.totalorder %s18, 0
    %p139 = por %p137, %p138
    %s140 = ssub.s32 %s12, %s19
    %p141 = scmp.eq.s32.totalorder %s140, 0
    %s143 = sadd.s32 %s142, 1
    %s144 = scalar_select %p141, %s142, %s143
    %p147 = pneg %p141
    %p148 = scmp.eq.s32.totalorder %s12, 1
    %p149 = por %p147, %p148
    %p150 = scmp.ne.s32.totalorder %s142, %s145
    %p151 = scmp.eq.s32.totalorder %s12, 0
    %p152 = por %p150, %p151
    %p153 = scmp.ne.s32.totalorder %s142, %s145
    %p154 = scmp.eq.s32.totalorder %s17, 1
    %p155 = por %p153, %p154
    %p156 = scmp.ne.s32.totalorder %s145, %s146
    %p157 = scmp.eq.s32.totalorder %s17, 0
    %p158 = por %p156, %p157
    %p159 = scmp.ne.s32.totalorder %s145, %s146
    %p160 = scmp.eq.s32.totalorder %s18, 1
    %p161 = por %p159, %p160
    %p163 = scmp.ne.s32.totalorder %s146, %s162
    %p164 = scmp.eq.s32.totalorder %s18, 0
    %p165 = por %p163, %p164
    %p166 = scmp.le.s32.totalorder 1, %s12
    %p167 = scmp.lt.s32.totalorder %s12, 3
    %p168 = pnand %p166, %p167
    %p169 = pneg %p168
    // Predicated region
    $region9: #{dense_block_forward.4} parent=5 // pred_check
      _
    $region10: #{dense_block_forward.4} parent=5 // pred_check_branch
      %171 = sbr.rel (%p168) target = $region12
    $region11: #{dense_block_forward.4} parent=5 // pred_region
      %s172 = ssub.s32 %s12, 1
      // Predicated region
      $region13: #{dense_block_forward.4} parent=11 // pred_check
        %p173 = pneg %p59
      $region14: #{dense_block_forward.4} parent=11 // pred_check_branch
        %175 = sbr.rel (%p173) target = $region16
      $region15: #{dense_block_forward.4} parent=11 // pred_region
        _
      $region16: #{dense_block_forward.4} parent=11 // pred_fallthru
        _
      // Predicated region
      $region17: #{dense_block_forward.4} parent=11 // pred_check
        %p176 = pneg %p80
      $region18: #{dense_block_forward.4} parent=11 // pred_check_branch
        %178 = sbr.rel (%p176) target = $region20
      $region19: #{dense_block_forward.4} parent=11 // pred_region
        _
      $region20: #{dense_block_forward.4} parent=11 // pred_fallthru
        _
    $region12: #{dense_block_forward.4} parent=5 // pred_fallthru
      _
    %p179 = scmp.lt.s32.totalorder %s12, 2
    // Predicated region
    $region21: #{dense_block_forward.4} parent=5 // pred_check
      %p180 = pneg %p179
    $region22: #{dense_block_forward.4} parent=5 // pred_check_branch
      %182 = sbr.rel (%p180) target = $region24
    $region23: #{dense_block_forward.4} parent=5 // pred_region
      // Predicated region
      $region25: #{dense_block_forward.4} parent=23 // pred_check
        %p183 = pneg %p32
      $region26: #{dense_block_forward.4} parent=23 // pred_check_branch
        %185 = sbr.rel (%p183) target = $region28
      $region27: #{dense_block_forward.4} parent=23 // pred_region
        %s186 = smul.u32 32, %s12
        %p187 = scmp.lt.s32.totalorder %s186, 63
        %s188 = scalar_select %p187, %s186, 63
        %s189 = smul.addr %s188, 4
        %s190 = scalar_lea.vmem %s0, %s189
        %s191 = smul.u32 32, %s12
      $region28: #{dense_block_forward.4} parent=23 // pred_fallthru
        _
    $region24: #{dense_block_forward.4} parent=5 // pred_fallthru
      _
    %p192 = scmp.le.s32.totalorder 1, %s12
    %p193 = scmp.lt.s32.totalorder %s12, 3
    %p194 = pnand %p192, %p193
    %p195 = pneg %p194
    // Predicated region
    $region29: #{dense_block_forward.4} parent=5 // pred_check
      _
    $region30: #{dense_block_forward.4} parent=5 // pred_check_branch
      %197 = sbr.rel (%p194) target = $region32
    $region31: #{dense_block_forward.4} parent=5 // pred_region
      %s198 = ssub.s32 %s12, 1
      %s199 = smul.u32 32, %s17
      %p200 = scmp.lt.s32.totalorder %s199, 63
      %s201 = scalar_select %p200, %s199, 63
      %s202 = smul.addr %s201, 4
      %s203 = scalar_lea.vmem %s0, %s202
      %p204 = pneg %p38
      %p205 = pneg %p35
      %p206 = pneg %p59
      %p207 = pneg %p56
      %p208 = pneg %p80
      %p209 = pneg %p77
      %p210 = pneg %p106
      %p211 = pneg %p103
      %s212 = smul.u32 32, %s17
      %p213 = scmp.lt.s32.totalorder %s212, 63
      %s214 = scalar_select %p213, %s212, 63
      %s215 = smul.addr %s214, 8
      %s216 = scalar_lea.vmem %s3, %s215
      %p217 = pneg %p132
      %p218 = pneg %p129
      %p219 = scmp.lt.s32.totalorder %s17, 1
      %s220 = scalar_select %p219, %s17, 1
      %s221 = scalar_lea.vmem %s4, %s220
      %p222 = pneg %p158
      %p223 = pneg %p155
      %p224 = scmp.lt.s32.totalorder %s17, 1
      %s225 = scalar_select %p224, %s17, 1
      %s226 = scalar_lea.vmem %s5, %s225
      %s227 = smul.u32 32, %s17
      %p228 = scmp.lt.s32.totalorder %s227, 63
      %s229 = scalar_select %p228, %s227, 63
      %s230 = smul.addr %s229, 4
      %s231 = scalar_lea.vmem %s0, %s230
      %s232 = smul.u32 32, %s17
      %s233 = smul.u32 32, %s17
      %p234 = scmp.lt.s32.totalorder %s233, 63
      %s235 = scalar_select %p234, %s233, 63
      %s236 = smul.addr %s235, 8
      %s237 = scalar_lea.vmem %s3, %s236
      %s238 = smul.u32 32, %s17
      %p239 = scmp.lt.s32.totalorder %s17, 1
      %s240 = scalar_select %p239, %s17, 1
      %s241 = scalar_lea.vmem %s4, %s240
      %p242 = scmp.lt.s32.totalorder %s17, 1
      %s243 = scalar_select %p242, %s17, 1
      %s244 = scalar_lea.vmem %s5, %s243
      %v246 = vld [vmem:[%s231] sm:$0xf]
      %v247 = vld [vmem:[%s231 + $0x4] sm:$0xf]
      %v248 = vld [vmem:[%s231 + $0x8] sm:$0xf]
      %v249 = vld [vmem:[%s231 + $0xc] sm:$0xf]
      %v250 = vld [vmem:[%s231 + $0x10] sm:$0xf]
      %v251 = vld [vmem:[%s231 + $0x14] sm:$0xf]
      %v252 = vld [vmem:[%s231 + $0x18] sm:$0xf]
      %v253 = vld [vmem:[%s231 + $0x1c] sm:$0xf]
      %v254 = vld [vmem:[%s231 + $0x20] sm:$0xf]
      %v255 = vld [vmem:[%s231 + $0x24] sm:$0xf]
      %v256 = vld [vmem:[%s231 + $0x28] sm:$0xf]
      %v257 = vld [vmem:[%s231 + $0x2c] sm:$0xf]
      %v258 = vld [vmem:[%s231 + $0x30] sm:$0xf]
      %v259 = vld [vmem:[%s231 + $0x34] sm:$0xf]
      %v260 = vld [vmem:[%s231 + $0x38] sm:$0xf]
      %v261 = vld [vmem:[%s231 + $0x3c] sm:$0xf]
      %v262 = vld [vmem:[%s231 + $0x40] sm:$0xf]
      %v263 = vld [vmem:[%s231 + $0x44] sm:$0xf]
      %v264 = vld [vmem:[%s231 + $0x48] sm:$0xf]
      %v265 = vld [vmem:[%s231 + $0x4c] sm:$0xf]
      %v266 = vld [vmem:[%s231 + $0x50] sm:$0xf]
      %v267 = vld [vmem:[%s231 + $0x54] sm:$0xf]
      %v268 = vld [vmem:[%s231 + $0x58] sm:$0xf]
      %v269 = vld [vmem:[%s231 + $0x5c] sm:$0xf]
      %v270 = vld [vmem:[%s231 + $0x60] sm:$0xf]
      %v271 = vld [vmem:[%s231 + $0x64] sm:$0xf]
      %v272 = vld [vmem:[%s231 + $0x68] sm:$0xf]
      %v273 = vld [vmem:[%s231 + $0x6c] sm:$0xf]
      %v274 = vld [vmem:[%s231 + $0x70] sm:$0xf]
      %v275 = vld [vmem:[%s231 + $0x74] sm:$0xf]
      %v276 = vld [vmem:[%s231 + $0x78] sm:$0xf]
      %v277 = vld [vmem:[%s231 + $0x7c] sm:$0xf]
      %v278 = vld [vmem:[%s1] sm:$0xf]
      %v279 = vld [vmem:[%s1 + $0x4] sm:$0xf]
      %v280 = vld [vmem:[%s1 + $0x8] sm:$0xf]
      %v281 = vld [vmem:[%s1 + $0xc] sm:$0xf]
      %v282 = vld [vmem:[%s1 + $0x10] sm:$0xf]
      %v283 = vld [vmem:[%s1 + $0x14] sm:$0xf]
      %v284 = vld [vmem:[%s1 + $0x18] sm:$0xf]
      %v285 = vld [vmem:[%s1 + $0x1c] sm:$0xf]
      %v286 = vld [vmem:[%s1 + $0x20] sm:$0xf]
      %v287 = vld [vmem:[%s1 + $0x24] sm:$0xf]
      %v288 = vld [vmem:[%s1 + $0x28] sm:$0xf]
      %v289 = vld [vmem:[%s1 + $0x2c] sm:$0xf]
      %v290 = vld [vmem:[%s1 + $0x30] sm:$0x3]
      %v291 = vld [vmem:[%s2] sm:$0x1]
      %v293 = vlaneseq
      %v294 = vshrl.u32 %v293, 7
      %v295 = vsub.s32 0, %v294
      %v296 = vrot.slane %v291, %v295
      %v330 = vunpack.c.l.b16 %v246
      %v331 = vunpack.c.l.b16 %v247
      %v332 = vunpack.c.l.b16 %v248
      %v333 = vunpack.c.l.b16 %v249
      %v334 = vunpack.c.l.b16 %v250
      %v335 = vunpack.c.l.b16 %v251
      %v336 = vunpack.c.l.b16 %v252
      %v337 = vunpack.c.l.b16 %v253
      %v338 = vunpack.c.l.b16 %v254
      %v339 = vunpack.c.l.b16 %v255
      %v340 = vunpack.c.l.b16 %v256
      %v341 = vunpack.c.l.b16 %v257
      %v342 = vunpack.c.l.b16 %v258
      %v343 = vunpack.c.l.b16 %v259
      %v344 = vunpack.c.l.b16 %v260
      %v345 = vunpack.c.l.b16 %v261
      %v346 = vunpack.c.l.b16 %v262
      %v347 = vunpack.c.l.b16 %v263
      %v348 = vunpack.c.l.b16 %v264
      %v349 = vunpack.c.l.b16 %v265
      %v350 = vunpack.c.l.b16 %v266
      %v351 = vunpack.c.l.b16 %v267
      %v352 = vunpack.c.l.b16 %v268
      %v353 = vunpack.c.l.b16 %v269
      %v354 = vunpack.c.l.b16 %v270
      %v355 = vunpack.c.l.b16 %v271
      %v356 = vunpack.c.l.b16 %v272
      %v357 = vunpack.c.l.b16 %v273
      %v358 = vunpack.c.l.b16 %v274
      %v359 = vunpack.c.l.b16 %v275
      %v360 = vunpack.c.l.b16 %v276
      %v361 = vunpack.c.l.b16 %v277
      %v362 = vpack.c.b16 %v331, %v330
      %v363 = vpack.c.b16 %v333, %v332
      %v364 = vpack.c.b16 %v335, %v334
      %v365 = vpack.c.b16 %v337, %v336
      %v366 = vpack.c.b16 %v339, %v338
      %v367 = vpack.c.b16 %v341, %v340
      %v368 = vpack.c.b16 %v343, %v342
      %v369 = vpack.c.b16 %v345, %v344
      %v370 = vpack.c.b16 %v347, %v346
      %v371 = vpack.c.b16 %v349, %v348
      %v372 = vpack.c.b16 %v351, %v350
      %v373 = vpack.c.b16 %v353, %v352
      %v374 = vpack.c.b16 %v355, %v354
      %v375 = vpack.c.b16 %v357, %v356
      %v376 = vpack.c.b16 %v359, %v358
      %v377 = vpack.c.b16 %v361, %v360
      %v391 = vunpack.c.l.b16 %v278
      %v392 = vunpack.c.l.b16 %v279
      %v393 = vunpack.c.l.b16 %v280
      %v394 = vunpack.c.l.b16 %v281
      %v395 = vunpack.c.l.b16 %v282
      %v396 = vunpack.c.l.b16 %v283
      %v397 = vunpack.c.l.b16 %v284
      %v398 = vunpack.c.l.b16 %v285
      %v399 = vunpack.c.l.b16 %v286
      %v400 = vunpack.c.l.b16 %v287
      %v401 = vunpack.c.l.b16 %v288
      %v402 = vunpack.c.l.b16 %v289
      %v403 = vunpack.c.l.b16 %v290
      %v404 = vpack.c.b16 %v392, %v391
      %v405 = vpack.c.b16 %v394, %v393
      %v406 = vpack.c.b16 %v396, %v395
      %v407 = vpack.c.b16 %v398, %v397
      %v408 = vpack.c.b16 %v400, %v399
      %v409 = vpack.c.b16 %v402, %v401
      %v410 = vpack.c.b16 %v403, %v403
      %vm417 = vcmask 818176
      %v419 = vsel %vm417, %v362, 0
      %v422 = vsel %vm417, %v363, 0
      %v425 = vsel %vm417, %v364, 0
      %v428 = vsel %vm417, %v365, 0
      %v431 = vsel %vm417, %v366, 0
      %v434 = vsel %vm417, %v367, 0
      %v437 = vsel %vm417, %v368, 0
      %v440 = vsel %vm417, %v369, 0
      %v443 = vsel %vm417, %v370, 0
      %v446 = vsel %vm417, %v371, 0
      %v449 = vsel %vm417, %v372, 0
      %v452 = vsel %vm417, %v373, 0
      %v455 = vsel %vm417, %v374, 0
      %v458 = vsel %vm417, %v375, 0
      %v461 = vsel %vm417, %v376, 0
      %v464 = vsel %vm417, %v377, 0
      %vm466 = vcmask 1041408
      %v468 = vsel %vm466, %v410, 0
      %470 = vmatprep.subr.bf16.mxu0 0
      %471 = vmatpush1.bf16.msra.mxu0 %v404
      %472 = vmatprep.subr.bf16.mxu0 0
      %473 = vmatpush1.bf16.msra.mxu0 %v405
      %474 = vmatprep.subr.bf16.mxu0 0
      %475 = vmatpush1.bf16.msra.mxu0 %v406
      %476 = vmatprep.subr.bf16.mxu0 0
      %477 = vmatpush1.bf16.msra.mxu0 %v407
      %478 = vmatprep.subr.bf16.mxu0 0
      %479 = vmatpush1.bf16.msra.mxu0 %v408
      %480 = vmatprep.subr.bf16.mxu0 0
      %481 = vmatpush1.bf16.msra.mxu0 %v409
      %482 = vmatprep.subr.bf16.mxu0 0
      %483 = vmatpush1.bf16.msra.mxu0 %v468
      %484 = vmatprep.subr.bf16.mxu0 0
      %485 = vmatpush1.bf16.msra.mxu0 0
      %486 = vmatprep.subr.bf16.mxu0 0
      %487 = vmatpush1.bf16.msra.mxu0 0
      %488 = vmatprep.subr.bf16.mxu0 0
      %489 = vmatpush1.bf16.msra.mxu0 0
      %490 = vmatprep.subr.bf16.mxu0 0
      %491 = vmatpush1.bf16.msra.mxu0 0
      %492 = vmatprep.subr.bf16.mxu0 0
      %493 = vmatpush1.bf16.msra.mxu0 0
      %494 = vmatprep.subr.bf16.mxu0 0
      %495 = vmatpush1.bf16.msra.mxu0 0
      %496 = vmatprep.subr.bf16.mxu0 0
      %497 = vmatpush1.bf16.msra.mxu0 0
      %498 = vmatprep.subr.bf16.mxu0 0
      %499 = vmatpush1.bf16.msra.mxu0 0
      %500 = vmatprep.subr.bf16.mxu0 0
      %501 = vmatpush1.bf16.msra.mxu0 0
      %502 = vmatprep.mubr.bf16.mxu0 0
      %503 = vmatmul.mubr.bf16.gmra.mrb[0].mxu0 %v419
      %v504 = vpop.f32.mrb[0].mxu0
      %v505 = vadd.f32 %v296, %v504
      %v506 = vpop.f32.mrb[0].mxu0
      %v507 = vpop.f32.mrb[0].mxu0
      %v508 = vadd.f32 %v296, %v507
      %v509 = vpop.f32.mrb[0].mxu0
      %510 = vmatprep.mubr.bf16.mxu0 0
      %511 = vmatmul.mubr.bf16.gmra.mrb[0].mxu0 %v422
      %v512 = vpop.f32.mrb[0].mxu0
      %v513 = vadd.f32 %v296, %v512
      %v514 = vpop.f32.mrb[0].mxu0
      %v515 = vpop.f32.mrb[0].mxu0
      %v516 = vadd.f32 %v296, %v515
      %v517 = vpop.f32.mrb[0].mxu0
      %518 = vmatprep.mubr.bf16.mxu0 0
      %519 = vmatmul.mubr.bf16.gmra.mrb[0].mxu0 %v425
      %v520 = vpop.f32.mrb[0].mxu0
      %v521 = vadd.f32 %v296, %v520
      %v522 = vpop.f32.mrb[0].mxu0
      %v523 = vpop.f32.mrb[0].mxu0
      %v524 = vadd.f32 %v296, %v523
      %v525 = vpop.f32.mrb[0].mxu0
      %526 = vmatprep.mubr.bf16.mxu0 0
      %527 = vmatmul.mubr.bf16.gmra.mrb[0].mxu0 %v428
      %v528 = vpop.f32.mrb[0].mxu0
      %v529 = vadd.f32 %v296, %v528
      %v530 = vpop.f32.mrb[0].mxu0
      %v531 = vpop.f32.mrb[0].mxu0
      %v532 = vadd.f32 %v296, %v531
      %v533 = vpop.f32.mrb[0].mxu0
      %534 = vmatprep.mubr.bf16.mxu0 0
      %535 = vmatmul.mubr.bf16.gmra.mrb[0].mxu0 %v431
      %v536 = vpop.f32.mrb[0].mxu0
      %v537 = vadd.f32 %v296, %v536
      %v538 = vpop.f32.mrb[0].mxu0
      %v539 = vpop.f32.mrb[0].mxu0
      %v540 = vadd.f32 %v296, %v539
      %v541 = vpop.f32.mrb[0].mxu0
      %542 = vmatprep.mubr.bf16.mxu0 0
      %543 = vmatmul.mubr.bf16.gmra.mrb[0].mxu0 %v434
      %v544 = vpop.f32.mrb[0].mxu0
      %v545 = vadd.f32 %v296, %v544
      %v546 = vpop.f32.mrb[0].mxu0
      %v547 = vpop.f32.mrb[0].mxu0
      %v548 = vadd.f32 %v296, %v547
      %v549 = vpop.f32.mrb[0].mxu0
      %550 = vmatprep.mubr.bf16.mxu0 0
      %551 = vmatmul.mubr.bf16.gmra.mrb[0].mxu0 %v437
      %v552 = vpop.f32.mrb[0].mxu0
      %v553 = vadd.f32 %v296, %v552
      %v554 = vpop.f32.mrb[0].mxu0
      %v555 = vpop.f32.mrb[0].mxu0
      %v556 = vadd.f32 %v296, %v555
      %v557 = vpop.f32.mrb[0].mxu0
      %558 = vmatprep.mubr.bf16.mxu0 0
      %559 = vmatmul.mubr.bf16.gmra.mrb[0].mxu0 %v440
      %v560 = vpop.f32.mrb[0].mxu0
      %v561 = vadd.f32 %v296, %v560
      %v562 = vpop.f32.mrb[0].mxu0
      %v563 = vpop.f32.mrb[0].mxu0
      %v564 = vadd.f32 %v296, %v563
      %v565 = vpop.f32.mrb[0].mxu0
      %566 = vmatprep.mubr.bf16.mxu0 0
      %567 = vmatmul.mubr.bf16.gmra.mrb[0].mxu0 %v443
      %v568 = vpop.f32.mrb[0].mxu0
      %v569 = vadd.f32 %v296, %v568
      %v570 = vpop.f32.mrb[0].mxu0
      %v571 = vpop.f32.mrb[0].mxu0
      %v572 = vadd.f32 %v296, %v571
      %v573 = vpop.f32.mrb[0].mxu0
      %574 = vmatprep.mubr.bf16.mxu0 0
      %575 = vmatmul.mubr.bf16.gmra.mrb[0].mxu0 %v446
      %v576 = vpop.f32.mrb[0].mxu0
      %v577 = vadd.f32 %v296, %v576
      %v578 = vpop.f32.mrb[0].mxu0
      %v579 = vpop.f32.mrb[0].mxu0
      %v580 = vadd.f32 %v296, %v579
      %v581 = vpop.f32.mrb[0].mxu0
      %582 = vmatprep.mubr.bf16.mxu0 0
      %583 = vmatmul.mubr.bf16.gmra.mrb[0].mxu0 %v449
      %v584 = vpop.f32.mrb[0].mxu0
      %v585 = vadd.f32 %v296, %v584
      %v586 = vpop.f32.mrb[0].mxu0
      %v587 = vpop.f32.mrb[0].mxu0
      %v588 = vadd.f32 %v296, %v587
      %v589 = vpop.f32.mrb[0].mxu0
      %590 = vmatprep.mubr.bf16.mxu0 0
      %591 = vmatmul.mubr.bf16.gmra.mrb[0].mxu0 %v452
      %v592 = vpop.f32.mrb[0].mxu0
      %v593 = vadd.f32 %v296, %v592
      %v594 = vpop.f32.mrb[0].mxu0
      %v595 = vpop.f32.mrb[0].mxu0
      %v596 = vadd.f32 %v296, %v595
      %v597 = vpop.f32.mrb[0].mxu0
      %598 = vmatprep.mubr.bf16.mxu0 0
      %599 = vmatmul.mubr.bf16.gmra.mrb[0].mxu0 %v455
      %v600 = vpop.f32.mrb[0].mxu0
      %v601 = vadd.f32 %v296, %v600
      %v602 = vpop.f32.mrb[0].mxu0
      %v603 = vpop.f32.mrb[0].mxu0
      %v604 = vadd.f32 %v296, %v603
      %v605 = vpop.f32.mrb[0].mxu0
      %606 = vmatprep.mubr.bf16.mxu0 0
      %607 = vmatmul.mubr.bf16.gmra.mrb[0].mxu0 %v458
      %v608 = vpop.f32.mrb[0].mxu0
      %v609 = vadd.f32 %v296, %v608
      %v610 = vpop.f32.mrb[0].mxu0
      %v611 = vpop.f32.mrb[0].mxu0
      %v612 = vadd.f32 %v296, %v611
      %v613 = vpop.f32.mrb[0].mxu0
      %614 = vmatprep.mubr.bf16.mxu0 0
      %615 = vmatmul.mubr.bf16.gmra.mrb[0].mxu0 %v461
      %v616 = vpop.f32.mrb[0].mxu0
      %v617 = vadd.f32 %v296, %v616
      %v618 = vpop.f32.mrb[0].mxu0
      %v619 = vpop.f32.mrb[0].mxu0
      %v620 = vadd.f32 %v296, %v619
      %v621 = vpop.f32.mrb[0].mxu0
      %622 = vmatprep.mubr.bf16.mxu0 0
      %623 = vmatmul.mubr.bf16.gmra.mrb[0].mxu0 %v464
      %v624 = vpop.f32.mrb[0].mxu0
      %v625 = vadd.f32 %v296, %v624
      %v626 = vpop.f32.mrb[0].mxu0
      %v627 = vpop.f32.mrb[0].mxu0
      %v628 = vadd.f32 %v296, %v627
      %v629 = vpop.f32.mrb[0].mxu0
      %630 = vdwg.mxu0
      %vm631 = vcmask 64512
      %632 = vst.msk [vmem:[%s237] sm:$0xff] %vm631, %v505
      %633 = vst.msk [vmem:[%s237 + $0x8] sm:$0xff] %vm631, %v508
      %634 = vst.msk [vmem:[%s237 + $0x10] sm:$0xff] %vm631, %v513
      %635 = vst.msk [vmem:[%s237 + $0x18] sm:$0xff] %vm631, %v516
      %636 = vst.msk [vmem:[%s237 + $0x20] sm:$0xff] %vm631, %v521
      %637 = vst.msk [vmem:[%s237 + $0x28] sm:$0xff] %vm631, %v524
      %638 = vst.msk [vmem:[%s237 + $0x30] sm:$0xff] %vm631, %v529
      %639 = vst.msk [vmem:[%s237 + $0x38] sm:$0xff] %vm631, %v532
      %640 = vst.msk [vmem:[%s237 + $0x40] sm:$0xff] %vm631, %v537
      %641 = vst.msk [vmem:[%s237 + $0x48] sm:$0xff] %vm631, %v540
      %642 = vst.msk [vmem:[%s237 + $0x50] sm:$0xff] %vm631, %v545
      %643 = vst.msk [vmem:[%s237 + $0x58] sm:$0xff] %vm631, %v548
      %644 = vst.msk [vmem:[%s237 + $0x60] sm:$0xff] %vm631, %v553
      %645 = vst.msk [vmem:[%s237 + $0x68] sm:$0xff] %vm631, %v556
      %646 = vst.msk [vmem:[%s237 + $0x70] sm:$0xff] %vm631, %v561
      %647 = vst.msk [vmem:[%s237 + $0x78] sm:$0xff] %vm631, %v564
      %648 = vst.msk [vmem:[%s237 + $0x80] sm:$0xff] %vm631, %v569
      %649 = vst.msk [vmem:[%s237 + $0x88] sm:$0xff] %vm631, %v572
      %650 = vst.msk [vmem:[%s237 + $0x90] sm:$0xff] %vm631, %v577
      %651 = vst.msk [vmem:[%s237 + $0x98] sm:$0xff] %vm631, %v580
      %652 = vst.msk [vmem:[%s237 + $0xa0] sm:$0xff] %vm631, %v585
      %653 = vst.msk [vmem:[%s237 + $0xa8] sm:$0xff] %vm631, %v588
      %654 = vst.msk [vmem:[%s237 + $0xb0] sm:$0xff] %vm631, %v593
      %655 = vst.msk [vmem:[%s237 + $0xb8] sm:$0xff] %vm631, %v596
      %656 = vst.msk [vmem:[%s237 + $0xc0] sm:$0xff] %vm631, %v601
      %657 = vst.msk [vmem:[%s237 + $0xc8] sm:$0xff] %vm631, %v604
      %658 = vst.msk [vmem:[%s237 + $0xd0] sm:$0xff] %vm631, %v609
      %659 = vst.msk [vmem:[%s237 + $0xd8] sm:$0xff] %vm631, %v612
      %660 = vst.msk [vmem:[%s237 + $0xe0] sm:$0xff] %vm631, %v617
      %661 = vst.msk [vmem:[%s237 + $0xe8] sm:$0xff] %vm631, %v620
      %662 = vst.msk [vmem:[%s237 + $0xf0] sm:$0xff] %vm631, %v625
      %663 = vst.msk [vmem:[%s237 + $0xf8] sm:$0xff] %vm631, %v628
      %v664 = vsel %vm631, %v505, 0.0
      %v665 = vsel %vm631, %v508, 0.0
      %v666 = vadd.f32 %v664, %v665
      %v667 = vsel %vm631, %v513, 0.0
      %v668 = vadd.f32 %v666, %v667
      %v669 = vsel %vm631, %v516, 0.0
      %v670 = vadd.f32 %v668, %v669
      %v671 = vsel %vm631, %v521, 0.0
      %v672 = vadd.f32 %v670, %v671
      %v673 = vsel %vm631, %v524, 0.0
      %v674 = vadd.f32 %v672, %v673
      %v675 = vsel %vm631, %v529, 0.0
      %v676 = vadd.f32 %v674, %v675
      %v677 = vsel %vm631, %v532, 0.0
      %v678 = vadd.f32 %v676, %v677
      %v679 = vsel %vm631, %v537, 0.0
      %v680 = vadd.f32 %v678, %v679
      %v681 = vsel %vm631, %v540, 0.0
      %v682 = vadd.f32 %v680, %v681
      %v683 = vsel %vm631, %v545, 0.0
      %v684 = vadd.f32 %v682, %v683
      %v685 = vsel %vm631, %v548, 0.0
      %v686 = vadd.f32 %v684, %v685
      %v687 = vsel %vm631, %v553, 0.0
      %v688 = vadd.f32 %v686, %v687
      %v689 = vsel %vm631, %v556, 0.0
      %v690 = vadd.f32 %v688, %v689
      %v691 = vsel %vm631, %v561, 0.0
      %v692 = vadd.f32 %v690, %v691
      %v693 = vsel %vm631, %v564, 0.0
      %v694 = vadd.f32 %v692, %v693
      %v695 = vsel %vm631, %v569, 0.0
      %v696 = vadd.f32 %v694, %v695
      %v697 = vsel %vm631, %v572, 0.0
      %v698 = vadd.f32 %v696, %v697
      %v699 = vsel %vm631, %v577, 0.0
      %v700 = vadd.f32 %v698, %v699
      %v701 = vsel %vm631, %v580, 0.0
      %v702 = vadd.f32 %v700, %v701
      %v703 = vsel %vm631, %v585, 0.0
      %v704 = vadd.f32 %v702, %v703
      %v705 = vsel %vm631, %v588, 0.0
      %v706 = vadd.f32 %v704, %v705
      %v707 = vsel %vm631, %v593, 0.0
      %v708 = vadd.f32 %v706, %v707
      %v709 = vsel %vm631, %v596, 0.0
      %v710 = vadd.f32 %v708, %v709
      %v711 = vsel %vm631, %v601, 0.0
      %v712 = vadd.f32 %v710, %v711
      %v713 = vsel %vm631, %v604, 0.0
      %v714 = vadd.f32 %v712, %v713
      %v715 = vsel %vm631, %v609, 0.0
      %v716 = vadd.f32 %v714, %v715
      %v717 = vsel %vm631, %v612, 0.0
      %v718 = vadd.f32 %v716, %v717
      %v719 = vsel %vm631, %v617, 0.0
      %v720 = vadd.f32 %v718, %v719
      %v721 = vsel %vm631, %v620, 0.0
      %v722 = vadd.f32 %v720, %v721
      %v723 = vsel %vm631, %v625, 0.0
      %v724 = vadd.f32 %v722, %v723
      %v725 = vsel %vm631, %v628, 0.0
      %v726 = vadd.f32 %v724, %v725
      %v727 = vrot.slane %v726, 4
      %v728 = vadd.f32 %v726, %v727
      %v729 = vrot.slane %v728, 2
      %v730 = vadd.f32 %v728, %v729
      %v731 = vrot.slane %v730, 1
      %v732 = vadd.f32 %v730, %v731
      %vm733 = vcmask 57344
      %734 = vst.msk [vmem:[%s241] sm:$0x1] %vm733, %v732
      %v735 = vmul.f32 %v505, %v505
      %v736 = vmul.f32 %v508, %v508
      %v737 = vmul.f32 %v513, %v513
      %v738 = vmul.f32 %v516, %v516
      %v739 = vmul.f32 %v521, %v521
      %v740 = vmul.f32 %v524, %v524
      %v741 = vmul.f32 %v529, %v529
      %v742 = vmul.f32 %v532, %v532
      %v743 = vmul.f32 %v537, %v537
      %v744 = vmul.f32 %v540, %v540
      %v745 = vmul.f32 %v545, %v545
      %v746 = vmul.f32 %v548, %v548
      %v747 = vmul.f32 %v553, %v553
      %v748 = vmul.f32 %v556, %v556
      %v749 = vmul.f32 %v561, %v561
      %v750 = vmul.f32 %v564, %v564
      %v751 = vmul.f32 %v569, %v569
      %v752 = vmul.f32 %v572, %v572
      %v753 = vmul.f32 %v577, %v577
      %v754 = vmul.f32 %v580, %v580
      %v755 = vmul.f32 %v585, %v585
      %v756 = vmul.f32 %v588, %v588
      %v757 = vmul.f32 %v593, %v593
      %v758 = vmul.f32 %v596, %v596
      %v759 = vmul.f32 %v601, %v601
      %v760 = vmul.f32 %v604, %v604
      %v761 = vmul.f32 %v609, %v609
      %v762 = vmul.f32 %v612, %v612
      %v763 = vmul.f32 %v617, %v617
      %v764 = vmul.f32 %v620, %v620
      %v765 = vmul.f32 %v625, %v625
      %v766 = vmul.f32 %v628, %v628
      %v767 = vsel %vm631, %v735, 0.0
      %v768 = vsel %vm631, %v736, 0.0
      %v769 = vadd.f32 %v767, %v768
      %v770 = vsel %vm631, %v737, 0.0
      %v771 = vadd.f32 %v769, %v770
      %v772 = vsel %vm631, %v738, 0.0
      %v773 = vadd.f32 %v771, %v772
      %v774 = vsel %vm631, %v739, 0.0
      %v775 = vadd.f32 %v773, %v774
      %v776 = vsel %vm631, %v740, 0.0
      %v777 = vadd.f32 %v775, %v776
      %v778 = vsel %vm631, %v741, 0.0
      %v779 = vadd.f32 %v777, %v778
      %v780 = vsel %vm631, %v742, 0.0
      %v781 = vadd.f32 %v779, %v780
      %v782 = vsel %vm631, %v743, 0.0
      %v783 = vadd.f32 %v781, %v782
      %v784 = vsel %vm631, %v744, 0.0
      %v785 = vadd.f32 %v783, %v784
      %v786 = vsel %vm631, %v745, 0.0
      %v787 = vadd.f32 %v785, %v786
      %v788 = vsel %vm631, %v746, 0.0
      %v789 = vadd.f32 %v787, %v788
      %v790 = vsel %vm631, %v747, 0.0
      %v791 = vadd.f32 %v789, %v790
      %v792 = vsel %vm631, %v748, 0.0
      %v793 = vadd.f32 %v791, %v792
      %v794 = vsel %vm631, %v749, 0.0
      %v795 = vadd.f32 %v793, %v794
      %v796 = vsel %vm631, %v750, 0.0
      %v797 = vadd.f32 %v795, %v796
      %v798 = vsel %vm631, %v751, 0.0
      %v799 = vadd.f32 %v797, %v798
      %v800 = vsel %vm631, %v752, 0.0
      %v801 = vadd.f32 %v799, %v800
      %v802 = vsel %vm631, %v753, 0.0
      %v803 = vadd.f32 %v801, %v802
      %v804 = vsel %vm631, %v754, 0.0
      %v805 = vadd.f32 %v803, %v804
      %v806 = vsel %vm631, %v755, 0.0
      %v807 = vadd.f32 %v805, %v806
      %v808 = vsel %vm631, %v756, 0.0
      %v809 = vadd.f32 %v807, %v808
      %v810 = vsel %vm631, %v757, 0.0
      %v811 = vadd.f32 %v809, %v810
      %v812 = vsel %vm631, %v758, 0.0
      %v813 = vadd.f32 %v811, %v812
      %v814 = vsel %vm631, %v759, 0.0
      %v815 = vadd.f32 %v813, %v814
      %v816 = vsel %vm631, %v760, 0.0
      %v817 = vadd.f32 %v815, %v816
      %v818 = vsel %vm631, %v761, 0.0
      %v819 = vadd.f32 %v817, %v818
      %v820 = vsel %vm631, %v762, 0.0
      %v821 = vadd.f32 %v819, %v820
      %v822 = vsel %vm631, %v763, 0.0
      %v823 = vadd.f32 %v821, %v822
      %v824 = vsel %vm631, %v764, 0.0
      %v825 = vadd.f32 %v823, %v824
      %v826 = vsel %vm631, %v765, 0.0
      %v827 = vadd.f32 %v825, %v826
      %v828 = vsel %vm631, %v766, 0.0
      %v829 = vadd.f32 %v827, %v828
      %v830 = vrot.slane %v829, 4
      %v831 = vadd.f32 %v829, %v830
      %v832 = vrot.slane %v831, 2
      %v833 = vadd.f32 %v831, %v832
      %v834 = vrot.slane %v833, 1
      %v835 = vadd.f32 %v833, %v834
      %836 = vst.msk [vmem:[%s244] sm:$0x1] %vm733, %v835
      %s837 = smul.u32 32, %s17
      %p838 = scmp.lt.s32.totalorder %s837, 63
      %s839 = scalar_select %p838, %s837, 63
      %s840 = smul.addr %s839, 8
      %s841 = scalar_lea.vmem %s3, %s840
      %p842 = scmp.lt.s32.totalorder %s17, 1
      %s843 = scalar_select %p842, %s17, 1
      %s844 = scalar_lea.vmem %s4, %s843
      %p845 = scmp.lt.s32.totalorder %s17, 1
      %s846 = scalar_select %p845, %s17, 1
      %s847 = scalar_lea.vmem %s5, %s846
      // Predicated region
      $region33: #{dense_block_forward.4} parent=31 // pred_check
        %p848 = pneg %p103
      $region34: #{dense_block_forward.4} parent=31 // pred_check_branch
        %850 = sbr.rel (%p848) target = $region36
      $region35: #{dense_block_forward.4} parent=31 // pred_region
        %s851 = smul.u32 32, %s17
      $region36: #{dense_block_forward.4} parent=31 // pred_fallthru
        _
      // Predicated region
      $region37: #{dense_block_forward.4} parent=31 // pred_check
        %p852 = pneg %p129
      $region38: #{dense_block_forward.4} parent=31 // pred_check_branch
        %854 = sbr.rel (%p852) target = $region40
      $region39: #{dense_block_forward.4} parent=31 // pred_region
        _
      $region40: #{dense_block_forward.4} parent=31 // pred_fallthru
        _
      // Predicated region
      $region41: #{dense_block_forward.4} parent=31 // pred_check
        %p855 = pneg %p155
      $region42: #{dense_block_forward.4} parent=31 // pred_check_branch
        %857 = sbr.rel (%p855) target = $region44
      $region43: #{dense_block_forward.4} parent=31 // pred_region
        _
      $region44: #{dense_block_forward.4} parent=31 // pred_fallthru
        _
    $region32: #{dense_block_forward.4} parent=5 // pred_fallthru
      _
    %p858 = scmp.le.s32.totalorder 2, %s12
    // Predicated region
    $region45: #{dense_block_forward.4} parent=5 // pred_check
      %p859 = pneg %p858
    $region46: #{dense_block_forward.4} parent=5 // pred_check_branch
      %861 = sbr.rel (%p859) target = $region48
    $region47: #{dense_block_forward.4} parent=5 // pred_region
      %s862 = ssub.s32 %s12, 2
      // Predicated region
      $region49: #{dense_block_forward.4} parent=47 // pred_check
        %p863 = pneg %p109
      $region50: #{dense_block_forward.4} parent=47 // pred_check_branch
        %865 = sbr.rel (%p863) target = $region52
      $region51: #{dense_block_forward.4} parent=47 // pred_region
        %s866 = smul.u32 32, %s18
        %p867 = scmp.lt.s32.totalorder %s866, 63
        %s868 = scalar_select %p867, %s866, 63
        %s869 = smul.addr %s868, 8
        %s870 = scalar_lea.vmem %s3, %s869
      $region52: #{dense_block_forward.4} parent=47 // pred_fallthru
        _
      // Predicated region
      $region53: #{dense_block_forward.4} parent=47 // pred_check
        %p871 = pneg %p135
      $region54: #{dense_block_forward.4} parent=47 // pred_check_branch
        %873 = sbr.rel (%p871) target = $region56
      $region55: #{dense_block_forward.4} parent=47 // pred_region
        %p874 = scmp.lt.s32.totalorder %s18, 1
        %s875 = scalar_select %p874, %s18, 1
        %s876 = scalar_lea.vmem %s4, %s875
      $region56: #{dense_block_forward.4} parent=47 // pred_fallthru
        _
      // Predicated region
      $region57: #{dense_block_forward.4} parent=47 // pred_check
        %p877 = pneg %p161
      $region58: #{dense_block_forward.4} parent=47 // pred_check_branch
        %879 = sbr.rel (%p877) target = $region60
      $region59: #{dense_block_forward.4} parent=47 // pred_region
        %p880 = scmp.lt.s32.totalorder %s18, 1
        %s881 = scalar_select %p880, %s18, 1
        %s882 = scalar_lea.vmem %s5, %s881
      $region60: #{dense_block_forward.4} parent=47 // pred_fallthru
        _
    $region48: #{dense_block_forward.4} parent=5 // pred_fallthru
      _
  $region6: #{dense_block_forward.4} parent=0 // loop_footer
    %s16 = sadd.s32 1, %s12
  $region7: #{dense_block_forward.4} parent=0 // loop_footer_branch
    %11 = sbr.rel target = $region3
  $region8: #{dense_block_forward.4} parent=0 // loop_exit
    _

// kernel: dense_block_forward.5
$region0: #{dense_block_forward.5}
  #allocation0 [shape = 'u32[]', space=smem, size = 0x4, offset = 0x4, fixed_abs, tag = 'smem constant byte address 0x4 - core index']
  #allocation1 [shape = 'u32[144,128]{1,0:T(1,128)}', space=vmem, size = 0x12000, scoped, tag = 'internal scratch']
  #allocation2 [shape = 'f32[1]{0:T(128)S(6)}', space=smem, size = 0x200, scoped, tag = 'scoped memory for dense_block_forward.5']
  %s0 = inlined_call_operand.vmem [shape: f32[32,128], index: 0, kind: input, shape index: {}]
  %s1 = inlined_call_operand.vmem [shape: f32[1,128], index: 1, kind: input, shape index: {}]
  %s2 = inlined_call_operand.vmem [shape: f32[1,128], index: 2, kind: input, shape index: {}]
  %s3 = inlined_call_operand.<no memory space> [shape: f32[1], index: 3, kind: input, shape index: {}]
  %s4 = inlined_call_operand.vmem [shape: bf16[32,128], index: 4, kind: output, shape index: {}]
  %s5 = sld [smem:[#allocation0]]
  $region26: #{dense_block_forward.5} parent=0
    _
  %s7 = ssub.s32 1, %s5
  %s8 = scalar_select 0, %s7, %s5
  %9 = sst [smem:[#allocation2]] %s3
  // Predicated region
  $region2: #{dense_block_forward.5} parent=0 // pred_check
    _
  $region3: #{dense_block_forward.5} parent=0 // pred_check_branch
    %11 = sbr.rel (0) target = $region5
  $region4: #{dense_block_forward.5} parent=0 // pred_region
    _
  $region5: #{dense_block_forward.5} parent=0 // pred_fallthru
    _
  // Predicated region
  $region6: #{dense_block_forward.5} parent=0 // pred_check
    _
  $region7: #{dense_block_forward.5} parent=0 // pred_check_branch
    %13 = sbr.rel (0) target = $region9
  $region8: #{dense_block_forward.5} parent=0 // pred_region
    _
  $region9: #{dense_block_forward.5} parent=0 // pred_fallthru
    _
  // Predicated region
  $region10: #{dense_block_forward.5} parent=0 // pred_check
    _
  $region11: #{dense_block_forward.5} parent=0 // pred_check_branch
    %15 = sbr.rel (0) target = $region13
  $region12: #{dense_block_forward.5} parent=0 // pred_region
    _
  $region13: #{dense_block_forward.5} parent=0 // pred_fallthru
    _
  // Predicated region
  $region14: #{dense_block_forward.5} parent=0 // pred_check
    _
  $region15: #{dense_block_forward.5} parent=0 // pred_check_branch
    %17 = sbr.rel (0) target = $region17
  $region16: #{dense_block_forward.5} parent=0 // pred_region
    _
  $region17: #{dense_block_forward.5} parent=0 // pred_fallthru
    _
  %v18 = vld [vmem:[%s0] sm:$0xff]
  %v19 = vld [vmem:[%s0 + $0x8] sm:$0xff]
  %v20 = vld [vmem:[%s0 + $0x10] sm:$0xff]
  %v21 = vld [vmem:[%s0 + $0x18] sm:$0xff]
  %v22 = vld [vmem:[%s1] sm:$0x1]
  %v24 = vlaneseq
  %v25 = vshrl.u32 %v24, 7
  %v26 = vsub.s32 0, %v25
  %v27 = vrot.slane %v22, %v26
  %v29 = vmul.f32 %v18, %v27
  %v30 = vmul.f32 %v19, %v27
  %v31 = vmul.f32 %v20, %v27
  %v32 = vmul.f32 %v21, %v27
  %v33 = vld [vmem:[%s2] sm:$0x1]
  %v35 = vlaneseq
  %v36 = vshrl.u32 %v35, 7
  %v37 = vsub.s32 0, %v36
  %v38 = vrot.slane %v33, %v37
  %v40 = vadd.f32 %v29, %v38
  %v41 = vadd.f32 %v30, %v38
  %v42 = vadd.f32 %v31, %v38
  %v43 = vadd.f32 %v32, %v38
  %s44 = sld [smem:[#allocation2]]
  %vm45 = vcmp.ge.f32.partialorder %v40, 0.0
  %vm46 = vcmp.ge.f32.partialorder %v41, 0.0
  %vm47 = vcmp.ge.f32.partialorder %v42, 0.0
  %vm48 = vcmp.ge.f32.partialorder %v43, 0.0
  %v49 = vstv %s44
  %v50 = vmul.f32 %v49, %v40
  %v51 = vmul.f32 %v49, %v41
  %v52 = vmul.f32 %v49, %v42
  %v53 = vmul.f32 %v49, %v43
  %v54 = vsel %vm45, %v40, %v50
  %v55 = vsel %vm46, %v41, %v51
  %v56 = vsel %vm47, %v42, %v52
  %v57 = vsel %vm48, %v43, %v53
  %v58 = vpack.c.bf16 %v55, %v54
  %v59 = vpack.c.bf16 %v57, %v56
  %v62 = vunpack.c.l.b16 %v58
  %v63 = vunpack.c.h.b16 %v58
  %v64 = vunpack.c.l.b16 %v59
  %v65 = vunpack.c.h.b16 %v59
  %v66 = vpack.c.b16 %v62, %v62
  %v67 = vpack.c.b16 %v63, %v63
  %v68 = vpack.c.b16 %v64, %v64
  %v69 = vpack.c.b16 %v65, %v65
  %74 = vst [vmem:[%s4] sm:$0xf] %v66
  %75 = vst [vmem:[%s4 + $0x4] sm:$0xf] %v67
  %76 = vst [vmem:[%s4 + $0x8] sm:$0xf] %v68
  %77 = vst [vmem:[%s4 + $0xc] sm:$0xf] %v69
  // Predicated region
  $region18: #{dense_block_forward.5} parent=0 // pred_check
    _
  $region19: #{dense_block_forward.5} parent=0 // pred_check_branch
    %79 = sbr.rel (0) target = $region21
  $region20: #{dense_block_forward.5} parent=0 // pred_region
    _
  $region21: #{dense_block_forward.5} parent=0 // pred_fallthru
    _
  // Predicated region
  $region22: #{dense_block_forward.5} parent=0 // pred_check
    _
  $region23: #{dense_block_forward.5} parent=0 // pred_check_branch
    %81 = sbr.rel (0) target = $region25
  $region24: #{dense_block_forward.5} parent=0 // pred_region
    _
  $region25: #{dense_block_forward.5} parent=0 // pred_fallthru
    _

// kernel: dense_block_forward.6
$region0: #{dense_block_forward.6}
  #allocation0 [shape = 'u32[]', space=smem, size = 0x4, offset = 0x4, fixed_abs, tag = 'smem constant byte address 0x4 - core index']
  #allocation1 [shape = 'u32[144,128]{1,0:T(1,128)}', space=vmem, size = 0x12000, scoped, tag = 'internal scratch']
  %s0 = inlined_call_operand.vmem [shape: bf16[512,100], index: 0, kind: input, shape index: {}]
  %s1 = inlined_call_operand.vmem [shape: bf16[512,200], index: 1, kind: input, shape index: {}]
  %s2 = inlined_call_operand.vmem [shape: bf16[100,8], index: 2, kind: input, shape index: {}]
  %s3 = inlined_call_operand.vmem [shape: bf16[200,8], index: 3, kind: input, shape index: {}]
  %s4 = inlined_call_operand.vmem [shape: f32[1,8], index: 4, kind: input, shape index: {}]
  %s5 = inlined_call_operand.vmem [shape: f32[512,8], index: 5, kind: output, shape index: {0}]
  %s6 = inlined_call_operand.vmem [shape: f32[2,1,8], index: 6, kind: output, shape index: {1}]
  %s7 = inlined_call_operand.vmem [shape: f32[2,1,8], index: 7, kind: output, shape index: {2}]
  %8 = xla_tuple %s5, %s6, %s7
  %s9 = sld [smem:[#allocation0]]
  $region69: #{dense_block_forward.6} parent=0
    _
  %s11 = ssub.s32 1, %s9
  %s12 = scalar_select 0, %s11, %s9
  loop: start=0, step=1, limit=4
  $region2: #{dense_block_forward.6} parent=0 // loop_pre_header
    _
  $region3: #{dense_block_forward.6} parent=0 // loop_header
    %s14 = sphi 0, %s18
    %p15 = scmp.ge.s32.totalorder %s14, 4
    %s24 = sphi 0, %s26
    %s27 = sphi 0, %s24
    %s28 = sphi 0, %s27
    %s44 = sphi 0, %s28
    %s50 = sphi 0, %s52
    %s53 = sphi 0, %s50
    %s54 = sphi 0, %s53
    %s70 = sphi 0, %s54
    %s74 = sphi 0, %s74
    %s76 = sphi 0, %s74
    %s77 = sphi 0, %s76
    %s91 = sphi 0, %s77
    %s95 = sphi 0, %s95
    %s97 = sphi 0, %s95
    %s98 = sphi 0, %s97
    %s112 = sphi 0, %s98
    %s116 = sphi 0, %s116
    %s118 = sphi 0, %s116
    %s119 = sphi 0, %s118
    %s133 = sphi 0, %s119
    %s139 = sphi 0, %s141
    %s142 = sphi 0, %s139
    %s143 = sphi 0, %s142
    %s159 = sphi 0, %s143
    %s165 = sphi 0, %s167
    %s168 = sphi 0, %s165
    %s169 = sphi 0, %s168
    %s185 = sphi 0, %s169
    %s191 = sphi 0, %s193
    %s194 = sphi 0, %s191
    %s195 = sphi 0, %s194
    %s211 = sphi 0, %s195
  $region4: #{dense_block_forward.6} parent=0 // loop_header_branch
    %17 = sbr.rel (%p15) target = $region8
  $region5: #{dense_block_forward.6} parent=0 // loop_body
    %s19 = ssub.s32 %s14, 1
    %s20 = ssub.s32 %s14, 2
    %s21 = sadd.s32 %s14, 1
    %s22 = ssub.s32 %s14, %s21
    %p23 = scmp.eq.s32.totalorder %s22, 0
    %s25 = sadd.s32 %s24, 1
    %s26 = scalar_select %p23, %s24, %s25
    %p29 = pneg %p23
    %p30 = scmp.eq.s32.totalorder %s14, 1
    %p31 = por %p29, %p30
    %p32 = scmp.ne.s32.totalorder %s24, %s27
    %p33 = scmp.eq.s32.totalorder %s14, 0
    %p34 = por %p32, %p33
    %p35 = scmp.ne.s32.totalorder %s24, %s27
    %p36 = scmp.eq.s32.totalorder %s19, 1
    %p37 = por %p35, %p36
    %p38 = scmp.ne.s32.totalorder %s27, %s28
    %p39 = scmp.eq.s32.totalorder %s19, 0
    %p40 = por %p38, %p39
    %p41 = scmp.ne.s32.totalorder %s27, %s28
    %p42 = scmp.eq.s32.totalorder %s20, 1
    %p43 = por %p41, %p42
    %p45 = scmp.ne.s32.totalorder %s28, %s44
    %p46 = scmp.eq.s32.totalorder %s20, 0
    %p47 = por %p45, %p46
    %s48 = ssub.s32 %s14, %s21
    %p49 = scmp.eq.s32.totalorder %s48, 0
    %s51 = sadd.s32 %s50, 1
    %s52 = scalar_select %p49, %s50, %s51
    %p55 = pneg %p49
    %p56 = scmp.eq.s32.totalorder %s14, 1
    %p57 = por %p55, %p56
    %p58 = scmp.ne.s32.totalorder %s50, %s53
    %p59 = scmp.eq.s32.totalorder %s14, 0
    %p60 = por %p58, %p59
    %p61 = scmp.ne.s32.totalorder %s50, %s53
    %p62 = scmp.eq.s32.totalorder %s19, 1
    %p63 = por %p61, %p62
    %p64 = scmp.ne.s32.totalorder %s53, %s54
    %p65 = scmp.eq.s32.totalorder %s19, 0
    %p66 = por %p64, %p65
    %p67 = scmp.ne.s32.totalorder %s53, %s54
    %p68 = scmp.eq.s32.totalorder %s20, 1
    %p69 = por %p67, %p68
    %p71 = scmp.ne.s32.totalorder %s54, %s70
    %p72 = scmp.eq.s32.totalorder %s20, 0
    %p73 = por %p71, %p72
    %s75 = sadd.s32 %s74, 1
    %p78 = scmp.eq.s32.totalorder %s14, 1
    %p79 = scmp.ne.s32.totalorder %s74, %s76
    %p80 = scmp.eq.s32.totalorder %s14, 0
    %p81 = por %p79, %p80
    %p82 = scmp.ne.s32.totalorder %s74, %s76
    %p83 = scmp.eq.s32.totalorder %s19, 1
    %p84 = por %p82, %p83
    %p85 = scmp.ne.s32.totalorder %s76, %s77
    %p86 = scmp.eq.s32.totalorder %s19, 0
    %p87 = por %p85, %p86
    %p88 = scmp.ne.s32.totalorder %s76, %s77
    %p89 = scmp.eq.s32.totalorder %s20, 1
    %p90 = por %p88, %p89
    %p92 = scmp.ne.s32.totalorder %s77, %s91
    %p93 = scmp.eq.s32.totalorder %s20, 0
    %p94 = por %p92, %p93
    %s96 = sadd.s32 %s95, 1
    %p99 = scmp.eq.s32.totalorder %s14, 1
    %p100 = scmp.ne.s32.totalorder %s95, %s97
    %p101 = scmp.eq.s32.totalorder %s14, 0
    %p102 = por %p100, %p101
    %p103 = scmp.ne.s32.totalorder %s95, %s97
    %p104 = scmp.eq.s32.totalorder %s19, 1
    %p105 = por %p103, %p104
    %p106 = scmp.ne.s32.totalorder %s97, %s98
    %p107 = scmp.eq.s32.totalorder %s19, 0
    %p108 = por %p106, %p107
    %p109 = scmp.ne.s32.totalorder %s97, %s98
    %p110 = scmp.eq.s32.totalorder %s20, 1
    %p111 = por %p109, %p110
    %p113 = scmp.ne.s32.totalorder %s98, %s112
    %p114 = scmp.eq.s32.totalorder %s20, 0
    %p115 = por %p113, %p114
    %s117 = sadd.s32 %s116, 1
    %p120 = scmp.eq.s32.totalorder %s14, 1
    %p121 = scmp.ne.s32.totalorder %s116, %s118
    %p122 = scmp.eq.s32.totalorder %s14, 0
    %p123 = por %p121, %p122
    %p124 = scmp.ne.s32.totalorder %s116, %s118
    %p125 = scmp.eq.s32.totalorder %s19, 1
    %p126 = por %p124, %p125
    %p127 = scmp.ne.s32.totalorder %s118, %s119
    %p128 = scmp.eq.s32.totalorder %s19, 0
    %p129 = por %p127, %p128
    %p130 = scmp.ne.s32.totalorder %s118, %s119
    %p131 = scmp.eq.s32.totalorder %s20, 1
    %p132 = por %p130, %p131
    %p134 = scmp.ne.s32.totalorder %s119, %s133
    %p135 = scmp.eq.s32.totalorder %s20, 0
    %p136 = por %p134, %p135
    %s137 = ssub.s32 %s14, %s21
    %p138 = scmp.eq.s32.totalorder %s137, 0
    %s140 = sadd.s32 %s139, 1
    %s141 = scalar_select %p138, %s139, %s140
    %p144 = pneg %p138
    %p145 = scmp.eq.s32.totalorder %s14, 1
    %p146 = por %p144, %p145
    %p147 = scmp.ne.s32.totalorder %s139, %s142
    %p148 = scmp.eq.s32.totalorder %s14, 0
    %p149 = por %p147, %p148
    %p150 = scmp.ne.s32.totalorder %s139, %s142
    %p151 = scmp.eq.s32.totalorder %s19, 1
    %p152 = por %p150, %p151
    %p153 = scmp.ne.s32.totalorder %s142, %s143
    %p154 = scmp.eq.s32.totalorder %s19, 0
    %p155 = por %p153, %p154
    %p156 = scmp.ne.s32.totalorder %s142, %s143
    %p157 = scmp.eq.s32.totalorder %s20, 1
    %p158 = por %p156, %p157
    %p160 = scmp.ne.s32.totalorder %s143, %s159
    %p161 = scmp.eq.s32.totalorder %s20, 0
    %p162 = por %p160, %p161
    %s163 = ssub.s32 %s14, %s21
    %p164 = scmp.eq.s32.totalorder %s163, 0
    %s166 = sadd.s32 %s165, 1
    %s167 = scalar_select %p164, %s165, %s166
    %p170 = pneg %p164
    %p171 = scmp.eq.s32.totalorder %s14, 1
    %p172 = por %p170, %p171
    %p173 = scmp.ne.s32.totalorder %s165, %s168
    %p174 = scmp.eq.s32.totalorder %s14, 0
    %p175 = por %p173, %p174
    %p176 = scmp.ne.s32.totalorder %s165, %s168
    %p177 = scmp.eq.s32.totalorder %s19, 1
    %p178 = por %p176, %p177
    %p179 = scmp.ne.s32.totalorder %s168, %s169
    %p180 = scmp.eq.s32.totalorder %s19, 0
    %p181 = por %p179, %p180
    %p182 = scmp.ne.s32.totalorder %s168, %s169
    %p183 = scmp.eq.s32.totalorder %s20, 1
    %p184 = por %p182, %p183
    %p186 = scmp.ne.s32.totalorder %s169, %s185
    %p187 = scmp.eq.s32.totalorder %s20, 0
    %p188 = por %p186, %p187
    %s189 = ssub.s32 %s14, %s21
    %p190 = scmp.eq.s32.totalorder %s189, 0
    %s192 = sadd.s32 %s191, 1
    %s193 = scalar_select %p190, %s191, %s192
    %p196 = pneg %p190
    %p197 = scmp.eq.s32.totalorder %s14, 1
    %p198 = por %p196, %p197
    %p199 = scmp.ne.s32.totalorder %s191, %s194
    %p200 = scmp.eq.s32.totalorder %s14, 0
    %p201 = por %p199, %p200
    %p202 = scmp.ne.s32.totalorder %s191, %s194
    %p203 = scmp.eq.s32.totalorder %s19, 1
    %p204 = por %p202, %p203
    %p205 = scmp.ne.s32.totalorder %s194, %s195
    %p206 = scmp.eq.s32.totalorder %s19, 0
    %p207 = por %p205, %p206
    %p208 = scmp.ne.s32.totalorder %s194, %s195
    %p209 = scmp.eq.s32.totalorder %s20, 1
    %p210 = por %p208, %p209
    %p212 = scmp.ne.s32.totalorder %s195, %s211
    %p213 = scmp.eq.s32.totalorder %s20, 0
    %p214 = por %p212, %p213
    %p215 = scmp.le.s32.totalorder 1, %s14
    %p216 = scmp.lt.s32.totalorder %s14, 3
    %p217 = pnand %p215, %p216
    %p218 = pneg %p217
    // Predicated region
    $region9: #{dense_block_forward.6} parent=5 // pred_check
      _
    $region10: #{dense_block_forward.6} parent=5 // pred_check_branch
      %220 = sbr.rel (%p217) target = $region12
    $region11: #{dense_block_forward.6} parent=5 // pred_region
      %s221 = ssub.s32 %s14, 1
      // Predicated region
      $region13: #{dense_block_forward.6} parent=11 // pred_check
        %p222 = pneg %p87
      $region14: #{dense_block_forward.6} parent=11 // pred_check_branch
        %224 = sbr.rel (%p222) target = $region16
      $region15: #{dense_block_forward.6} parent=11 // pred_region
        _
      $region16: #{dense_block_forward.6} parent=11 // pred_fallthru
        _
      // Predicated region
      $region17: #{dense_block_forward.6} parent=11 // pred_check
        %p225 = pneg %p108
      $region18: #{dense_block_forward.6} parent=11 // pred_check_branch
        %227 = sbr.rel (%p225) target = $region20
      $region19: #{dense_block_forward.6} parent=11 // pred_region
        _
      $region20: #{dense_block_forward.6} parent=11 // pred_fallthru
        _
      // Predicated region
      $region21: #{dense_block_forward.6} parent=11 // pred_check
        %p228 = pneg %p129
      $region22: #{dense_block_forward.6} parent=11 // pred_check_branch
        %230 = sbr.rel (%p228) target = $region24
      $region23: #{dense_block_forward.6} parent=11 // pred_region
        _
      $region24: #{dense_block_forward.6} parent=11 // pred_fallthru
        _
    $region12: #{dense_block_forward.6} parent=5 // pred_fallthru
      _
    %p231 = scmp.lt.s32.totalorder %s14, 2
    // Predicated region
    $region25: #{dense_block_forward.6} parent=5 // pred_check
      %p232 = pneg %p231
    $region26: #{dense_block_forward.6} parent=5 // pred_check_branch
      %234 = sbr.rel (%p232) target = $region28
    $region27: #{dense_block_forward.6} parent=5 // pred_region
      // Predicated region
      $region29: #{dense_block_forward.6} parent=27 // pred_check
        %p235 = pneg %p34
      $region30: #{dense_block_forward.6} parent=27 // pred_check_branch
        %237 = sbr.rel (%p235) target = $region32
      $region31: #{dense_block_forward.6} parent=27 // pred_region
        %s238 = smul.u32 32, %s14
        %p239 = scmp.lt.s32.totalorder %s238, 63
        %s240 = scalar_select %p239, %s238, 63
        %s241 = smul.addr %s240, 4
        %s242 = scalar_lea.vmem %s0, %s241
        %s243 = smul.u32 32, %s14
      $region32: #{dense_block_forward.6} parent=27 // pred_fallthru
        _
      // Predicated region
      $region33: #{dense_block_forward.6} parent=27 // pred_check
        %p244 = pneg %p60
      $region34: #{dense_block_forward.6} parent=27 // pred_check_branch
        %246 = sbr.rel (%p244) target = $region36
      $region35: #{dense_block_forward.6} parent=27 // pred_region
        %s247 = smul.u32 32, %s14
        %p248 = scmp.lt.s32.totalorder %s247, 63
        %s249 = scalar_select %p248, %s247, 63
        %s250 = smul.addr %s249, 2
        %s251 = smul.addr %s250, 4
        %s252 = scalar_lea.vmem %s1, %s251
        %s253 = smul.u32 32, %s14
      $region36: #{dense_block_forward.6} parent=27 // pred_fallthru
        _
    $region28: #{dense_block_forward.6} parent=5 // pred_fallthru
      _
    %p254 = scmp.le.s32.totalorder 1, %s14
    %p255 = scmp.lt.s32.totalorder %s14, 3
    %p256 = pnand %p254, %p255
    %p257 = pneg %p256
    // Predicated region
    $region37: #{dense_block_forward.6} parent=5 // pred_check
      _
    $region38: #{dense_block_forward.6} parent=5 // pred_check_branch
      %259 = sbr.rel (%p256) target = $region40
    $region39: #{dense_block_forward.6} parent=5 // pred_region
      %s260 = ssub.s32 %s14, 1
      %s261 = smul.u32 32, %s19
      %p262 = scmp.lt.s32.totalorder %s261, 63
      %s263 = scalar_select %p262, %s261, 63
      %s264 = smul.addr %s263, 4
      %s265 = scalar_lea.vmem %s0, %s264
      %p266 = pneg %p40
      %p267 = pneg %p37
      %s268 = smul.u32 32, %s19
      %p269 = scmp.lt.s32.totalorder %s268, 63
      %s270 = scalar_select %p269, %s268, 63
      %s271 = smul.addr %s270, 2
      %s272 = smul.addr %s271, 4
      %s273 = scalar_lea.vmem %s1, %s272
      %p274 = pneg %p66
      %p275 = pneg %p63
      %p276 = pneg %p87
      %p277 = pneg %p84
      %p278 = pneg %p108
      %p279 = pneg %p105
      %p280 = pneg %p129
      %p281 = pneg %p126
      %p282 = pneg %p155
      %p283 = pneg %p152
      %s284 = smul.u32 32, %s19
      %p285 = scmp.lt.s32.totalorder %s284, 63
      %s286 = scalar_select %p285, %s284, 63
      %s287 = smul.addr %s286, 8
      %s288 = scalar_lea.vmem %s5, %s287
      %p289 = pneg %p181
      %p290 = pneg %p178
      %p291 = scmp.lt.s32.totalorder %s19, 1
      %s292 = scalar_select %p291, %s19, 1
      %s293 = scalar_lea.vmem %s6, %s292
      %p294 = pneg %p207
      %p295 = pneg %p204
      %p296 = scmp.lt.s32.totalorder %s19, 1
      %s297 = scalar_select %p296, %s19, 1
      %s298 = scalar_lea.vmem %s7, %s297
      %s299 = smul.u32 32, %s19
      %p300 = scmp.lt.s32.totalorder %s299, 63
      %s301 = scalar_select %p300, %s299, 63
      %s302 = smul.addr %s301, 4
      %s303 = scalar_lea.vmem %s0, %s302
      %s304 = smul.u32 32, %s19
      %s305 = smul.u32 32, %s19
      %p306 = scmp.lt.s32.totalorder %s305, 63
      %s307 = scalar_select %p306, %s305, 63
      %s308 = smul.addr %s307, 2
      %s309 = smul.addr %s308, 4
      %s310 = scalar_lea.vmem %s1, %s309
      %s311 = smul.u32 32, %s19
      %s312 = smul.u32 32, %s19
      %p313 = scmp.lt.s32.totalorder %s312, 63
      %s314 = scalar_select %p313, %s312, 63
      %s315 = smul.addr %s314, 8
      %s316 = scalar_lea.vmem %s5, %s315
      %s317 = smul.u32 32, %s19
      %p318 = scmp.lt.s32.totalorder %s19, 1
      %s319 = scalar_select %p318, %s19, 1
      %s320 = scalar_lea.vmem %s6, %s319
      %p321 = scmp.lt.s32.totalorder %s19, 1
      %s322 = scalar_select %p321, %s19, 1
      %s323 = scalar_lea.vmem %s7, %s322
      %v325 = vld [vmem:[%s303] sm:$0xf]
      %v326 = vld [vmem:[%s303 + $0x4] sm:$0xf]
      %v327 = vld [vmem:[%s303 + $0x8] sm:$0xf]
      %v328 = vld [vmem:[%s303 + $0xc] sm:$0xf]
      %v329 = vld [vmem:[%s303 + $0x10] sm:$0xf]
      %v330 = vld [vmem:[%s303 + $0x14] sm:$0xf]
      %v331 = vld [vmem:[%s303 + $0x18] sm:$0xf]
      %v332 = vld [vmem:[%s303 + $0x1c] sm:$0xf]
      %v333 = vld [vmem:[%s303 + $0x20] sm:$0xf]
      %v334 = vld [vmem:[%s303 + $0x24] sm:$0xf]
      %v335 = vld [vmem:[%s303 + $0x28] sm:$0xf]
      %v336 = vld [vmem:[%s303 + $0x2c] sm:$0xf]
      %v337 = vld [vmem:[%s303 + $0x30] sm:$0xf]
      %v338 = vld [vmem:[%s303 + $0x34] sm:$0xf]
      %v339 = vld [vmem:[%s303 + $0x38] sm:$0xf]
      %v340 = vld [vmem:[%s303 + $0x3c] sm:$0xf]
      %v341 = vld [vmem:[%s303 + $0x40] sm:$0xf]
      %v342 = vld [vmem:[%s303 + $0x44] sm:$0xf]
      %v343 = vld [vmem:[%s303 + $0x48] sm:$0xf]
      %v344 = vld [vmem:[%s303 + $0x4c] sm:$0xf]
      %v345 = vld [vmem:[%s303 + $0x50] sm:$0xf]
      %v346 = vld [vmem:[%s303 + $0x54] sm:$0xf]
      %v347 = vld [vmem:[%s303 + $0x58] sm:$0xf]
      %v348 = vld [vmem:[%s303 + $0x5c] sm:$0xf]
      %v349 = vld [vmem:[%s303 + $0x60] sm:$0xf]
      %v350 = vld [vmem:[%s303 + $0x64] sm:$0xf]
      %v351 = vld [vmem:[%s303 + $0x68] sm:$0xf]
      %v352 = vld [vmem:[%s303 + $0x6c] sm:$0xf]
      %v353 = vld [vmem:[%s303 + $0x70] sm:$0xf]
      %v354 = vld [vmem:[%s303 + $0x74] sm:$0xf]
      %v355 = vld [vmem:[%s303 + $0x78] sm:$0xf]
      %v356 = vld [vmem:[%s303 + $0x7c] sm:$0xf]
      %v357 = vld [vmem:[%s2] sm:$0xf]
      %v358 = vld [vmem:[%s2 + $0x4] sm:$0xf]
      %v359 = vld [vmem:[%s2 + $0x8] sm:$0xf]
      %v360 = vld [vmem:[%s2 + $0xc] sm:$0xf]
      %v361 = vld [vmem:[%s2 + $0x10] sm:$0xf]
      %v362 = vld [vmem:[%s2 + $0x14] sm:$0xf]
      %v363 = vld [vmem:[%s2 + $0x18] sm:$0xf]
      %v364 = vld [vmem:[%s2 + $0x1c] sm:$0xf]
      %v365 = vld [vmem:[%s2 + $0x20] sm:$0xf]
      %v366 = vld [vmem:[%s2 + $0x24] sm:$0xf]
      %v367 = vld [vmem:[%s2 + $0x28] sm:$0xf]
      %v368 = vld [vmem:[%s2 + $0x2c] sm:$0xf]
      %v369 = vld [vmem:[%s2 + $0x30] sm:$0x3]
      %v370 = vld [vmem:[%s310] sm:$0xff]
      %v371 = vld [vmem:[%s310 + $0x8] sm:$0xff]
      %v372 = vld [vmem:[%s310 + $0x10] sm:$0xff]
      %v373 = vld [vmem:[%s310 + $0x18] sm:$0xff]
      %v374 = vld [vmem:[%s310 + $0x20] sm:$0xff]
      %v375 = vld [vmem:[%s310 + $0x28] sm:$0xff]
      %v376 = vld [vmem:[%s310 + $0x30] sm:$0xff]
      %v377 = vld [vmem:[%s310 + $0x38] sm:$0xff]
      %v378 = vld [vmem:[%s310 + $0x40] sm:$0xff]
      %v379 = vld [vmem:[%s310 + $0x48] sm:$0xff]
      %v380 = vld [vmem:[%s310 + $0x50] sm:$0xff]
      %v381 = vld [vmem:[%s310 + $0x58] sm:$0xff]
      %v382 = vld [vmem:[%s310 + $0x60] sm:$0xff]
      %v383 = vld [vmem:[%s310 + $0x68] sm:$0xff]
      %v384 = vld [vmem:[%s310 + $0x70] sm:$0xff]
      %v385 = vld [vmem:[%s310 + $0x78] sm:$0xff]
      %v386 = vld [vmem:[%s310 + $0x80] sm:$0xff]
      %v387 = vld [vmem:[%s310 + $0x88] sm:$0xff]
      %v388 = vld [vmem:[%s310 + $0x90] sm:$0xff]
      %v389 = vld [vmem:[%s310 + $0x98] sm:$0xff]
      %v390 = vld [vmem:[%s310 + $0xa0] sm:$0xff]
      %v391 = vld [vmem:[%s310 + $0xa8] sm:$0xff]
      %v392 = vld [vmem:[%s310 + $0xb0] sm:$0xff]
      %v393 = vld [vmem:[%s310 + $0xb8] sm:$0xff]
      %v394 = vld [vmem:[%s310 + $0xc0] sm:$0xff]
      %v395 = vld [vmem:[%s310 + $0xc8] sm:$0xff]
      %v396 = vld [vmem:[%s310 + $0xd0] sm:$0xff]
      %v397 = vld [vmem:[%s310 + $0xd8] sm:$0xff]
      %v398 = vld [vmem:[%s310 + $0xe0] sm:$0xff]
      %v399 = vld [vmem:[%s310 + $0xe8] sm:$0xff]
      %v400 = vld [vmem:[%s310 + $0xf0] sm:$0xff]
      %v401 = vld [vmem:[%s310 + $0xf8] sm:$0xff]
      %v402 = vld [vmem:[%s3] sm:$0xf]
      %v403 = vld [vmem:[%s3 + $0x4] sm:$0xf]
      %v404 = vld [vmem:[%s3 + $0x8] sm:$0xf]
      %v405 = vld [vmem:[%s3 + $0xc] sm:$0xf]
      %v406 = vld [vmem:[%s3 + $0x10] sm:$0xf]
      %v407 = vld [vmem:[%s3 + $0x14] sm:$0xf]
      %v408 = vld [vmem:[%s3 + $0x18] sm:$0xf]
      %v409 = vld [vmem:[%s3 + $0x1c] sm:$0xf]
      %v410 = vld [vmem:[%s3 + $0x20] sm:$0xf]
      %v411 = vld [vmem:[%s3 + $0x24] sm:$0xf]
      %v412 = vld [vmem:[%s3 + $0x28] sm:$0xf]
      %v413 = vld [vmem:[%s3 + $0x2c] sm:$0xf]
      %v414 = vld [vmem:[%s3 + $0x30] sm:$0xf]
      %v415 = vld [vmem:[%s3 + $0x34] sm:$0xf]
      %v416 = vld [vmem:[%s3 + $0x38] sm:$0xf]
      %v417 = vld [vmem:[%s3 + $0x3c] sm:$0xf]
      %v418 = vld [vmem:[%s3 + $0x40] sm:$0xf]
      %v419 = vld [vmem:[%s3 + $0x44] sm:$0xf]
      %v420 = vld [vmem:[%s3 + $0x48] sm:$0xf]
      %v421 = vld [vmem:[%s3 + $0x4c] sm:$0xf]
      %v422 = vld [vmem:[%s3 + $0x50] sm:$0xf]
      %v423 = vld [vmem:[%s3 + $0x54] sm:$0xf]
      %v424 = vld [vmem:[%s3 + $0x58] sm:$0xf]
      %v425 = vld [vmem:[%s3 + $0x5c] sm:$0xf]
      %v426 = vld [vmem:[%s3 + $0x60] sm:$0xf]
      %v459 = vunpack.c.l.b16 %v370
      %v460 = vunpack.c.h.b16 %v370
      %v461 = vunpack.c.l.b16 %v371
      %v462 = vunpack.c.h.b16 %v371
      %v463 = vunpack.c.l.b16 %v372
      %v464 = vunpack.c.h.b16 %v372
      %v465 = vunpack.c.l.b16 %v373
      %v466 = vunpack.c.h.b16 %v373
      %v467 = vunpack.c.l.b16 %v374
      %v468 = vunpack.c.h.b16 %v374
      %v469 = vunpack.c.l.b16 %v375
      %v470 = vunpack.c.h.b16 %v375
      %v471 = vunpack.c.l.b16 %v376
      %v472 = vunpack.c.h.b16 %v376
      %v473 = vunpack.c.l.b16 %v377
      %v474 = vunpack.c.h.b16 %v377
      %v475 = vunpack.c.l.b16 %v378
      %v476 = vunpack.c.h.b16 %v378
      %v477 = vunpack.c.l.b16 %v379
      %v478 = vunpack.c.h.b16 %v379
      %v479 = vunpack.c.l.b16 %v380
      %v480 = vunpack.c.h.b16 %v380
      %v481 = vunpack.c.l.b16 %v381
      %v482 = vunpack.c.h.b16 %v381
      %v483 = vunpack.c.l.b16 %v382
      %v484 = vunpack.c.h.b16 %v382
      %v485 = vunpack.c.l.b16 %v383
      %v486 = vunpack.c.h.b16 %v383
      %v487 = vunpack.c.l.b16 %v384
      %v488 = vunpack.c.h.b16 %v384
      %v489 = vunpack.c.l.b16 %v385
      %v490 = vunpack.c.h.b16 %v385
      %v491 = vunpack.c.l.b16 %v386
      %v492 = vunpack.c.h.b16 %v386
      %v493 = vunpack.c.l.b16 %v387
      %v494 = vunpack.c.h.b16 %v387
      %v495 = vunpack.c.l.b16 %v388
      %v496 = vunpack.c.h.b16 %v388
      %v497 = vunpack.c.l.b16 %v389
      %v498 = vunpack.c.h.b16 %v389
      %v499 = vunpack.c.l.b16 %v390
      %v500 = vunpack.c.h.b16 %v390
      %v501 = vunpack.c.l.b16 %v391
      %v502 = vunpack.c.h.b16 %v391
      %v503 = vunpack.c.l.b16 %v392
      %v504 = vunpack.c.h.b16 %v392
      %v505 = vunpack.c.l.b16 %v393
      %v506 = vunpack.c.h.b16 %v393
      %v507 = vunpack.c.l.b16 %v394
      %v508 = vunpack.c.h.b16 %v394
      %v509 = vunpack.c.l.b16 %v395
      %v510 = vunpack.c.h.b16 %v395
      %v511 = vunpack.c.l.b16 %v396
      %v512 = vunpack.c.h.b16 %v396
      %v513 = vunpack.c.l.b16 %v397
      %v514 = vunpack.c.h.b16 %v397
      %v515 = vunpack.c.l.b16 %v398
      %v516 = vunpack.c.h.b16 %v398
      %v517 = vunpack.c.l.b16 %v399
      %v518 = vunpack.c.h.b16 %v399
      %v519 = vunpack.c.l.b16 %v400
      %v520 = vunpack.c.h.b16 %v400
      %v521 = vunpack.c.l.b16 %v401
      %v522 = vunpack.c.h.b16 %v401
      %v523 = vpack.c.b16 %v461, %v459
      %v524 = vpack.c.b16 %v462, %v460
      %v525 = vpack.c.b16 %v465, %v463
      %v526 = vpack.c.b16 %v466, %v464
      %v527 = vpack.c.b16 %v469, %v467
      %v528 = vpack.c.b16 %v470, %v468
      %v529 = vpack.c.b16 %v473, %v471
      %v530 = vpack.c.b16 %v474, %v472
      %v531 = vpack.c.b16 %v477, %v475
      %v532 = vpack.c.b16 %v478, %v476
      %v533 = vpack.c.b16 %v481, %v479
      %v534 = vpack.c.b16 %v482, %v480
      %v535 = vpack.c.b16 %v485, %v483
      %v536 = vpack.c.b16 %v486, %v484
      %v537 = vpack.c.b16 %v489, %v487
      %v538 = vpack.c.b16 %v490, %v488
      %v539 = vpack.c.b16 %v493, %v491
      %v540 = vpack.c.b16 %v494, %v492
      %v541 = vpack.c.b16 %v497, %v495
      %v542 = vpack.c.b16 %v498, %v496
      %v543 = vpack.c.b16 %v501, %v499
      %v544 = vpack.c.b16 %v502, %v500
      %v545 = vpack.c.b16 %v505, %v503
      %v546 = vpack.c.b16 %v506, %v504
      %v547 = vpack.c.b16 %v509, %v507
      %v548 = vpack.c.b16 %v510, %v508
      %v549 = vpack.c.b16 %v513, %v511
      %v550 = vpack.c.b16 %v514, %v512
      %v551 = vpack.c.b16 %v517, %v515
      %v552 = vpack.c.b16 %v518, %v516
      %v553 = vpack.c.b16 %v521, %v519
      %v554 = vpack.c.b16 %v522, %v520
      %v596 = vunpack.c.l.b16 %v402
      %v597 = vunpack.c.l.b16 %v403
      %v598 = vunpack.c.l.b16 %v404
      %v599 = vunpack.c.l.b16 %v405
      %v600 = vunpack.c.l.b16 %v406
      %v601 = vunpack.c.l.b16 %v407
      %v602 = vunpack.c.l.b16 %v408
      %v603 = vunpack.c.l.b16 %v409
      %v604 = vunpack.c.l.b16 %v410
      %v605 = vunpack.c.l.b16 %v411
      %v606 = vunpack.c.l.b16 %v412
      %v607 = vunpack.c.l.b16 %v413
      %v608 = vunpack.c.l.b16 %v414
      %v609 = vunpack.c.l.b16 %v415
      %v610 = vunpack.c.l.b16 %v416
      %v611 = vunpack.c.l.b16 %v417
      %v612 = vunpack.c.l.b16 %v418
      %v613 = vunpack.c.l.b16 %v419
      %v614 = vunpack.c.l.b16 %v420
      %v615 = vunpack.c.l.b16 %v421
      %v616 = vunpack.c.l.b16 %v422
      %v617 = vunpack.c.l.b16 %v423
      %v618 = vunpack.c.l.b16 %v424
      %v619 = vunpack.c.l.b16 %v425
      %v620 = vunpack.c.l.b16 %v426
      %v621 = vpack.c.b16 %v597, %v596
      %v622 = vpack.c.b16 %v599, %v598
      %v623 = vpack.c.b16 %v601, %v600
      %v624 = vpack.c.b16 %v603, %v602
      %v625 = vpack.c.b16 %v605, %v604
      %v626 = vpack.c.b16 %v607, %v606
      %v627 = vpack.c.b16 %v609, %v608
      %v628 = vpack.c.b16 %v611, %v610
      %v629 = vpack.c.b16 %v613, %v612
      %v630 = vpack.c.b16 %v615, %v614
      %v631 = vpack.c.b16 %v617, %v616
      %v632 = vpack.c.b16 %v619, %v618
      %v633 = vpack.c.b16 %v620, %v620
      %vm646 = vcmask 588800
      %v648 = vsel %vm646, %v524, 0
      %v651 = vsel %vm646, %v526, 0
      %v654 = vsel %vm646, %v528, 0
      %v657 = vsel %vm646, %v530, 0
      %v660 = vsel %vm646, %v532, 0
      %v663 = vsel %vm646, %v534, 0
      %v666 = vsel %vm646, %v536, 0
      %v669 = vsel %vm646, %v538, 0
      %v672 = vsel %vm646, %v540, 0
      %v675 = vsel %vm646, %v542, 0
      %v678 = vsel %vm646, %v544, 0
      %v681 = vsel %vm646, %v546, 0
      %v684 = vsel %vm646, %v548, 0
      %v687 = vsel %vm646, %v550, 0
      %v690 = vsel %vm646, %v552, 0
      %v693 = vsel %vm646, %v554, 0
      %vm695 = vcmask 1043456
      %v697 = vsel %vm695, %v633, 0
      %699 = vmatprep.subr.bf16.mxu0 0
      %700 = vmatpush1.bf16.msra.mxu0 %v621
      %701 = vmatprep.subr.bf16.mxu0 0
      %702 = vmatpush1.bf16.msra.mxu0 %v622
      %703 = vmatprep.subr.bf16.mxu0 0
      %704 = vmatpush1.bf16.msra.mxu0 %v623
      %705 = vmatprep.subr.bf16.mxu0 0
      %706 = vmatpush1.bf16.msra.mxu0 %v624
      %707 = vmatprep.subr.bf16.mxu0 0
      %708 = vmatpush1.bf16.msra.mxu0 %v625
      %709 = vmatprep.subr.bf16.mxu0 0
      %710 = vmatpush1.bf16.msra.mxu0 %v626
      %711 = vmatprep.subr.bf16.mxu0 0
      %712 = vmatpush1.bf16.msra.mxu0 %v627
      %713 = vmatprep.subr.bf16.mxu0 0
      %714 = vmatpush1.bf16.msra.mxu0 %v628
      %715 = vmatprep.subr.bf16.mxu0 0
      %716 = vmatpush1.bf16.msra.mxu0 %v629
      %717 = vmatprep.subr.bf16.mxu0 0
      %718 = vmatpush1.bf16.msra.mxu0 %v630
      %719 = vmatprep.subr.bf16.mxu0 0
      %720 = vmatpush1.bf16.msra.mxu0 %v631
      %721 = vmatprep.subr.bf16.mxu0 0
      %722 = vmatpush1.bf16.msra.mxu0 %v632
      %723 = vmatprep.subr.bf16.mxu0 0
      %724 = vmatpush1.bf16.msra.mxu0 %v697
      %725 = vmatprep.subr.bf16.mxu0 0
      %726 = vmatpush1.bf16.msra.mxu0 0
      %727 = vmatprep.subr.bf16.mxu0 0
      %728 = vmatpush1.bf16.msra.mxu0 0
      %729 = vmatprep.subr.bf16.mxu0 0
      %730 = vmatpush1.bf16.msra.mxu0 0
      %731 = vmatprep.mubr.bf16.mxu0 %v648
      %732 = vmatmul.mubr.bf16.gmra.mrb[0].mxu0 %v523
      %v733 = vpop.f32.mrb[0].mxu0
      %v734 = vadd.f32 0.0, %v733
      %v735 = vpop.f32.mrb[0].mxu0
      %v736 = vpop.f32.mrb[0].mxu0
      %v737 = vadd.f32 0.0, %v736
      %v738 = vpop.f32.mrb[0].mxu0
      %739 = vmatprep.mubr.bf16.mxu0 %v651
      %740 = vmatmul.mubr.bf16.gmra.mrb[0].mxu0 %v525
      %v741 = vpop.f32.mrb[0].mxu0
      %v742 = vadd.f32 0.0, %v741
      %v743 = vpop.f32.mrb[0].mxu0
      %v744 = vpop.f32.mrb[0].mxu0
      %v745 = vadd.f32 0.0, %v744
      %v746 = vpop.f32.mrb[0].mxu0
      %747 = vmatprep.mubr.bf16.mxu0 %v654
      %748 = vmatmul.mubr.bf16.gmra.mrb[0].mxu0 %v527
      %v749 = vpop.f32.mrb[0].mxu0
      %v750 = vadd.f32 0.0, %v749
      %v751 = vpop.f32.mrb[0].mxu0
      %v752 = vpop.f32.mrb[0].mxu0
      %v753 = vadd.f32 0.0, %v752
      %v754 = vpop.f32.mrb[0].mxu0
      %755 = vmatprep.mubr.bf16.mxu0 %v657
      %756 = vmatmul.mubr.bf16.gmra.mrb[0].mxu0 %v529
      %v757 = vpop.f32.mrb[0].mxu0
      %v758 = vadd.f32 0.0, %v757
      %v759 = vpop.f32.mrb[0].mxu0
      %v760 = vpop.f32.mrb[0].mxu0
      %v761 = vadd.f32 0.0, %v760
      %v762 = vpop.f32.mrb[0].mxu0
      %763 = vmatprep.mubr.bf16.mxu0 %v660
      %764 = vmatmul.mubr.bf16.gmra.mrb[0].mxu0 %v531
      %v765 = vpop.f32.mrb[0].mxu0
      %v766 = vadd.f32 0.0, %v765
      %v767 = vpop.f32.mrb[0].mxu0
      %v768 = vpop.f32.mrb[0].mxu0
      %v769 = vadd.f32 0.0, %v768
      %v770 = vpop.f32.mrb[0].mxu0
      %771 = vmatprep.mubr.bf16.mxu0 %v663
      %772 = vmatmul.mubr.bf16.gmra.mrb[0].mxu0 %v533
      %v773 = vpop.f32.mrb[0].mxu0
      %v774 = vadd.f32 0.0, %v773
      %v775 = vpop.f32.mrb[0].mxu0
      %v776 = vpop.f32.mrb[0].mxu0
      %v777 = vadd.f32 0.0, %v776
      %v778 = vpop.f32.mrb[0].mxu0
      %779 = vmatprep.mubr.bf16.mxu0 %v666
      %780 = vmatmul.mubr.bf16.gmra.mrb[0].mxu0 %v535
      %v781 = vpop.f32.mrb[0].mxu0
      %v782 = vadd.f32 0.0, %v781
      %v783 = vpop.f32.mrb[0].mxu0
      %v784 = vpop.f32.mrb[0].mxu0
      %v785 = vadd.f32 0.0, %v784
      %v786 = vpop.f32.mrb[0].mxu0
      %787 = vmatprep.mubr.bf16.mxu0 %v669
      %788 = vmatmul.mubr.bf16.gmra.mrb[0].mxu0 %v537
      %v789 = vpop.f32.mrb[0].mxu0
      %v790 = vadd.f32 0.0, %v789
      %v791 = vpop.f32.mrb[0].mxu0
      %v792 = vpop.f32.mrb[0].mxu0
      %v793 = vadd.f32 0.0, %v792
      %v794 = vpop.f32.mrb[0].mxu0
      %795 = vmatprep.mubr.bf16.mxu0 %v672
      %796 = vmatmul.mubr.bf16.gmra.mrb[0].mxu0 %v539
      %v797 = vpop.f32.mrb[0].mxu0
      %v798 = vadd.f32 0.0, %v797
      %v799 = vpop.f32.mrb[0].mxu0
      %v800 = vpop.f32.mrb[0].mxu0
      %v801 = vadd.f32 0.0, %v800
      %v802 = vpop.f32.mrb[0].mxu0
      %803 = vmatprep.mubr.bf16.mxu0 %v675
      %804 = vmatmul.mubr.bf16.gmra.mrb[0].mxu0 %v541
      %v805 = vpop.f32.mrb[0].mxu0
      %v806 = vadd.f32 0.0, %v805
      %v807 = vpop.f32.mrb[0].mxu0
      %v808 = vpop.f32.mrb[0].mxu0
      %v809 = vadd.f32 0.0, %v808
      %v810 = vpop.f32.mrb[0].mxu0
      %811 = vmatprep.mubr.bf16.mxu0 %v678
      %812 = vmatmul.mubr.bf16.gmra.mrb[0].mxu0 %v543
      %v813 = vpop.f32.mrb[0].mxu0
      %v814 = vadd.f32 0.0, %v813
      %v815 = vpop.f32.mrb[0].mxu0
      %v816 = vpop.f32.mrb[0].mxu0
      %v817 = vadd.f32 0.0, %v816
      %v818 = vpop.f32.mrb[0].mxu0
      %819 = vmatprep.mubr.bf16.mxu0 %v681
      %820 = vmatmul.mubr.bf16.gmra.mrb[0].mxu0 %v545
      %v821 = vpop.f32.mrb[0].mxu0
      %v822 = vadd.f32 0.0, %v821
      %v823 = vpop.f32.mrb[0].mxu0
      %v824 = vpop.f32.mrb[0].mxu0
      %v825 = vadd.f32 0.0, %v824
      %v826 = vpop.f32.mrb[0].mxu0
      %827 = vmatprep.mubr.bf16.mxu0 %v684
      %828 = vmatmul.mubr.bf16.gmra.mrb[0].mxu0 %v547
      %v829 = vpop.f32.mrb[0].mxu0
      %v830 = vadd.f32 0.0, %v829
      %v831 = vpop.f32.mrb[0].mxu0
      %v832 = vpop.f32.mrb[0].mxu0
      %v833 = vadd.f32 0.0, %v832
      %v834 = vpop.f32.mrb[0].mxu0
      %835 = vmatprep.mubr.bf16.mxu0 %v687
      %836 = vmatmul.mubr.bf16.gmra.mrb[0].mxu0 %v549
      %v837 = vpop.f32.mrb[0].mxu0
      %v838 = vadd.f32 0.0, %v837
      %v839 = vpop.f32.mrb[0].mxu0
      %v840 = vpop.f32.mrb[0].mxu0
      %v841 = vadd.f32 0.0, %v840
      %v842 = vpop.f32.mrb[0].mxu0
      %843 = vmatprep.mubr.bf16.mxu0 %v690
      %844 = vmatmul.mubr.bf16.gmra.mrb[0].mxu0 %v551
      %v845 = vpop.f32.mrb[0].mxu0
      %v846 = vadd.f32 0.0, %v845
      %v847 = vpop.f32.mrb[0].mxu0
      %v848 = vpop.f32.mrb[0].mxu0
      %v849 = vadd.f32 0.0, %v848
      %v850 = vpop.f32.mrb[0].mxu0
      %851 = vmatprep.mubr.bf16.mxu0 %v693
      %852 = vmatmul.mubr.bf16.gmra.mrb[0].mxu0 %v553
      %v853 = vpop.f32.mrb[0].mxu0
      %v854 = vadd.f32 0.0, %v853
      %v855 = vpop.f32.mrb[0].mxu0
      %v856 = vpop.f32.mrb[0].mxu0
      %v857 = vadd.f32 0.0, %v856
      %v858 = vpop.f32.mrb[0].mxu0
      %859 = vdwg.mxu0
      %v892 = vunpack.c.l.b16 %v325
      %v893 = vunpack.c.l.b16 %v326
      %v894 = vunpack.c.l.b16 %v327
      %v895 = vunpack.c.l.b16 %v328
      %v896 = vunpack.c.l.b16 %v329
      %v897 = vunpack.c.l.b16 %v330
      %v898 = vunpack.c.l.b16 %v331
      %v899 = vunpack.c.l.b16 %v332
      %v900 = vunpack.c.l.b16 %v333
      %v901 = vunpack.c.l.b16 %v334
      %v902 = vunpack.c.l.b16 %v335
      %v903 = vunpack.c.l.b16 %v336
      %v904 = vunpack.c.l.b16 %v337
      %v905 = vunpack.c.l.b16 %v338
      %v906 = vunpack.c.l.b16 %v339
      %v907 = vunpack.c.l.b16 %v340
      %v908 = vunpack.c.l.b16 %v341
      %v909 = vunpack.c.l.b16 %v342
      %v910 = vunpack.c.l.b16 %v343
      %v911 = vunpack.c.l.b16 %v344
      %v912 = vunpack.c.l.b16 %v345
      %v913 = vunpack.c.l.b16 %v346
      %v914 = vunpack.c.l.b16 %v347
      %v915 = vunpack.c.l.b16 %v348
      %v916 = vunpack.c.l.b16 %v349
      %v917 = vunpack.c.l.b16 %v350
      %v918 = vunpack.c.l.b16 %v351
      %v919 = vunpack.c.l.b16 %v352
      %v920 = vunpack.c.l.b16 %v353
      %v921 = vunpack.c.l.b16 %v354
      %v922 = vunpack.c.l.b16 %v355
      %v923 = vunpack.c.l.b16 %v356
      %v924 = vpack.c.b16 %v893, %v892
      %v925 = vpack.c.b16 %v895, %v894
      %v926 = vpack.c.b16 %v897, %v896
      %v927 = vpack.c.b16 %v899, %v898
      %v928 = vpack.c.b16 %v901, %v900
      %v929 = vpack.c.b16 %v903, %v902
      %v930 = vpack.c.b16 %v905, %v904
      %v931 = vpack.c.b16 %v907, %v906
      %v932 = vpack.c.b16 %v909, %v908
      %v933 = vpack.c.b16 %v911, %v910
      %v934 = vpack.c.b16 %v913, %v912
      %v935 = vpack.c.b16 %v915, %v914
      %v936 = vpack.c.b16 %v917, %v916
      %v937 = vpack.c.b16 %v919, %v918
      %v938 = vpack.c.b16 %v921, %v920
      %v939 = vpack.c.b16 %v923, %v922
      %v953 = vunpack.c.l.b16 %v357
      %v954 = vunpack.c.l.b16 %v358
      %v955 = vunpack.c.l.b16 %v359
      %v956 = vunpack.c.l.b16 %v360
      %v957 = vunpack.c.l.b16 %v361
      %v958 = vunpack.c.l.b16 %v362
      %v959 = vunpack.c.l.b16 %v363
      %v960 = vunpack.c.l.b16 %v364
      %v961 = vunpack.c.l.b16 %v365
      %v962 = vunpack.c.l.b16 %v366
      %v963 = vunpack.c.l.b16 %v367
      %v964 = vunpack.c.l.b16 %v368
      %v965 = vunpack.c.l.b16 %v369
      %v966 = vpack.c.b16 %v954, %v953
      %v967 = vpack.c.b16 %v956, %v955
      %v968 = vpack.c.b16 %v958, %v957
      %v969 = vpack.c.b16 %v960, %v959
      %v970 = vpack.c.b16 %v962, %v961
      %v971 = vpack.c.b16 %v964, %v963
      %v972 = vpack.c.b16 %v965, %v965
      %vm979 = vcmask 818176
      %v981 = vsel %vm979, %v924, 0
      %v984 = vsel %vm979, %v925, 0
      %v987 = vsel %vm979, %v926, 0
      %v990 = vsel %vm979, %v927, 0
      %v993 = vsel %vm979, %v928, 0
      %v996 = vsel %vm979, %v929, 0
      %v999 = vsel %vm979, %v930, 0
      %v1002 = vsel %vm979, %v931, 0
      %v1005 = vsel %vm979, %v932, 0
      %v1008 = vsel %vm979, %v933, 0
      %v1011 = vsel %vm979, %v934, 0
      %v1014 = vsel %vm979, %v935, 0
      %v1017 = vsel %vm979, %v936, 0
      %v1020 = vsel %vm979, %v937, 0
      %v1023 = vsel %vm979, %v938, 0
      %v1026 = vsel %vm979, %v939, 0
      %vm1028 = vcmask 1041408
      %v1030 = vsel %vm1028, %v972, 0
      %1032 = vmatprep.subr.bf16.mxu0 0
      %1033 = vmatpush1.bf16.msra.mxu0 %v966
      %1034 = vmatprep.subr.bf16.mxu0 0
      %1035 = vmatpush1.bf16.msra.mxu0 %v967
      %1036 = vmatprep.subr.bf16.mxu0 0
      %1037 = vmatpush1.bf16.msra.mxu0 %v968
      %1038 = vmatprep.subr.bf16.mxu0 0
      %1039 = vmatpush1.bf16.msra.mxu0 %v969
      %1040 = vmatprep.subr.bf16.mxu0 0
      %1041 = vmatpush1.bf16.msra.mxu0 %v970
      %1042 = vmatprep.subr.bf16.mxu0 0
      %1043 = vmatpush1.bf16.msra.mxu0 %v971
      %1044 = vmatprep.subr.bf16.mxu0 0
      %1045 = vmatpush1.bf16.msra.mxu0 %v1030
      %1046 = vmatprep.subr.bf16.mxu0 0
      %1047 = vmatpush1.bf16.msra.mxu0 0
      %1048 = vmatprep.subr.bf16.mxu0 0
      %1049 = vmatpush1.bf16.msra.mxu0 0
      %1050 = vmatprep.subr.bf16.mxu0 0
      %1051 = vmatpush1.bf16.msra.mxu0 0
      %1052 = vmatprep.subr.bf16.mxu0 0
      %1053 = vmatpush1.bf16.msra.mxu0 0
      %1054 = vmatprep.subr.bf16.mxu0 0
      %1055 = vmatpush1.bf16.msra.mxu0 0
      %1056 = vmatprep.subr.bf16.mxu0 0
      %1057 = vmatpush1.bf16.msra.mxu0 0
      %1058 = vmatprep.subr.bf16.mxu0 0
      %1059 = vmatpush1.bf16.msra.mxu0 0
      %1060 = vmatprep.subr.bf16.mxu0 0
      %1061 = vmatpush1.bf16.msra.mxu0 0
      %1062 = vmatprep.subr.bf16.mxu0 0
      %1063 = vmatpush1.bf16.msra.mxu0 0
      %1064 = vmatprep.mubr.bf16.mxu0 0
      %1065 = vmatmul.mubr.bf16.gmra.mrb[0].mxu0 %v981
      %v1066 = vpop.f32.mrb[0].mxu0
      %v1067 = vadd.f32 %v734, %v1066
      %v1068 = vpop.f32.mrb[0].mxu0
      %v1069 = vpop.f32.mrb[0].mxu0
      %v1070 = vadd.f32 %v737, %v1069
      %v1071 = vpop.f32.mrb[0].mxu0
      %1072 = vmatprep.mubr.bf16.mxu0 0
      %1073 = vmatmul.mubr.bf16.gmra.mrb[0].mxu0 %v984
      %v1074 = vpop.f32.mrb[0].mxu0
      %v1075 = vadd.f32 %v742, %v1074
      %v1076 = vpop.f32.mrb[0].mxu0
      %v1077 = vpop.f32.mrb[0].mxu0
      %v1078 = vadd.f32 %v745, %v1077
      %v1079 = vpop.f32.mrb[0].mxu0
      %1080 = vmatprep.mubr.bf16.mxu0 0
      %1081 = vmatmul.mubr.bf16.gmra.mrb[0].mxu0 %v987
      %v1082 = vpop.f32.mrb[0].mxu0
      %v1083 = vadd.f32 %v750, %v1082
      %v1084 = vpop.f32.mrb[0].mxu0
      %v1085 = vpop.f32.mrb[0].mxu0
      %v1086 = vadd.f32 %v753, %v1085
      %v1087 = vpop.f32.mrb[0].mxu0
      %1088 = vmatprep.mubr.bf16.mxu0 0
      %1089 = vmatmul.mubr.bf16.gmra.mrb[0].mxu0 %v990
      %v1090 = vpop.f32.mrb[0].mxu0
      %v1091 = vadd.f32 %v758, %v1090
      %v1092 = vpop.f32.mrb[0].mxu0
      %v1093 = vpop.f32.mrb[0].mxu0
      %v1094 = vadd.f32 %v761, %v1093
      %v1095 = vpop.f32.mrb[0].mxu0
      %1096 = vmatprep.mubr.bf16.mxu0 0
      %1097 = vmatmul.mubr.bf16.gmra.mrb[0].mxu0 %v993
      %v1098 = vpop.f32.mrb[0].mxu0
      %v1099 = vadd.f32 %v766, %v1098
      %v1100 = vpop.f32.mrb[0].mxu0
      %v1101 = vpop.f32.mrb[0].mxu0
      %v1102 = vadd.f32 %v769, %v1101
      %v1103 = vpop.f32.mrb[0].mxu0
      %1104 = vmatprep.mubr.bf16.mxu0 0
      %1105 = vmatmul.mubr.bf16.gmra.mrb[0].mxu0 %v996
      %v1106 = vpop.f32.mrb[0].mxu0
      %v1107 = vadd.f32 %v774, %v1106
      %v1108 = vpop.f32.mrb[0].mxu0
      %v1109 = vpop.f32.mrb[0].mxu0
      %v1110 = vadd.f32 %v777, %v1109
      %v1111 = vpop.f32.mrb[0].mxu0
      %1112 = vmatprep.mubr.bf16.mxu0 0
      %1113 = vmatmul.mubr.bf16.gmra.mrb[0].mxu0 %v999
      %v1114 = vpop.f32.mrb[0].mxu0
      %v1115 = vadd.f32 %v782, %v1114
      %v1116 = vpop.f32.mrb[0].mxu0
      %v1117 = vpop.f32.mrb[0].mxu0
      %v1118 = vadd.f32 %v785, %v1117
      %v1119 = vpop.f32.mrb[0].mxu0
      %1120 = vmatprep.mubr.bf16.mxu0 0
      %1121 = vmatmul.mubr.bf16.gmra.mrb[0].mxu0 %v1002
      %v1122 = vpop.f32.mrb[0].mxu0
      %v1123 = vadd.f32 %v790, %v1122
      %v1124 = vpop.f32.mrb[0].mxu0
      %v1125 = vpop.f32.mrb[0].mxu0
      %v1126 = vadd.f32 %v793, %v1125
      %v1127 = vpop.f32.mrb[0].mxu0
      %1128 = vmatprep.mubr.bf16.mxu0 0
      %1129 = vmatmul.mubr.bf16.gmra.mrb[0].mxu0 %v1005
      %v1130 = vpop.f32.mrb[0].mxu0
      %v1131 = vadd.f32 %v798, %v1130
      %v1132 = vpop.f32.mrb[0].mxu0
      %v1133 = vpop.f32.mrb[0].mxu0
      %v1134 = vadd.f32 %v801, %v1133
      %v1135 = vpop.f32.mrb[0].mxu0
      %1136 = vmatprep.mubr.bf16.mxu0 0
      %1137 = vmatmul.mubr.bf16.gmra.mrb[0].mxu0 %v1008
      %v1138 = vpop.f32.mrb[0].mxu0
      %v1139 = vadd.f32 %v806, %v1138
      %v1140 = vpop.f32.mrb[0].mxu0
      %v1141 = vpop.f32.mrb[0].mxu0
      %v1142 = vadd.f32 %v809, %v1141
      %v1143 = vpop.f32.mrb[0].mxu0
      %1144 = vmatprep.mubr.bf16.mxu0 0
      %1145 = vmatmul.mubr.bf16.gmra.mrb[0].mxu0 %v1011
      %v1146 = vpop.f32.mrb[0].mxu0
      %v1147 = vadd.f32 %v814, %v1146
      %v1148 = vpop.f32.mrb[0].mxu0
      %v1149 = vpop.f32.mrb[0].mxu0
      %v1150 = vadd.f32 %v817, %v1149
      %v1151 = vpop.f32.mrb[0].mxu0
      %1152 = vmatprep.mubr.bf16.mxu0 0
      %1153 = vmatmul.mubr.bf16.gmra.mrb[0].mxu0 %v1014
      %v1154 = vpop.f32.mrb[0].mxu0
      %v1155 = vadd.f32 %v822, %v1154
      %v1156 = vpop.f32.mrb[0].mxu0
      %v1157 = vpop.f32.mrb[0].mxu0
      %v1158 = vadd.f32 %v825, %v1157
      %v1159 = vpop.f32.mrb[0].mxu0
      %1160 = vmatprep.mubr.bf16.mxu0 0
      %1161 = vmatmul.mubr.bf16.gmra.mrb[0].mxu0 %v1017
      %v1162 = vpop.f32.mrb[0].mxu0
      %v1163 = vadd.f32 %v830, %v1162
      %v1164 = vpop.f32.mrb[0].mxu0
      %v1165 = vpop.f32.mrb[0].mxu0
      %v1166 = vadd.f32 %v833, %v1165
      %v1167 = vpop.f32.mrb[0].mxu0
      %1168 = vmatprep.mubr.bf16.mxu0 0
      %1169 = vmatmul.mubr.bf16.gmra.mrb[0].mxu0 %v1020
      %v1170 = vpop.f32.mrb[0].mxu0
      %v1171 = vadd.f32 %v838, %v1170
      %v1172 = vpop.f32.mrb[0].mxu0
      %v1173 = vpop.f32.mrb[0].mxu0
      %v1174 = vadd.f32 %v841, %v1173
      %v1175 = vpop.f32.mrb[0].mxu0
      %1176 = vmatprep.mubr.bf16.mxu0 0
      %1177 = vmatmul.mubr.bf16.gmra.mrb[0].mxu0 %v1023
      %v1178 = vpop.f32.mrb[0].mxu0
      %v1179 = vadd.f32 %v846, %v1178
      %v1180 = vpop.f32.mrb[0].mxu0
      %v1181 = vpop.f32.mrb[0].mxu0
      %v1182 = vadd.f32 %v849, %v1181
      %v1183 = vpop.f32.mrb[0].mxu0
      %1184 = vmatprep.mubr.bf16.mxu0 0
      %1185 = vmatmul.mubr.bf16.gmra.mrb[0].mxu0 %v1026
      %v1186 = vpop.f32.mrb[0].mxu0
      %v1187 = vadd.f32 %v854, %v1186
      %v1188 = vpop.f32.mrb[0].mxu0
      %v1189 = vpop.f32.mrb[0].mxu0
      %v1190 = vadd.f32 %v857, %v1189
      %v1191 = vpop.f32.mrb[0].mxu0
      %1192 = vdwg.mxu0
      %v1193 = vld [vmem:[%s4] sm:$0x1]
      %v1195 = vlaneseq
      %v1196 = vshrl.u32 %v1195, 7
      %v1197 = vsub.s32 0, %v1196
      %v1198 = vrot.slane %v1193, %v1197
      %v1200 = vadd.f32 %v1067, %v1198
      %v1201 = vadd.f32 %v1070, %v1198
      %v1202 = vadd.f32 %v1075, %v1198
      %v1203 = vadd.f32 %v1078, %v1198
      %v1204 = vadd.f32 %v1083, %v1198
      %v1205 = vadd.f32 %v1086, %v1198
      %v1206 = vadd.f32 %v1091, %v1198
      %v1207 = vadd.f32 %v1094, %v1198
      %v1208 = vadd.f32 %v1099, %v1198
      %v1209 = vadd.f32 %v1102, %v1198
      %v1210 = vadd.f32 %v1107, %v1198
      %v1211 = vadd.f32 %v1110, %v1198
      %v1212 = vadd.f32 %v1115, %v1198
      %v1213 = vadd.f32 %v1118, %v1198
      %v1214 = vadd.f32 %v1123, %v1198
      %v1215 = vadd.f32 %v1126, %v1198
      %v1216 = vadd.f32 %v1131, %v1198
      %v1217 = vadd.f32 %v1134, %v1198
      %v1218 = vadd.f32 %v1139, %v1198
      %v1219 = vadd.f32 %v1142, %v1198
      %v1220 = vadd.f32 %v1147, %v1198
      %v1221 = vadd.f32 %v1150, %v1198
      %v1222 = vadd.f32 %v1155, %v1198
      %v1223 = vadd.f32 %v1158, %v1198
      %v1224 = vadd.f32 %v1163, %v1198
      %v1225 = vadd.f32 %v1166, %v1198
      %v1226 = vadd.f32 %v1171, %v1198
      %v1227 = vadd.f32 %v1174, %v1198
      %v1228 = vadd.f32 %v1179, %v1198
      %v1229 = vadd.f32 %v1182, %v1198
      %v1230 = vadd.f32 %v1187, %v1198
      %v1231 = vadd.f32 %v1190, %v1198
      %vm1232 = vcmask 64512
      %1233 = vst.msk [vmem:[%s316] sm:$0xff] %vm1232, %v1200
      %1234 = vst.msk [vmem:[%s316 + $0x8] sm:$0xff] %vm1232, %v1201
      %1235 = vst.msk [vmem:[%s316 + $0x10] sm:$0xff] %vm1232, %v1202
      %1236 = vst.msk [vmem:[%s316 + $0x18] sm:$0xff] %vm1232, %v1203
      %1237 = vst.msk [vmem:[%s316 + $0x20] sm:$0xff] %vm1232, %v1204
      %1238 = vst.msk [vmem:[%s316 + $0x28] sm:$0xff] %vm1232, %v1205
      %1239 = vst.msk [vmem:[%s316 + $0x30] sm:$0xff] %vm1232, %v1206
      %1240 = vst.msk [vmem:[%s316 + $0x38] sm:$0xff] %vm1232, %v1207
      %1241 = vst.msk [vmem:[%s316 + $0x40] sm:$0xff] %vm1232, %v1208
      %1242 = vst.msk [vmem:[%s316 + $0x48] sm:$0xff] %vm1232, %v1209
      %1243 = vst.msk [vmem:[%s316 + $0x50] sm:$0xff] %vm1232, %v1210
      %1244 = vst.msk [vmem:[%s316 + $0x58] sm:$0xff] %vm1232, %v1211
      %1245 = vst.msk [vmem:[%s316 + $0x60] sm:$0xff] %vm1232, %v1212
      %1246 = vst.msk [vmem:[%s316 + $0x68] sm:$0xff] %vm1232, %v1213
      %1247 = vst.msk [vmem:[%s316 + $0x70] sm:$0xff] %vm1232, %v1214
      %1248 = vst.msk [vmem:[%s316 + $0x78] sm:$0xff] %vm1232, %v1215
      %1249 = vst.msk [vmem:[%s316 + $0x80] sm:$0xff] %vm1232, %v1216
      %1250 = vst.msk [vmem:[%s316 + $0x88] sm:$0xff] %vm1232, %v1217
      %1251 = vst.msk [vmem:[%s316 + $0x90] sm:$0xff] %vm1232, %v1218
      %1252 = vst.msk [vmem:[%s316 + $0x98] sm:$0xff] %vm1232, %v1219
      %1253 = vst.msk [vmem:[%s316 + $0xa0] sm:$0xff] %vm1232, %v1220
      %1254 = vst.msk [vmem:[%s316 + $0xa8] sm:$0xff] %vm1232, %v1221
      %1255 = vst.msk [vmem:[%s316 + $0xb0] sm:$0xff] %vm1232, %v1222
      %1256 = vst.msk [vmem:[%s316 + $0xb8] sm:$0xff] %vm1232, %v1223
      %1257 = vst.msk [vmem:[%s316 + $0xc0] sm:$0xff] %vm1232, %v1224
      %1258 = vst.msk [vmem:[%s316 + $0xc8] sm:$0xff] %vm1232, %v1225
      %1259 = vst.msk [vmem:[%s316 + $0xd0] sm:$0xff] %vm1232, %v1226
      %1260 = vst.msk [vmem:[%s316 + $0xd8] sm:$0xff] %vm1232, %v1227
      %1261 = vst.msk [vmem:[%s316 + $0xe0] sm:$0xff] %vm1232, %v1228
      %1262 = vst.msk [vmem:[%s316 + $0xe8] sm:$0xff] %vm1232, %v1229
      %1263 = vst.msk [vmem:[%s316 + $0xf0] sm:$0xff] %vm1232, %v1230
      %1264 = vst.msk [vmem:[%s316 + $0xf8] sm:$0xff] %vm1232, %v1231
      %v1265 = vsel %vm1232, %v1200, 0.0
      %v1266 = vsel %vm1232, %v1201, 0.0
      %v1267 = vadd.f32 %v1265, %v1266
      %v1268 = vsel %vm1232, %v1202, 0.0
      %v1269 = vadd.f32 %v1267, %v1268
      %v1270 = vsel %vm1232, %v1203, 0.0
      %v1271 = vadd.f32 %v1269, %v1270
      %v1272 = vsel %vm1232, %v1204, 0.0
      %v1273 = vadd.f32 %v1271, %v1272
      %v1274 = vsel %vm1232, %v1205, 0.0
      %v1275 = vadd.f32 %v1273, %v1274
      %v1276 = vsel %vm1232, %v1206, 0.0
      %v1277 = vadd.f32 %v1275, %v1276
      %v1278 = vsel %vm1232, %v1207, 0.0
      %v1279 = vadd.f32 %v1277, %v1278
      %v1280 = vsel %vm1232, %v1208, 0.0
      %v1281 = vadd.f32 %v1279, %v1280
      %v1282 = vsel %vm1232, %v1209, 0.0
      %v1283 = vadd.f32 %v1281, %v1282
      %v1284 = vsel %vm1232, %v1210, 0.0
      %v1285 = vadd.f32 %v1283, %v1284
      %v1286 = vsel %vm1232, %v1211, 0.0
      %v1287 = vadd.f32 %v1285, %v1286
      %v1288 = vsel %vm1232, %v1212, 0.0
      %v1289 = vadd.f32 %v1287, %v1288
      %v1290 = vsel %vm1232, %v1213, 0.0
      %v1291 = vadd.f32 %v1289, %v1290
      %v1292 = vsel %vm1232, %v1214, 0.0
      %v1293 = vadd.f32 %v1291, %v1292
      %v1294 = vsel %vm1232, %v1215, 0.0
      %v1295 = vadd.f32 %v1293, %v1294
      %v1296 = vsel %vm1232, %v1216, 0.0
      %v1297 = vadd.f32 %v1295, %v1296
      %v1298 = vsel %vm1232, %v1217, 0.0
      %v1299 = vadd.f32 %v1297, %v1298
      %v1300 = vsel %vm1232, %v1218, 0.0
      %v1301 = vadd.f32 %v1299, %v1300
      %v1302 = vsel %vm1232, %v1219, 0.0
      %v1303 = vadd.f32 %v1301, %v1302
      %v1304 = vsel %vm1232, %v1220, 0.0
      %v1305 = vadd.f32 %v1303, %v1304
      %v1306 = vsel %vm1232, %v1221, 0.0
      %v1307 = vadd.f32 %v1305, %v1306
      %v1308 = vsel %vm1232, %v1222, 0.0
      %v1309 = vadd.f32 %v1307, %v1308
      %v1310 = vsel %vm1232, %v1223, 0.0
      %v1311 = vadd.f32 %v1309, %v1310
      %v1312 = vsel %vm1232, %v1224, 0.0
      %v1313 = vadd.f32 %v1311, %v1312
      %v1314 = vsel %vm1232, %v1225, 0.0
      %v1315 = vadd.f32 %v1313, %v1314
      %v1316 = vsel %vm1232, %v1226, 0.0
      %v1317 = vadd.f32 %v1315, %v1316
      %v1318 = vsel %vm1232, %v1227, 0.0
      %v1319 = vadd.f32 %v1317, %v1318
      %v1320 = vsel %vm1232, %v1228, 0.0
      %v1321 = vadd.f32 %v1319, %v1320
      %v1322 = vsel %vm1232, %v1229, 0.0
      %v1323 = vadd.f32 %v1321, %v1322
      %v1324 = vsel %vm1232, %v1230, 0.0
      %v1325 = vadd.f32 %v1323, %v1324
      %v1326 = vsel %vm1232, %v1231, 0.0
      %v1327 = vadd.f32 %v1325, %v1326
      %v1328 = vrot.slane %v1327, 4
      %v1329 = vadd.f32 %v1327, %v1328
      %v1330 = vrot.slane %v1329, 2
      %v1331 = vadd.f32 %v1329, %v1330
      %v1332 = vrot.slane %v1331, 1
      %v1333 = vadd.f32 %v1331, %v1332
      %vm1334 = vcmask 57344
      %1335 = vst.msk [vmem:[%s320] sm:$0x1] %vm1334, %v1333
      %v1336 = vmul.f32 %v1200, %v1200
      %v1337 = vmul.f32 %v1201, %v1201
      %v1338 = vmul.f32 %v1202, %v1202
      %v1339 = vmul.f32 %v1203, %v1203
      %v1340 = vmul.f32 %v1204, %v1204
      %v1341 = vmul.f32 %v1205, %v1205
      %v1342 = vmul.f32 %v1206, %v1206
      %v1343 = vmul.f32 %v1207, %v1207
      %v1344 = vmul.f32 %v1208, %v1208
      %v1345 = vmul.f32 %v1209, %v1209
      %v1346 = vmul.f32 %v1210, %v1210
      %v1347 = vmul.f32 %v1211, %v1211
      %v1348 = vmul.f32 %v1212, %v1212
      %v1349 = vmul.f32 %v1213, %v1213
      %v1350 = vmul.f32 %v1214, %v1214
      %v1351 = vmul.f32 %v1215, %v1215
      %v1352 = vmul.f32 %v1216, %v1216
      %v1353 = vmul.f32 %v1217, %v1217
      %v1354 = vmul.f32 %v1218, %v1218
      %v1355 = vmul.f32 %v1219, %v1219
      %v1356 = vmul.f32 %v1220, %v1220
      %v1357 = vmul.f32 %v1221, %v1221
      %v1358 = vmul.f32 %v1222, %v1222
      %v1359 = vmul.f32 %v1223, %v1223
      %v1360 = vmul.f32 %v1224, %v1224
      %v1361 = vmul.f32 %v1225, %v1225
      %v1362 = vmul.f32 %v1226, %v1226
      %v1363 = vmul.f32 %v1227, %v1227
      %v1364 = vmul.f32 %v1228, %v1228
      %v1365 = vmul.f32 %v1229, %v1229
      %v1366 = vmul.f32 %v1230, %v1230
      %v1367 = vmul.f32 %v1231, %v1231
      %v1368 = vsel %vm1232, %v1336, 0.0
      %v1369 = vsel %vm1232, %v1337, 0.0
      %v1370 = vadd.f32 %v1368, %v1369
      %v1371 = vsel %vm1232, %v1338, 0.0
      %v1372 = vadd.f32 %v1370, %v1371
      %v1373 = vsel %vm1232, %v1339, 0.0
      %v1374 = vadd.f32 %v1372, %v1373
      %v1375 = vsel %vm1232, %v1340, 0.0
      %v1376 = vadd.f32 %v1374, %v1375
      %v1377 = vsel %vm1232, %v1341, 0.0
      %v1378 = vadd.f32 %v1376, %v1377
      %v1379 = vsel %vm1232, %v1342, 0.0
      %v1380 = vadd.f32 %v1378, %v1379
      %v1381 = vsel %vm1232, %v1343, 0.0
      %v1382 = vadd.f32 %v1380, %v1381
      %v1383 = vsel %vm1232, %v1344, 0.0
      %v1384 = vadd.f32 %v1382, %v1383
      %v1385 = vsel %vm1232, %v1345, 0.0
      %v1386 = vadd.f32 %v1384, %v1385
      %v1387 = vsel %vm1232, %v1346, 0.0
      %v1388 = vadd.f32 %v1386, %v1387
      %v1389 = vsel %vm1232, %v1347, 0.0
      %v1390 = vadd.f32 %v1388, %v1389
      %v1391 = vsel %vm1232, %v1348, 0.0
      %v1392 = vadd.f32 %v1390, %v1391
      %v1393 = vsel %vm1232, %v1349, 0.0
      %v1394 = vadd.f32 %v1392, %v1393
      %v1395 = vsel %vm1232, %v1350, 0.0
      %v1396 = vadd.f32 %v1394, %v1395
      %v1397 = vsel %vm1232, %v1351, 0.0
      %v1398 = vadd.f32 %v1396, %v1397
      %v1399 = vsel %vm1232, %v1352, 0.0
      %v1400 = vadd.f32 %v1398, %v1399
      %v1401 = vsel %vm1232, %v1353, 0.0
      %v1402 = vadd.f32 %v1400, %v1401
      %v1403 = vsel %vm1232, %v1354, 0.0
      %v1404 = vadd.f32 %v1402, %v1403
      %v1405 = vsel %vm1232, %v1355, 0.0
      %v1406 = vadd.f32 %v1404, %v1405
      %v1407 = vsel %vm1232, %v1356, 0.0
      %v1408 = vadd.f32 %v1406, %v1407
      %v1409 = vsel %vm1232, %v1357, 0.0
      %v1410 = vadd.f32 %v1408, %v1409
      %v1411 = vsel %vm1232, %v1358, 0.0
      %v1412 = vadd.f32 %v1410, %v1411
      %v1413 = vsel %vm1232, %v1359, 0.0
      %v1414 = vadd.f32 %v1412, %v1413
      %v1415 = vsel %vm1232, %v1360, 0.0
      %v1416 = vadd.f32 %v1414, %v1415
      %v1417 = vsel %vm1232, %v1361, 0.0
      %v1418 = vadd.f32 %v1416, %v1417
      %v1419 = vsel %vm1232, %v1362, 0.0
      %v1420 = vadd.f32 %v1418, %v1419
      %v1421 = vsel %vm1232, %v1363, 0.0
      %v1422 = vadd.f32 %v1420, %v1421
      %v1423 = vsel %vm1232, %v1364, 0.0
      %v1424 = vadd.f32 %v1422, %v1423
      %v1425 = vsel %vm1232, %v1365, 0.0
      %v1426 = vadd.f32 %v1424, %v1425
      %v1427 = vsel %vm1232, %v1366, 0.0
      %v1428 = vadd.f32 %v1426, %v1427
      %v1429 = vsel %vm1232, %v1367, 0.0
      %v1430 = vadd.f32 %v1428, %v1429
      %v1431 = vrot.slane %v1430, 4
      %v1432 = vadd.f32 %v1430, %v1431
      %v1433 = vrot.slane %v1432, 2
      %v1434 = vadd.f32 %v1432, %v1433
      %v1435 = vrot.slane %v1434, 1
      %v1436 = vadd.f32 %v1434, %v1435
      %1437 = vst.msk [vmem:[%s323] sm:$0x1] %vm1334, %v1436
      %s1438 = smul.u32 32, %s19
      %p1439 = scmp.lt.s32.totalorder %s1438, 63
      %s1440 = scalar_select %p1439, %s1438, 63
      %s1441 = smul.addr %s1440, 8
      %s1442 = scalar_lea.vmem %s5, %s1441
      %p1443 = scmp.lt.s32.totalorder %s19, 1
      %s1444 = scalar_select %p1443, %s19, 1
      %s1445 = scalar_lea.vmem %s6, %s1444
      %p1446 = scmp.lt.s32.totalorder %s19, 1
      %s1447 = scalar_select %p1446, %s19, 1
      %s1448 = scalar_lea.vmem %s7, %s1447
      // Predicated region
      $region41: #{dense_block_forward.6} parent=39 // pred_check
        %p1449 = pneg %p152
      $region42: #{dense_block_forward.6} parent=39 // pred_check_branch
        %1451 = sbr.rel (%p1449) target = $region44
      $region43: #{dense_block_forward.6} parent=39 // pred_region
        %s1452 = smul.u32 32, %s19
      $region44: #{dense_block_forward.6} parent=39 // pred_fallthru
        _
      // Predicated region
      $region45: #{dense_block_forward.6} parent=39 // pred_check
        %p1453 = pneg %p178
      $region46: #{dense_block_forward.6} parent=39 // pred_check_branch
        %1455 = sbr.rel (%p1453) target = $region48
      $region47: #{dense_block_forward.6} parent=39 // pred_region
        _
      $region48: #{dense_block_forward.6} parent=39 // pred_fallthru
        _
      // Predicated region
      $region49: #{dense_block_forward.6} parent=39 // pred_check
        %p1456 = pneg %p204
      $region50: #{dense_block_forward.6} parent=39 // pred_check_branch
        %1458 = sbr.rel (%p1456) target = $region52
      $region51: #{dense_block_forward.6} parent=39 // pred_region
        _
      $region52: #{dense_block_forward.6} parent=39 // pred_fallthru
        _
    $region40: #{dense_block_forward.6} parent=5 // pred_fallthru
      _
    %p1459 = scmp.le.s32.totalorder 2, %s14
    // Predicated region
    $region53: #{dense_block_forward.6} parent=5 // pred_check
      %p1460 = pneg %p1459
    $region54: #{dense_block_forward.6} parent=5 // pred_check_branch
      %1462 = sbr.rel (%p1460) target = $region56
    $region55: #{dense_block_forward.6} parent=5 // pred_region
      %s1463 = ssub.s32 %s14, 2
      // Predicated region
      $region57: #{dense_block_forward.6} parent=55 // pred_check
        %p1464 = pneg %p158
      $region58: #{dense_block_forward.6} parent=55 // pred_check_branch
        %1466 = sbr.rel (%p1464) target = $region60
      $region59: #{dense_block_forward.6} parent=55 // pred_region
        %s1467 = smul.u32 32, %s20
        %p1468 = scmp.lt.s32.totalorder %s1467, 63
        %s1469 = scalar_select %p1468, %s1467, 63
        %s1470 = smul.addr %s1469, 8
        %s1471 = scalar_lea.vmem %s5, %s1470
      $region60: #{dense_block_forward.6} parent=55 // pred_fallthru
        _
      // Predicated region
      $region61: #{dense_block_forward.6} parent=55 // pred_check
        %p1472 = pneg %p184
      $region62: #{dense_block_forward.6} parent=55 // pred_check_branch
        %1474 = sbr.rel (%p1472) target = $region64
      $region63: #{dense_block_forward.6} parent=55 // pred_region
        %p1475 = scmp.lt.s32.totalorder %s20, 1
        %s1476 = scalar_select %p1475, %s20, 1
        %s1477 = scalar_lea.vmem %s6, %s1476
      $region64: #{dense_block_forward.6} parent=55 // pred_fallthru
        _
      // Predicated region
      $region65: #{dense_block_forward.6} parent=55 // pred_check
        %p1478 = pneg %p210
      $region66: #{dense_block_forward.6} parent=55 // pred_check_branch
        %1480 = sbr.rel (%p1478) target = $region68
      $region67: #{dense_block_forward.6} parent=55 // pred_region
        %p1481 = scmp.lt.s32.totalorder %s20, 1
        %s1482 = scalar_select %p1481, %s20, 1
        %s1483 = scalar_lea.vmem %s7, %s1482
      $region68: #{dense_block_forward.6} parent=55 // pred_fallthru
        _
    $region56: #{dense_block_forward.6} parent=5 // pred_fallthru
      _
  $region6: #{dense_block_forward.6} parent=0 // loop_footer
    %s18 = sadd.s32 1, %s14
  $region7: #{dense_block_forward.6} parent=0 // loop_footer_branch
    %13 = sbr.rel target = $region3
  $region8: #{dense_block_forward.6} parent=0 // loop_exit
    _

// kernel: dense_block_forward.7
$region0: #{dense_block_forward.7}
  #allocation0 [shape = 'u32[]', space=smem, size = 0x4, offset = 0x4, fixed_abs, tag = 'smem constant byte address 0x4 - core index']
  #allocation1 [shape = 'u32[144,128]{1,0:T(1,128)}', space=vmem, size = 0x12000, scoped, tag = 'internal scratch']
  #allocation2 [shape = 'f32[1]{0:T(128)S(6)}', space=smem, size = 0x200, scoped, tag = 'scoped memory for dense_block_forward.7']
  %s0 = inlined_call_operand.vmem [shape: bf16[512,4], index: 0, kind: input, shape index: {}]
  %s1 = inlined_call_operand.vmem [shape: bf16[512,8], index: 1, kind: input, shape index: {}]
  %s2 = inlined_call_operand.vmem [shape: f32[512,8], index: 2, kind: input, shape index: {}]
  %s3 = inlined_call_operand.vmem [shape: f32[1,8], index: 3, kind: input, shape index: {}]
  %s4 = inlined_call_operand.vmem [shape: f32[1,8], index: 4, kind: input, shape index: {}]
  %s5 = inlined_call_operand.<no memory space> [shape: f32[1], index: 5, kind: input, shape index: {}]
  %s6 = inlined_call_operand.vmem [shape: bf16[4,8], index: 6, kind: input, shape index: {}]
  %s7 = inlined_call_operand.vmem [shape: bf16[8,8], index: 7, kind: input, shape index: {}]
  %s8 = inlined_call_operand.vmem [shape: bf16[8,8], index: 8, kind: input, shape index: {}]
  %s9 = inlined_call_operand.vmem [shape: f32[1,8], index: 9, kind: input, shape index: {}]
  %s10 = inlined_call_operand.vmem [shape: f32[512,8], index: 10, kind: output, shape index: {}]
  %s11 = sld [smem:[#allocation0]]
  $region73: #{dense_block_forward.7} parent=0
    _
  %s13 = ssub.s32 1, %s11
  %s14 = scalar_select 0, %s13, %s11
  %15 = sst [smem:[#allocation2]] %s5
  loop: start=0, step=1, limit=4
  $region2: #{dense_block_forward.7} parent=0 // loop_pre_header
    _
  $region3: #{dense_block_forward.7} parent=0 // loop_header
    %s17 = sphi 0, %s21
    %p18 = scmp.ge.s32.totalorder %s17, 4
    %s27 = sphi 0, %s29
    %s30 = sphi 0, %s27
    %s31 = sphi 0, %s30
    %s47 = sphi 0, %s31
    %s53 = sphi 0, %s55
    %s56 = sphi 0, %s53
    %s57 = sphi 0, %s56
    %s73 = sphi 0, %s57
    %s79 = sphi 0, %s81
    %s82 = sphi 0, %s79
    %s83 = sphi 0, %s82
    %s99 = sphi 0, %s83
    %s103 = sphi 0, %s103
    %s105 = sphi 0, %s103
    %s106 = sphi 0, %s105
    %s120 = sphi 0, %s106
    %s124 = sphi 0, %s124
    %s126 = sphi 0, %s124
    %s127 = sphi 0, %s126
    %s141 = sphi 0, %s127
    %s145 = sphi 0, %s145
    %s147 = sphi 0, %s145
    %s148 = sphi 0, %s147
    %s162 = sphi 0, %s148
    %s166 = sphi 0, %s166
    %s168 = sphi 0, %s166
    %s169 = sphi 0, %s168
    %s183 = sphi 0, %s169
    %s187 = sphi 0, %s187
    %s189 = sphi 0, %s187
    %s190 = sphi 0, %s189
    %s204 = sphi 0, %s190
    %s208 = sphi 0, %s208
    %s210 = sphi 0, %s208
    %s211 = sphi 0, %s210
    %s225 = sphi 0, %s211
    %s229 = sphi 0, %s229
    %s231 = sphi 0, %s229
    %s232 = sphi 0, %s231
    %s246 = sphi 0, %s232
    %s252 = sphi 0, %s254
    %s255 = sphi 0, %s252
    %s256 = sphi 0, %s255
    %s272 = sphi 0, %s256
  $region4: #{dense_block_forward.7} parent=0 // loop_header_branch
    %20 = sbr.rel (%p18) target = $region8
  $region5: #{dense_block_forward.7} parent=0 // loop_body
    %s22 = ssub.s32 %s17, 1
    %s23 = ssub.s32 %s17, 2
    %s24 = sadd.s32 %s17, 1
    %s25 = ssub.s32 %s17, %s24
    %p26 = scmp.eq.s32.totalorder %s25, 0
    %s28 = sadd.s32 %s27, 1
    %s29 = scalar_select %p26, %s27, %s28
    %p32 = pneg %p26
    %p33 = scmp.eq.s32.totalorder %s17, 1
    %p34 = por %p32, %p33
    %p35 = scmp.ne.s32.totalorder %s27, %s30
    %p36 = scmp.eq.s32.totalorder %s17, 0
    %p37 = por %p35, %p36
    %p38 = scmp.ne.s32.totalorder %s27, %s30
    %p39 = scmp.eq.s32.totalorder %s22, 1
    %p40 = por %p38, %p39
    %p41 = scmp.ne.s32.totalorder %s30, %s31
    %p42 = scmp.eq.s32.totalorder %s22, 0
    %p43 = por %p41, %p42
    %p44 = scmp.ne.s32.totalorder %s30, %s31
    %p45 = scmp.eq.s32.totalorder %s23, 1
    %p46 = por %p44, %p45
    %p48 = scmp.ne.s32.totalorder %s31, %s47
    %p49 = scmp.eq.s32.totalorder %s23, 0
    %p50 = por %p48, %p49
    %s51 = ssub.s32 %s17, %s24
    %p52 = scmp.eq.s32.totalorder %s51, 0
    %s54 = sadd.s32 %s53, 1
    %s55 = scalar_select %p52, %s53, %s54
    %p58 = pneg %p52
    %p59 = scmp.eq.s32.totalorder %s17, 1
    %p60 = por %p58, %p59
    %p61 = scmp.ne.s32.totalorder %s53, %s56
    %p62 = scmp.eq.s32.totalorder %s17, 0
    %p63 = por %p61, %p62
    %p64 = scmp.ne.s32.totalorder %s53, %s56
    %p65 = scmp.eq.s32.totalorder %s22, 1
    %p66 = por %p64, %p65
    %p67 = scmp.ne.s32.totalorder %s56, %s57
    %p68 = scmp.eq.s32.totalorder %s22, 0
    %p69 = por %p67, %p68
    %p70 = scmp.ne.s32.totalorder %s56, %s57
    %p71 = scmp.eq.s32.totalorder %s23, 1
    %p72 = por %p70, %p71
    %p74 = scmp.ne.s32.totalorder %s57, %s73
    %p75 = scmp.eq.s32.totalorder %s23, 0
    %p76 = por %p74, %p75
    %s77 = ssub.s32 %s17, %s24
    %p78 = scmp.eq.s32.totalorder %s77, 0
    %s80 = sadd.s32 %s79, 1
    %s81 = scalar_select %p78, %s79, %s80
    %p84 = pneg %p78
    %p85 = scmp.eq.s32.totalorder %s17, 1
    %p86 = por %p84, %p85
    %p87 = scmp.ne.s32.totalorder %s79, %s82
    %p88 = scmp.eq.s32.totalorder %s17, 0
    %p89 = por %p87, %p88
    %p90 = scmp.ne.s32.totalorder %s79, %s82
    %p91 = scmp.eq.s32.totalorder %s22, 1
    %p92 = por %p90, %p91
    %p93 = scmp.ne.s32.totalorder %s82, %s83
    %p94 = scmp.eq.s32.totalorder %s22, 0
    %p95 = por %p93, %p94
    %p96 = scmp.ne.s32.totalorder %s82, %s83
    %p97 = scmp.eq.s32.totalorder %s23, 1
    %p98 = por %p96, %p97
    %p100 = scmp.ne.s32.totalorder %s83, %s99
    %p101 = scmp.eq.s32.totalorder %s23, 0
    %p102 = por %p100, %p101
    %s104 = sadd.s32 %s103, 1
    %p107 = scmp.eq.s32.totalorder %s17, 1
    %p108 = scmp.ne.s32.totalorder %s103, %s105
    %p109 = scmp.eq.s32.totalorder %s17, 0
    %p110 = por %p108, %p109
    %p111 = scmp.ne.s32.totalorder %s103, %s105
    %p112 = scmp.eq.s32.totalorder %s22, 1
    %p113 = por %p111, %p112
    %p114 = scmp.ne.s32.totalorder %s105, %s106
    %p115 = scmp.eq.s32.totalorder %s22, 0
    %p116 = por %p114, %p115
    %p117 = scmp.ne.s32.totalorder %s105, %s106
    %p118 = scmp.eq.s32.totalorder %s23, 1
    %p119 = por %p117, %p118
    %p121 = scmp.ne.s32.totalorder %s106, %s120
    %p122 = scmp.eq.s32.totalorder %s23, 0
    %p123 = por %p121, %p122
    %s125 = sadd.s32 %s124, 1
    %p128 = scmp.eq.s32.totalorder %s17, 1
    %p129 = scmp.ne.s32.totalorder %s124, %s126
    %p130 = scmp.eq.s32.totalorder %s17, 0
    %p131 = por %p129, %p130
    %p132 = scmp.ne.s32.totalorder %s124, %s126
    %p133 = scmp.eq.s32.totalorder %s22, 1
    %p134 = por %p132, %p133
    %p135 = scmp.ne.s32.totalorder %s126, %s127
    %p136 = scmp.eq.s32.totalorder %s22, 0
    %p137 = por %p135, %p136
    %p138 = scmp.ne.s32.totalorder %s126, %s127
    %p139 = scmp.eq.s32.totalorder %s23, 1
    %p140 = por %p138, %p139
    %p142 = scmp.ne.s32.totalorder %s127, %s141
    %p143 = scmp.eq.s32.totalorder %s23, 0
    %p144 = por %p142, %p143
    %s146 = sadd.s32 %s145, 1
    %p149 = scmp.eq.s32.totalorder %s17, 1
    %p150 = scmp.ne.s32.totalorder %s145, %s147
    %p151 = scmp.eq.s32.totalorder %s17, 0
    %p152 = por %p150, %p151
    %p153 = scmp.ne.s32.totalorder %s145, %s147
    %p154 = scmp.eq.s32.totalorder %s22, 1
    %p155 = por %p153, %p154
    %p156 = scmp.ne.s32.totalorder %s147, %s148
    %p157 = scmp.eq.s32.totalorder %s22, 0
    %p158 = por %p156, %p157
    %p159 = scmp.ne.s32.totalorder %s147, %s148
    %p160 = scmp.eq.s32.totalorder %s23, 1
    %p161 = por %p159, %p160
    %p163 = scmp.ne.s32.totalorder %s148, %s162
    %p164 = scmp.eq.s32.totalorder %s23, 0
    %p165 = por %p163, %p164
    %s167 = sadd.s32 %s166, 1
    %p170 = scmp.eq.s32.totalorder %s17, 1
    %p171 = scmp.ne.s32.totalorder %s166, %s168
    %p172 = scmp.eq.s32.totalorder %s17, 0
    %p173 = por %p171, %p172
    %p174 = scmp.ne.s32.totalorder %s166, %s168
    %p175 = scmp.eq.s32.totalorder %s22, 1
    %p176 = por %p174, %p175
    %p177 = scmp.ne.s32.totalorder %s168, %s169
    %p178 = scmp.eq.s32.totalorder %s22, 0
    %p179 = por %p177, %p178
    %p180 = scmp.ne.s32.totalorder %s168, %s169
    %p181 = scmp.eq.s32.totalorder %s23, 1
    %p182 = por %p180, %p181
    %p184 = scmp.ne.s32.totalorder %s169, %s183
    %p185 = scmp.eq.s32.totalorder %s23, 0
    %p186 = por %p184, %p185
    %s188 = sadd.s32 %s187, 1
    %p191 = scmp.eq.s32.totalorder %s17, 1
    %p192 = scmp.ne.s32.totalorder %s187, %s189
    %p193 = scmp.eq.s32.totalorder %s17, 0
    %p194 = por %p192, %p193
    %p195 = scmp.ne.s32.totalorder %s187, %s189
    %p196 = scmp.eq.s32.totalorder %s22, 1
    %p197 = por %p195, %p196
    %p198 = scmp.ne.s32.totalorder %s189, %s190
    %p199 = scmp.eq.s32.totalorder %s22, 0
    %p200 = por %p198, %p199
    %p201 = scmp.ne.s32.totalorder %s189, %s190
    %p202 = scmp.eq.s32.totalorder %s23, 1
    %p203 = por %p201, %p202
    %p205 = scmp.ne.s32.totalorder %s190, %s204
    %p206 = scmp.eq.s32.totalorder %s23, 0
    %p207 = por %p205, %p206
    %s209 = sadd.s32 %s208, 1
    %p212 = scmp.eq.s32.totalorder %s17, 1
    %p213 = scmp.ne.s32.totalorder %s208, %s210
    %p214 = scmp.eq.s32.totalorder %s17, 0
    %p215 = por %p213, %p214
    %p216 = scmp.ne.s32.totalorder %s208, %s210
    %p217 = scmp.eq.s32.totalorder %s22, 1
    %p218 = por %p216, %p217
    %p219 = scmp.ne.s32.totalorder %s210, %s211
    %p220 = scmp.eq.s32.totalorder %s22, 0
    %p221 = por %p219, %p220
    %p222 = scmp.ne.s32.totalorder %s210, %s211
    %p223 = scmp.eq.s32.totalorder %s23, 1
    %p224 = por %p222, %p223
    %p226 = scmp.ne.s32.totalorder %s211, %s225
    %p227 = scmp.eq.s32.totalorder %s23, 0
    %p228 = por %p226, %p227
    %s230 = sadd.s32 %s229, 1
    %p233 = scmp.eq.s32.totalorder %s17, 1
    %p234 = scmp.ne.s32.totalorder %s229, %s231
    %p235 = scmp.eq.s32.totalorder %s17, 0
    %p236 = por %p234, %p235
    %p237 = scmp.ne.s32.totalorder %s229, %s231
    %p238 = scmp.eq.s32.totalorder %s22, 1
    %p239 = por %p237, %p238
    %p240 = scmp.ne.s32.totalorder %s231, %s232
    %p241 = scmp.eq.s32.totalorder %s22, 0
    %p242 = por %p240, %p241
    %p243 = scmp.ne.s32.totalorder %s231, %s232
    %p244 = scmp.eq.s32.totalorder %s23, 1
    %p245 = por %p243, %p244
    %p247 = scmp.ne.s32.totalorder %s232, %s246
    %p248 = scmp.eq.s32.totalorder %s23, 0
    %p249 = por %p247, %p248
    %s250 = ssub.s32 %s17, %s24
    %p251 = scmp.eq.s32.totalorder %s250, 0
    %s253 = sadd.s32 %s252, 1
    %s254 = scalar_select %p251, %s252, %s253
    %p257 = pneg %p251
    %p258 = scmp.eq.s32.totalorder %s17, 1
    %p259 = por %p257, %p258
    %p260 = scmp.ne.s32.totalorder %s252, %s255
    %p261 = scmp.eq.s32.totalorder %s17, 0
    %p262 = por %p260, %p261
    %p263 = scmp.ne.s32.totalorder %s252, %s255
    %p264 = scmp.eq.s32.totalorder %s22, 1
    %p265 = por %p263, %p264
    %p266 = scmp.ne.s32.totalorder %s255, %s256
    %p267 = scmp.eq.s32.totalorder %s22, 0
    %p268 = por %p266, %p267
    %p269 = scmp.ne.s32.totalorder %s255, %s256
    %p270 = scmp.eq.s32.totalorder %s23, 1
    %p271 = por %p269, %p270
    %p273 = scmp.ne.s32.totalorder %s256, %s272
    %p274 = scmp.eq.s32.totalorder %s23, 0
    %p275 = por %p273, %p274
    %p276 = scmp.le.s32.totalorder 1, %s17
    %p277 = scmp.lt.s32.totalorder %s17, 3
    %p278 = pnand %p276, %p277
    %p279 = pneg %p278
    // Predicated region
    $region9: #{dense_block_forward.7} parent=5 // pred_check
      _
    $region10: #{dense_block_forward.7} parent=5 // pred_check_branch
      %281 = sbr.rel (%p278) target = $region12
    $region11: #{dense_block_forward.7} parent=5 // pred_region
      %s282 = ssub.s32 %s17, 1
      // Predicated region
      $region13: #{dense_block_forward.7} parent=11 // pred_check
        %p283 = pneg %p116
      $region14: #{dense_block_forward.7} parent=11 // pred_check_branch
        %285 = sbr.rel (%p283) target = $region16
      $region15: #{dense_block_forward.7} parent=11 // pred_region
        _
      $region16: #{dense_block_forward.7} parent=11 // pred_fallthru
        _
      // Predicated region
      $region17: #{dense_block_forward.7} parent=11 // pred_check
        %p286 = pneg %p137
      $region18: #{dense_block_forward.7} parent=11 // pred_check_branch
        %288 = sbr.rel (%p286) target = $region20
      $region19: #{dense_block_forward.7} parent=11 // pred_region
        _
      $region20: #{dense_block_forward.7} parent=11 // pred_fallthru
        _
      // Predicated region
      $region21: #{dense_block_forward.7} parent=11 // pred_check
        %p289 = pneg %p158
      $region22: #{dense_block_forward.7} parent=11 // pred_check_branch
        %291 = sbr.rel (%p289) target = $region24
      $region23: #{dense_block_forward.7} parent=11 // pred_region
        _
      $region24: #{dense_block_forward.7} parent=11 // pred_fallthru
        _
      // Predicated region
      $region25: #{dense_block_forward.7} parent=11 // pred_check
        %p292 = pneg %p179
      $region26: #{dense_block_forward.7} parent=11 // pred_check_branch
        %294 = sbr.rel (%p292) target = $region28
      $region27: #{dense_block_forward.7} parent=11 // pred_region
        _
      $region28: #{dense_block_forward.7} parent=11 // pred_fallthru
        _
      // Predicated region
      $region29: #{dense_block_forward.7} parent=11 // pred_check
        %p295 = pneg %p200
      $region30: #{dense_block_forward.7} parent=11 // pred_check_branch
        %297 = sbr.rel (%p295) target = $region32
      $region31: #{dense_block_forward.7} parent=11 // pred_region
        _
      $region32: #{dense_block_forward.7} parent=11 // pred_fallthru
        _
      // Predicated region
      $region33: #{dense_block_forward.7} parent=11 // pred_check
        %p298 = pneg %p221
      $region34: #{dense_block_forward.7} parent=11 // pred_check_branch
        %300 = sbr.rel (%p298) target = $region36
      $region35: #{dense_block_forward.7} parent=11 // pred_region
        _
      $region36: #{dense_block_forward.7} parent=11 // pred_fallthru
        _
      // Predicated region
      $region37: #{dense_block_forward.7} parent=11 // pred_check
        %p301 = pneg %p242
      $region38: #{dense_block_forward.7} parent=11 // pred_check_branch
        %303 = sbr.rel (%p301) target = $region40
      $region39: #{dense_block_forward.7} parent=11 // pred_region
        _
      $region40: #{dense_block_forward.7} parent=11 // pred_fallthru
        _
    $region12: #{dense_block_forward.7} parent=5 // pred_fallthru
      _
    %p304 = scmp.lt.s32.totalorder %s17, 2
    // Predicated region
    $region41: #{dense_block_forward.7} parent=5 // pred_check
      %p305 = pneg %p304
    $region42: #{dense_block_forward.7} parent=5 // pred_check_branch
      %307 = sbr.rel (%p305) target = $region44
    $region43: #{dense_block_forward.7} parent=5 // pred_region
      // Predicated region
      $region45: #{dense_block_forward.7} parent=43 // pred_check
        %p308 = pneg %p37
      $region46: #{dense_block_forward.7} parent=43 // pred_check_branch
        %310 = sbr.rel (%p308) target = $region48
      $region47: #{dense_block_forward.7} parent=43 // pred_region
        %s311 = smul.u32 32, %s17
        %p312 = scmp.lt.s32.totalorder %s311, 63
        %s313 = scalar_select %p312, %s311, 63
        %s314 = smul.addr %s313, 4
        %s315 = scalar_lea.vmem %s0, %s314
        %s316 = smul.u32 32, %s17
      $region48: #{dense_block_forward.7} parent=43 // pred_fallthru
        _
      // Predicated region
      $region49: #{dense_block_forward.7} parent=43 // pred_check
        %p317 = pneg %p63
      $region50: #{dense_block_forward.7} parent=43 // pred_check_branch
        %319 = sbr.rel (%p317) target = $region52
      $region51: #{dense_block_forward.7} parent=43 // pred_region
        %s320 = smul.u32 32, %s17
        %p321 = scmp.lt.s32.totalorder %s320, 63
        %s322 = scalar_select %p321, %s320, 63
        %s323 = smul.addr %s322, 4
        %s324 = scalar_lea.vmem %s1, %s323
        %s325 = smul.u32 32, %s17
      $region52: #{dense_block_forward.7} parent=43 // pred_fallthru
        _
      // Predicated region
      $region53: #{dense_block_forward.7} parent=43 // pred_check
        %p326 = pneg %p89
      $region54: #{dense_block_forward.7} parent=43 // pred_check_branch
        %328 = sbr.rel (%p326) target = $region56
      $region55: #{dense_block_forward.7} parent=43 // pred_region
        %s329 = smul.u32 32, %s17
        %p330 = scmp.lt.s32.totalorder %s329, 63
        %s331 = scalar_select %p330, %s329, 63
        %s332 = smul.addr %s331, 8
        %s333 = scalar_lea.vmem %s2, %s332
        %s334 = smul.u32 32, %s17
      $region56: #{dense_block_forward.7} parent=43 // pred_fallthru
        _
    $region44: #{dense_block_forward.7} parent=5 // pred_fallthru
      _
    %p335 = scmp.le.s32.totalorder 1, %s17
    %p336 = scmp.lt.s32.totalorder %s17, 3
    %p337 = pnand %p335, %p336
    %p338 = pneg %p337
    // Predicated region
    $region57: #{dense_block_forward.7} parent=5 // pred_check
      _
    $region58: #{dense_block_forward.7} parent=5 // pred_check_branch
      %340 = sbr.rel (%p337) target = $region60
    $region59: #{dense_block_forward.7} parent=5 // pred_region
      %s341 = ssub.s32 %s17, 1
      %s342 = smul.u32 32, %s22
      %p343 = scmp.lt.s32.totalorder %s342, 63
      %s344 = scalar_select %p343, %s342, 63
      %s345 = smul.addr %s344, 4
      %s346 = scalar_lea.vmem %s0, %s345
      %p347 = pneg %p43
      %p348 = pneg %p40
      %s349 = smul.u32 32, %s22
      %p350 = scmp.lt.s32.totalorder %s349, 63
      %s351 = scalar_select %p350, %s349, 63
      %s352 = smul.addr %s351, 4
      %s353 = scalar_lea.vmem %s1, %s352
      %p354 = pneg %p69
      %p355 = pneg %p66
      %s356 = smul.u32 32, %s22
      %p357 = scmp.lt.s32.totalorder %s356, 63
      %s358 = scalar_select %p357, %s356, 63
      %s359 = smul.addr %s358, 8
      %s360 = scalar_lea.vmem %s2, %s359
      %p361 = pneg %p95
      %p362 = pneg %p92
      %p363 = pneg %p116
      %p364 = pneg %p113
      %p365 = pneg %p137
      %p366 = pneg %p134
      %p367 = pneg %p158
      %p368 = pneg %p155
      %p369 = pneg %p179
      %p370 = pneg %p176
      %p371 = pneg %p200
      %p372 = pneg %p197
      %p373 = pneg %p221
      %p374 = pneg %p218
      %p375 = pneg %p242
      %p376 = pneg %p239
      %p377 = pneg %p268
      %p378 = pneg %p265
      %s379 = smul.u32 32, %s22
      %p380 = scmp.lt.s32.totalorder %s379, 63
      %s381 = scalar_select %p380, %s379, 63
      %s382 = smul.addr %s381, 8
      %s383 = scalar_lea.vmem %s10, %s382
      %s384 = smul.u32 32, %s22
      %p385 = scmp.lt.s32.totalorder %s384, 63
      %s386 = scalar_select %p385, %s384, 63
      %s387 = smul.addr %s386, 4
      %s388 = scalar_lea.vmem %s0, %s387
      %s389 = smul.u32 32, %s22
      %s390 = smul.u32 32, %s22
      %p391 = scmp.lt.s32.totalorder %s390, 63
      %s392 = scalar_select %p391, %s390, 63
      %s393 = smul.addr %s392, 4
      %s394 = scalar_lea.vmem %s1, %s393
      %s395 = smul.u32 32, %s22
      %s396 = smul.u32 32, %s22
      %p397 = scmp.lt.s32.totalorder %s396, 63
      %s398 = scalar_select %p397, %s396, 63
      %s399 = smul.addr %s398, 8
      %s400 = scalar_lea.vmem %s2, %s399
      %s401 = smul.u32 32, %s22
      %s402 = smul.u32 32, %s22
      %p403 = scmp.lt.s32.totalorder %s402, 63
      %s404 = scalar_select %p403, %s402, 63
      %s405 = smul.addr %s404, 8
      %s406 = scalar_lea.vmem %s10, %s405
      %s407 = smul.u32 32, %s22
      %v409 = vld [vmem:[%s400] sm:$0xff]
      %v410 = vld [vmem:[%s400 + $0x8] sm:$0xff]
      %v411 = vld [vmem:[%s400 + $0x10] sm:$0xff]
      %v412 = vld [vmem:[%s400 + $0x18] sm:$0xff]
      %v413 = vld [vmem:[%s400 + $0x20] sm:$0xff]
      %v414 = vld [vmem:[%s400 + $0x28] sm:$0xff]
      %v415 = vld [vmem:[%s400 + $0x30] sm:$0xff]
      %v416 = vld [vmem:[%s400 + $0x38] sm:$0xff]
      %v417 = vld [vmem:[%s400 + $0x40] sm:$0xff]
      %v418 = vld [vmem:[%s400 + $0x48] sm:$0xff]
      %v419 = vld [vmem:[%s400 + $0x50] sm:$0xff]
      %v420 = vld [vmem:[%s400 + $0x58] sm:$0xff]
      %v421 = vld [vmem:[%s400 + $0x60] sm:$0xff]
      %v422 = vld [vmem:[%s400 + $0x68] sm:$0xff]
      %v423 = vld [vmem:[%s400 + $0x70] sm:$0xff]
      %v424 = vld [vmem:[%s400 + $0x78] sm:$0xff]
      %v425 = vld [vmem:[%s400 + $0x80] sm:$0xff]
      %v426 = vld [vmem:[%s400 + $0x88] sm:$0xff]
      %v427 = vld [vmem:[%s400 + $0x90] sm:$0xff]
      %v428 = vld [vmem:[%s400 + $0x98] sm:$0xff]
      %v429 = vld [vmem:[%s400 + $0xa0] sm:$0xff]
      %v430 = vld [vmem:[%s400 + $0xa8] sm:$0xff]
      %v431 = vld [vmem:[%s400 + $0xb0] sm:$0xff]
      %v432 = vld [vmem:[%s400 + $0xb8] sm:$0xff]
      %v433 = vld [vmem:[%s400 + $0xc0] sm:$0xff]
      %v434 = vld [vmem:[%s400 + $0xc8] sm:$0xff]
      %v435 = vld [vmem:[%s400 + $0xd0] sm:$0xff]
      %v436 = vld [vmem:[%s400 + $0xd8] sm:$0xff]
      %v437 = vld [vmem:[%s400 + $0xe0] sm:$0xff]
      %v438 = vld [vmem:[%s400 + $0xe8] sm:$0xff]
      %v439 = vld [vmem:[%s400 + $0xf0] sm:$0xff]
      %v440 = vld [vmem:[%s400 + $0xf8] sm:$0xff]
      %v441 = vld [vmem:[%s3] sm:$0x1]
      %v443 = vlaneseq
      %v444 = vshrl.u32 %v443, 7
      %v445 = vsub.s32 0, %v444
      %v446 = vrot.slane %v441, %v445
      %v448 = vmul.f32 %v409, %v446
      %v449 = vmul.f32 %v410, %v446
      %v450 = vmul.f32 %v411, %v446
      %v451 = vmul.f32 %v412, %v446
      %v452 = vmul.f32 %v413, %v446
      %v453 = vmul.f32 %v414, %v446
      %v454 = vmul.f32 %v415, %v446
      %v455 = vmul.f32 %v416, %v446
      %v456 = vmul.f32 %v417, %v446
      %v457 = vmul.f32 %v418, %v446
      %v458 = vmul.f32 %v419, %v446
      %v459 = vmul.f32 %v420, %v446
      %v460 = vmul.f32 %v421, %v446
      %v461 = vmul.f32 %v422, %v446
      %v462 = vmul.f32 %v423, %v446
      %v463 = vmul.f32 %v424, %v446
      %v464 = vmul.f32 %v425, %v446
      %v465 = vmul.f32 %v426, %v446
      %v466 = vmul.f32 %v427, %v446
      %v467 = vmul.f32 %v428, %v446
      %v468 = vmul.f32 %v429, %v446
      %v469 = vmul.f32 %v430, %v446
      %v470 = vmul.f32 %v431, %v446
      %v471 = vmul.f32 %v432, %v446
      %v472 = vmul.f32 %v433, %v446
      %v473 = vmul.f32 %v434, %v446
      %v474 = vmul.f32 %v435, %v446
      %v475 = vmul.f32 %v436, %v446
      %v476 = vmul.f32 %v437, %v446
      %v477 = vmul.f32 %v438, %v446
      %v478 = vmul.f32 %v439, %v446
      %v479 = vmul.f32 %v440, %v446
      %v480 = vld [vmem:[%s4] sm:$0x1]
      %v482 = vlaneseq
      %v483 = vshrl.u32 %v482, 7
      %v484 = vsub.s32 0, %v483
      %v485 = vrot.slane %v480, %v484
      %v487 = vadd.f32 %v448, %v485
      %v488 = vadd.f32 %v449, %v485
      %v489 = vadd.f32 %v450, %v485
      %v490 = vadd.f32 %v451, %v485
      %v491 = vadd.f32 %v452, %v485
      %v492 = vadd.f32 %v453, %v485
      %v493 = vadd.f32 %v454, %v485
      %v494 = vadd.f32 %v455, %v485
      %v495 = vadd.f32 %v456, %v485
      %v496 = vadd.f32 %v457, %v485
      %v497 = vadd.f32 %v458, %v485
      %v498 = vadd.f32 %v459, %v485
      %v499 = vadd.f32 %v460, %v485
      %v500 = vadd.f32 %v461, %v485
      %v501 = vadd.f32 %v462, %v485
      %v502 = vadd.f32 %v463, %v485
      %v503 = vadd.f32 %v464, %v485
      %v504 = vadd.f32 %v465, %v485
      %v505 = vadd.f32 %v466, %v485
      %v506 = vadd.f32 %v467, %v485
      %v507 = vadd.f32 %v468, %v485
      %v508 = vadd.f32 %v469, %v485
      %v509 = vadd.f32 %v470, %v485
      %v510 = vadd.f32 %v471, %v485
      %v511 = vadd.f32 %v472, %v485
      %v512 = vadd.f32 %v473, %v485
      %v513 = vadd.f32 %v474, %v485
      %v514 = vadd.f32 %v475, %v485
      %v515 = vadd.f32 %v476, %v485
      %v516 = vadd.f32 %v477, %v485
      %v517 = vadd.f32 %v478, %v485
      %v518 = vadd.f32 %v479, %v485
      %s519 = sld [smem:[#allocation2]]
      %vm520 = vcmp.ge.f32.partialorder %v487, 0.0
      %vm521 = vcmp.ge.f32.partialorder %v488, 0.0
      %vm522 = vcmp.ge.f32.partialorder %v489, 0.0
      %vm523 = vcmp.ge.f32.partialorder %v490, 0.0
      %vm524 = vcmp.ge.f32.partialorder %v491, 0.0
      %vm525 = vcmp.ge.f32.partialorder %v492, 0.0
      %vm526 = vcmp.ge.f32.partialorder %v493, 0.0
      %vm527 = vcmp.ge.f32.partialorder %v494, 0.0
      %vm528 = vcmp.ge.f32.partialorder %v495, 0.0
      %vm529 = vcmp.ge.f32.partialorder %v496, 0.0
      %vm530 = vcmp.ge.f32.partialorder %v497, 0.0
      %vm531 = vcmp.ge.f32.partialorder %v498, 0.0
      %vm532 = vcmp.ge.f32.partialorder %v499, 0.0
      %vm533 = vcmp.ge.f32.partialorder %v500, 0.0
      %vm534 = vcmp.ge.f32.partialorder %v501, 0.0
      %vm535 = vcmp.ge.f32.partialorder %v502, 0.0
      %vm536 = vcmp.ge.f32.partialorder %v503, 0.0
      %vm537 = vcmp.ge.f32.partialorder %v504, 0.0
      %vm538 = vcmp.ge.f32.partialorder %v505, 0.0
      %vm539 = vcmp.ge.f32.partialorder %v506, 0.0
      %vm540 = vcmp.ge.f32.partialorder %v507, 0.0
      %vm541 = vcmp.ge.f32.partialorder %v508, 0.0
      %vm542 = vcmp.ge.f32.partialorder %v509, 0.0
      %vm543 = vcmp.ge.f32.partialorder %v510, 0.0
      %vm544 = vcmp.ge.f32.partialorder %v511, 0.0
      %vm545 = vcmp.ge.f32.partialorder %v512, 0.0
      %vm546 = vcmp.ge.f32.partialorder %v513, 0.0
      %vm547 = vcmp.ge.f32.partialorder %v514, 0.0
      %vm548 = vcmp.ge.f32.partialorder %v515, 0.0
      %vm549 = vcmp.ge.f32.partialorder %v516, 0.0
      %vm550 = vcmp.ge.f32.partialorder %v517, 0.0
      %vm551 = vcmp.ge.f32.partialorder %v518, 0.0
      %v552 = vstv %s519
      %v553 = vmul.f32 %v552, %v487
      %v554 = vmul.f32 %v552, %v488
      %v555 = vmul.f32 %v552, %v489
      %v556 = vmul.f32 %v552, %v490
      %v557 = vmul.f32 %v552, %v491
      %v558 = vmul.f32 %v552, %v492
      %v559 = vmul.f32 %v552, %v493
      %v560 = vmul.f32 %v552, %v494
      %v561 = vmul.f32 %v552, %v495
      %v562 = vmul.f32 %v552, %v496
      %v563 = vmul.f32 %v552, %v497
      %v564 = vmul.f32 %v552, %v498
      %v565 = vmul.f32 %v552, %v499
      %v566 = vmul.f32 %v552, %v500
      %v567 = vmul.f32 %v552, %v501
      %v568 = vmul.f32 %v552, %v502
      %v569 = vmul.f32 %v552, %v503
      %v570 = vmul.f32 %v552, %v504
      %v571 = vmul.f32 %v552, %v505
      %v572 = vmul.f32 %v552, %v506
      %v573 = vmul.f32 %v552, %v507
      %v574 = vmul.f32 %v552, %v508
      %v575 = vmul.f32 %v552, %v509
      %v576 = vmul.f32 %v552, %v510
      %v577 = vmul.f32 %v552, %v511
      %v578 = vmul.f32 %v552, %v512
      %v579 = vmul.f32 %v552, %v513
      %v580 = vmul.f32 %v552, %v514
      %v581 = vmul.f32 %v552, %v515
      %v582 = vmul.f32 %v552, %v516
      %v583 = vmul.f32 %v552, %v517
      %v584 = vmul.f32 %v552, %v518
      %v585 = vsel %vm520, %v487, %v553
      %v586 = vsel %vm521, %v488, %v554
      %v587 = vsel %vm522, %v489, %v555
      %v588 = vsel %vm523, %v490, %v556
      %v589 = vsel %vm524, %v491, %v557
      %v590 = vsel %vm525, %v492, %v558
      %v591 = vsel %vm526, %v493, %v559
      %v592 = vsel %vm527, %v494, %v560
      %v593 = vsel %vm528, %v495, %v561
      %v594 = vsel %vm529, %v496, %v562
      %v595 = vsel %vm530, %v497, %v563
      %v596 = vsel %vm531, %v498, %v564
      %v597 = vsel %vm532, %v499, %v565
      %v598 = vsel %vm533, %v500, %v566
      %v599 = vsel %vm534, %v501, %v567
      %v600 = vsel %vm535, %v502, %v568
      %v601 = vsel %vm536, %v503, %v569
      %v602 = vsel %vm537, %v504, %v570
      %v603 = vsel %vm538, %v505, %v571
      %v604 = vsel %vm539, %v506, %v572
      %v605 = vsel %vm540, %v507, %v573
      %v606 = vsel %vm541, %v508, %v574
      %v607 = vsel %vm542, %v509, %v575
      %v608 = vsel %vm543, %v510, %v576
      %v609 = vsel %vm544, %v511, %v577
      %v610 = vsel %vm545, %v512, %v578
      %v611 = vsel %vm546, %v513, %v579
      %v612 = vsel %vm547, %v514, %v580
      %v613 = vsel %vm548, %v515, %v581
      %v614 = vsel %vm549, %v516, %v582
      %v615 = vsel %vm550, %v517, %v583
      %v616 = vsel %vm551, %v518, %v584
      %v617 = vld [vmem:[%s388] sm:$0xf]
      %v618 = vld [vmem:[%s388 + $0x4] sm:$0xf]
      %v619 = vld [vmem:[%s388 + $0x8] sm:$0xf]
      %v620 = vld [vmem:[%s388 + $0xc] sm:$0xf]
      %v621 = vld [vmem:[%s388 + $0x10] sm:$0xf]
      %v622 = vld [vmem:[%s388 + $0x14] sm:$0xf]
      %v623 = vld [vmem:[%s388 + $0x18] sm:$0xf]
      %v624 = vld [vmem:[%s388 + $0x1c] sm:$0xf]
      %v625 = vld [vmem:[%s388 + $0x20] sm:$0xf]
      %v626 = vld [vmem:[%s388 + $0x24] sm:$0xf]
      %v627 = vld [vmem:[%s388 + $0x28] sm:$0xf]
      %v628 = vld [vmem:[%s388 + $0x2c] sm:$0xf]
      %v629 = vld [vmem:[%s388 + $0x30] sm:$0xf]
      %v630 = vld [vmem:[%s388 + $0x34] sm:$0xf]
      %v631 = vld [vmem:[%s388 + $0x38] sm:$0xf]
      %v632 = vld [vmem:[%s388 + $0x3c] sm:$0xf]
      %v633 = vld [vmem:[%s388 + $0x40] sm:$0xf]
      %v634 = vld [vmem:[%s388 + $0x44] sm:$0xf]
      %v635 = vld [vmem:[%s388 + $0x48] sm:$0xf]
      %v636 = vld [vmem:[%s388 + $0x4c] sm:$0xf]
      %v637 = vld [vmem:[%s388 + $0x50] sm:$0xf]
      %v638 = vld [vmem:[%s388 + $0x54] sm:$0xf]
      %v639 = vld [vmem:[%s388 + $0x58] sm:$0xf]
      %v640 = vld [vmem:[%s388 + $0x5c] sm:$0xf]
      %v641 = vld [vmem:[%s388 + $0x60] sm:$0xf]
      %v642 = vld [vmem:[%s388 + $0x64] sm:$0xf]
      %v643 = vld [vmem:[%s388 + $0x68] sm:$0xf]
      %v644 = vld [vmem:[%s388 + $0x6c] sm:$0xf]
      %v645 = vld [vmem:[%s388 + $0x70] sm:$0xf]
      %v646 = vld [vmem:[%s388 + $0x74] sm:$0xf]
      %v647 = vld [vmem:[%s388 + $0x78] sm:$0xf]
      %v648 = vld [vmem:[%s388 + $0x7c] sm:$0xf]
      %v649 = vld [vmem:[%s6] sm:$0x3]
      %v650 = vld [vmem:[%s394] sm:$0xf]
      %v651 = vld [vmem:[%s394 + $0x4] sm:$0xf]
      %v652 = vld [vmem:[%s394 + $0x8] sm:$0xf]
      %v653 = vld [vmem:[%s394 + $0xc] sm:$0xf]
      %v654 = vld [vmem:[%s394 + $0x10] sm:$0xf]
      %v655 = vld [vmem:[%s394 + $0x14] sm:$0xf]
      %v656 = vld [vmem:[%s394 + $0x18] sm:$0xf]
      %v657 = vld [vmem:[%s394 + $0x1c] sm:$0xf]
      %v658 = vld [vmem:[%s394 + $0x20] sm:$0xf]
      %v659 = vld [vmem:[%s394 + $0x24] sm:$0xf]
      %v660 = vld [vmem:[%s394 + $0x28] sm:$0xf]
      %v661 = vld [vmem:[%s394 + $0x2c] sm:$0xf]
      %v662 = vld [vmem:[%s394 + $0x30] sm:$0xf]
      %v663 = vld [vmem:[%s394 + $0x34] sm:$0xf]
      %v664 = vld [vmem:[%s394 + $0x38] sm:$0xf]
      %v665 = vld [vmem:[%s394 + $0x3c] sm:$0xf]
      %v666 = vld [vmem:[%s394 + $0x40] sm:$0xf]
      %v667 = vld [vmem:[%s394 + $0x44] sm:$0xf]
      %v668 = vld [vmem:[%s394 + $0x48] sm:$0xf]
      %v669 = vld [vmem:[%s394 + $0x4c] sm:$0xf]
      %v670 = vld [vmem:[%s394 + $0x50] sm:$0xf]
      %v671 = vld [vmem:[%s394 + $0x54] sm:$0xf]
      %v672 = vld [vmem:[%s394 + $0x58] sm:$0xf]
      %v673 = vld [vmem:[%s394 + $0x5c] sm:$0xf]
      %v674 = vld [vmem:[%s394 + $0x60] sm:$0xf]
      %v675 = vld [vmem:[%s394 + $0x64] sm:$0xf]
      %v676 = vld [vmem:[%s394 + $0x68] sm:$0xf]
      %v677 = vld [vmem:[%s394 + $0x6c] sm:$0xf]
      %v678 = vld [vmem:[%s394 + $0x70] sm:$0xf]
      %v679 = vld [vmem:[%s394 + $0x74] sm:$0xf]
      %v680 = vld [vmem:[%s394 + $0x78] sm:$0xf]
      %v681 = vld [vmem:[%s394 + $0x7c] sm:$0xf]
      %v682 = vld [vmem:[%s7] sm:$0xf]
      %v715 = vunpack.c.l.b16 %v650
      %v716 = vunpack.c.l.b16 %v651
      %v717 = vunpack.c.l.b16 %v652
      %v718 = vunpack.c.l.b16 %v653
      %v719 = vunpack.c.l.b16 %v654
      %v720 = vunpack.c.l.b16 %v655
      %v721 = vunpack.c.l.b16 %v656
      %v722 = vunpack.c.l.b16 %v657
      %v723 = vunpack.c.l.b16 %v658
      %v724 = vunpack.c.l.b16 %v659
      %v725 = vunpack.c.l.b16 %v660
      %v726 = vunpack.c.l.b16 %v661
      %v727 = vunpack.c.l.b16 %v662
      %v728 = vunpack.c.l.b16 %v663
      %v729 = vunpack.c.l.b16 %v664
      %v730 = vunpack.c.l.b16 %v665
      %v731 = vunpack.c.l.b16 %v666
      %v732 = vunpack.c.l.b16 %v667
      %v733 = vunpack.c.l.b16 %v668
      %v734 = vunpack.c.l.b16 %v669
      %v735 = vunpack.c.l.b16 %v670
      %v736 = vunpack.c.l.b16 %v671
      %v737 = vunpack.c.l.b16 %v672
      %v738 = vunpack.c.l.b16 %v673
      %v739 = vunpack.c.l.b16 %v674
      %v740 = vunpack.c.l.b16 %v675
      %v741 = vunpack.c.l.b16 %v676
      %v742 = vunpack.c.l.b16 %v677
      %v743 = vunpack.c.l.b16 %v678
      %v744 = vunpack.c.l.b16 %v679
      %v745 = vunpack.c.l.b16 %v680
      %v746 = vunpack.c.l.b16 %v681
      %v747 = vpack.c.b16 %v716, %v715
      %v748 = vpack.c.b16 %v718, %v717
      %v749 = vpack.c.b16 %v720, %v719
      %v750 = vpack.c.b16 %v722, %v721
      %v751 = vpack.c.b16 %v724, %v723
      %v752 = vpack.c.b16 %v726, %v725
      %v753 = vpack.c.b16 %v728, %v727
      %v754 = vpack.c.b16 %v730, %v729
      %v755 = vpack.c.b16 %v732, %v731
      %v756 = vpack.c.b16 %v734, %v733
      %v757 = vpack.c.b16 %v736, %v735
      %v758 = vpack.c.b16 %v738, %v737
      %v759 = vpack.c.b16 %v740, %v739
      %v760 = vpack.c.b16 %v742, %v741
      %v761 = vpack.c.b16 %v744, %v743
      %v762 = vpack.c.b16 %v746, %v745
      %vm763 = vcmask 64512
      %v765 = vsel %vm763, %v747, 0
      %v768 = vsel %vm763, %v748, 0
      %v771 = vsel %vm763, %v749, 0
      %v774 = vsel %vm763, %v750, 0
      %v777 = vsel %vm763, %v751, 0
      %v780 = vsel %vm763, %v752, 0
      %v783 = vsel %vm763, %v753, 0
      %v786 = vsel %vm763, %v754, 0
      %v789 = vsel %vm763, %v755, 0
      %v792 = vsel %vm763, %v756, 0
      %v795 = vsel %vm763, %v757, 0
      %v798 = vsel %vm763, %v758, 0
      %v801 = vsel %vm763, %v759, 0
      %v804 = vsel %vm763, %v760, 0
      %v807 = vsel %vm763, %v761, 0
      %v810 = vsel %vm763, %v762, 0
      %vm812 = vcmask 1043456
      %v814 = vsel %vm812, %v682, 0
      %816 = vmatprep.subr.bf16.mxu0 0
      %817 = vmatpush1.bf16.msra.mxu0 %v814
      %818 = vmatprep.subr.bf16.mxu0 0
      %819 = vmatpush1.bf16.msra.mxu0 0
      %820 = vmatprep.subr.bf16.mxu0 0
      %821 = vmatpush1.bf16.msra.mxu0 0
      %822 = vmatprep.subr.bf16.mxu0 0
      %823 = vmatpush1.bf16.msra.mxu0 0
      %824 = vmatprep.subr.bf16.mxu0 0
      %825 = vmatpush1.bf16.msra.mxu0 0
      %826 = vmatprep.subr.bf16.mxu0 0
      %827 = vmatpush1.bf16.msra.mxu0 0
      %828 = vmatprep.subr.bf16.mxu0 0
      %829 = vmatpush1.bf16.msra.mxu0 0
      %830 = vmatprep.subr.bf16.mxu0 0
      %831 = vmatpush1.bf16.msra.mxu0 0
      %832 = vmatprep.subr.bf16.mxu0 0
      %833 = vmatpush1.bf16.msra.mxu0 0
      %834 = vmatprep.subr.bf16.mxu0 0
      %835 = vmatpush1.bf16.msra.mxu0 0
      %836 = vmatprep.subr.bf16.mxu0 0
      %837 = vmatpush1.bf16.msra.mxu0 0
      %838 = vmatprep.subr.bf16.mxu0 0
      %839 = vmatpush1.bf16.msra.mxu0 0
      %840 = vmatprep.subr.bf16.mxu0 0
      %841 = vmatpush1.bf16.msra.mxu0 0
      %842 = vmatprep.subr.bf16.mxu0 0
      %843 = vmatpush1.bf16.msra.mxu0 0
      %844 = vmatprep.subr.bf16.mxu0 0
      %845 = vmatpush1.bf16.msra.mxu0 0
      %846 = vmatprep.subr.bf16.mxu0 0
      %847 = vmatpush1.bf16.msra.mxu0 0
      %848 = vmatprep.mubr.bf16.mxu0 0
      %849 = vmatmul.mubr.bf16.gmra.mrb[0].mxu0 %v765
      %v850 = vpop.f32.mrb[0].mxu0
      %v851 = vadd.f32 0.0, %v850
      %v852 = vpop.f32.mrb[0].mxu0
      %v853 = vpop.f32.mrb[0].mxu0
      %v854 = vadd.f32 0.0, %v853
      %v855 = vpop.f32.mrb[0].mxu0
      %856 = vmatprep.mubr.bf16.mxu0 0
      %857 = vmatmul.mubr.bf16.gmra.mrb[0].mxu0 %v768
      %v858 = vpop.f32.mrb[0].mxu0
      %v859 = vadd.f32 0.0, %v858
      %v860 = vpop.f32.mrb[0].mxu0
      %v861 = vpop.f32.mrb[0].mxu0
      %v862 = vadd.f32 0.0, %v861
      %v863 = vpop.f32.mrb[0].mxu0
      %864 = vmatprep.mubr.bf16.mxu0 0
      %865 = vmatmul.mubr.bf16.gmra.mrb[0].mxu0 %v771
      %v866 = vpop.f32.mrb[0].mxu0
      %v867 = vadd.f32 0.0, %v866
      %v868 = vpop.f32.mrb[0].mxu0
      %v869 = vpop.f32.mrb[0].mxu0
      %v870 = vadd.f32 0.0, %v869
      %v871 = vpop.f32.mrb[0].mxu0
      %872 = vmatprep.mubr.bf16.mxu0 0
      %873 = vmatmul.mubr.bf16.gmra.mrb[0].mxu0 %v774
      %v874 = vpop.f32.mrb[0].mxu0
      %v875 = vadd.f32 0.0, %v874
      %v876 = vpop.f32.mrb[0].mxu0
      %v877 = vpop.f32.mrb[0].mxu0
      %v878 = vadd.f32 0.0, %v877
      %v879 = vpop.f32.mrb[0].mxu0
      %880 = vmatprep.mubr.bf16.mxu0 0
      %881 = vmatmul.mubr.bf16.gmra.mrb[0].mxu0 %v777
      %v882 = vpop.f32.mrb[0].mxu0
      %v883 = vadd.f32 0.0, %v882
      %v884 = vpop.f32.mrb[0].mxu0
      %v885 = vpop.f32.mrb[0].mxu0
      %v886 = vadd.f32 0.0, %v885
      %v887 = vpop.f32.mrb[0].mxu0
      %888 = vmatprep.mubr.bf16.mxu0 0
      %889 = vmatmul.mubr.bf16.gmra.mrb[0].mxu0 %v780
      %v890 = vpop.f32.mrb[0].mxu0
      %v891 = vadd.f32 0.0, %v890
      %v892 = vpop.f32.mrb[0].mxu0
      %v893 = vpop.f32.mrb[0].mxu0
      %v894 = vadd.f32 0.0, %v893
      %v895 = vpop.f32.mrb[0].mxu0
      %896 = vmatprep.mubr.bf16.mxu0 0
      %897 = vmatmul.mubr.bf16.gmra.mrb[0].mxu0 %v783
      %v898 = vpop.f32.mrb[0].mxu0
      %v899 = vadd.f32 0.0, %v898
      %v900 = vpop.f32.mrb[0].mxu0
      %v901 = vpop.f32.mrb[0].mxu0
      %v902 = vadd.f32 0.0, %v901
      %v903 = vpop.f32.mrb[0].mxu0
      %904 = vmatprep.mubr.bf16.mxu0 0
      %905 = vmatmul.mubr.bf16.gmra.mrb[0].mxu0 %v786
      %v906 = vpop.f32.mrb[0].mxu0
      %v907 = vadd.f32 0.0, %v906
      %v908 = vpop.f32.mrb[0].mxu0
      %v909 = vpop.f32.mrb[0].mxu0
      %v910 = vadd.f32 0.0, %v909
      %v911 = vpop.f32.mrb[0].mxu0
      %912 = vmatprep.mubr.bf16.mxu0 0
      %913 = vmatmul.mubr.bf16.gmra.mrb[0].mxu0 %v789
      %v914 = vpop.f32.mrb[0].mxu0
      %v915 = vadd.f32 0.0, %v914
      %v916 = vpop.f32.mrb[0].mxu0
      %v917 = vpop.f32.mrb[0].mxu0
      %v918 = vadd.f32 0.0, %v917
      %v919 = vpop.f32.mrb[0].mxu0
      %920 = vmatprep.mubr.bf16.mxu0 0
      %921 = vmatmul.mubr.bf16.gmra.mrb[0].mxu0 %v792
      %v922 = vpop.f32.mrb[0].mxu0
      %v923 = vadd.f32 0.0, %v922
      %v924 = vpop.f32.mrb[0].mxu0
      %v925 = vpop.f32.mrb[0].mxu0
      %v926 = vadd.f32 0.0, %v925
      %v927 = vpop.f32.mrb[0].mxu0
      %928 = vmatprep.mubr.bf16.mxu0 0
      %929 = vmatmul.mubr.bf16.gmra.mrb[0].mxu0 %v795
      %v930 = vpop.f32.mrb[0].mxu0
      %v931 = vadd.f32 0.0, %v930
      %v932 = vpop.f32.mrb[0].mxu0
      %v933 = vpop.f32.mrb[0].mxu0
      %v934 = vadd.f32 0.0, %v933
      %v935 = vpop.f32.mrb[0].mxu0
      %936 = vmatprep.mubr.bf16.mxu0 0
      %937 = vmatmul.mubr.bf16.gmra.mrb[0].mxu0 %v798
      %v938 = vpop.f32.mrb[0].mxu0
      %v939 = vadd.f32 0.0, %v938
      %v940 = vpop.f32.mrb[0].mxu0
      %v941 = vpop.f32.mrb[0].mxu0
      %v942 = vadd.f32 0.0, %v941
      %v943 = vpop.f32.mrb[0].mxu0
      %944 = vmatprep.mubr.bf16.mxu0 0
      %945 = vmatmul.mubr.bf16.gmra.mrb[0].mxu0 %v801
      %v946 = vpop.f32.mrb[0].mxu0
      %v947 = vadd.f32 0.0, %v946
      %v948 = vpop.f32.mrb[0].mxu0
      %v949 = vpop.f32.mrb[0].mxu0
      %v950 = vadd.f32 0.0, %v949
      %v951 = vpop.f32.mrb[0].mxu0
      %952 = vmatprep.mubr.bf16.mxu0 0
      %953 = vmatmul.mubr.bf16.gmra.mrb[0].mxu0 %v804
      %v954 = vpop.f32.mrb[0].mxu0
      %v955 = vadd.f32 0.0, %v954
      %v956 = vpop.f32.mrb[0].mxu0
      %v957 = vpop.f32.mrb[0].mxu0
      %v958 = vadd.f32 0.0, %v957
      %v959 = vpop.f32.mrb[0].mxu0
      %960 = vmatprep.mubr.bf16.mxu0 0
      %961 = vmatmul.mubr.bf16.gmra.mrb[0].mxu0 %v807
      %v962 = vpop.f32.mrb[0].mxu0
      %v963 = vadd.f32 0.0, %v962
      %v964 = vpop.f32.mrb[0].mxu0
      %v965 = vpop.f32.mrb[0].mxu0
      %v966 = vadd.f32 0.0, %v965
      %v967 = vpop.f32.mrb[0].mxu0
      %968 = vmatprep.mubr.bf16.mxu0 0
      %969 = vmatmul.mubr.bf16.gmra.mrb[0].mxu0 %v810
      %v970 = vpop.f32.mrb[0].mxu0
      %v971 = vadd.f32 0.0, %v970
      %v972 = vpop.f32.mrb[0].mxu0
      %v973 = vpop.f32.mrb[0].mxu0
      %v974 = vadd.f32 0.0, %v973
      %v975 = vpop.f32.mrb[0].mxu0
      %976 = vdwg.mxu0
      %v1009 = vunpack.c.l.b16 %v617
      %v1010 = vunpack.c.l.b16 %v618
      %v1011 = vunpack.c.l.b16 %v619
      %v1012 = vunpack.c.l.b16 %v620
      %v1013 = vunpack.c.l.b16 %v621
      %v1014 = vunpack.c.l.b16 %v622
      %v1015 = vunpack.c.l.b16 %v623
      %v1016 = vunpack.c.l.b16 %v624
      %v1017 = vunpack.c.l.b16 %v625
      %v1018 = vunpack.c.l.b16 %v626
      %v1019 = vunpack.c.l.b16 %v627
      %v1020 = vunpack.c.l.b16 %v628
      %v1021 = vunpack.c.l.b16 %v629
      %v1022 = vunpack.c.l.b16 %v630
      %v1023 = vunpack.c.l.b16 %v631
      %v1024 = vunpack.c.l.b16 %v632
      %v1025 = vunpack.c.l.b16 %v633
      %v1026 = vunpack.c.l.b16 %v634
      %v1027 = vunpack.c.l.b16 %v635
      %v1028 = vunpack.c.l.b16 %v636
      %v1029 = vunpack.c.l.b16 %v637
      %v1030 = vunpack.c.l.b16 %v638
      %v1031 = vunpack.c.l.b16 %v639
      %v1032 = vunpack.c.l.b16 %v640
      %v1033 = vunpack.c.l.b16 %v641
      %v1034 = vunpack.c.l.b16 %v642
      %v1035 = vunpack.c.l.b16 %v643
      %v1036 = vunpack.c.l.b16 %v644
      %v1037 = vunpack.c.l.b16 %v645
      %v1038 = vunpack.c.l.b16 %v646
      %v1039 = vunpack.c.l.b16 %v647
      %v1040 = vunpack.c.l.b16 %v648
      %v1041 = vpack.c.b16 %v1010, %v1009
      %v1042 = vpack.c.b16 %v1012, %v1011
      %v1043 = vpack.c.b16 %v1014, %v1013
      %v1044 = vpack.c.b16 %v1016, %v1015
      %v1045 = vpack.c.b16 %v1018, %v1017
      %v1046 = vpack.c.b16 %v1020, %v1019
      %v1047 = vpack.c.b16 %v1022, %v1021
      %v1048 = vpack.c.b16 %v1024, %v1023
      %v1049 = vpack.c.b16 %v1026, %v1025
      %v1050 = vpack.c.b16 %v1028, %v1027
      %v1051 = vpack.c.b16 %v1030, %v1029
      %v1052 = vpack.c.b16 %v1032, %v1031
      %v1053 = vpack.c.b16 %v1034, %v1033
      %v1054 = vpack.c.b16 %v1036, %v1035
      %v1055 = vpack.c.b16 %v1038, %v1037
      %v1056 = vpack.c.b16 %v1040, %v1039
      %vm1057 = vcmask 31744
      %v1059 = vsel %vm1057, %v1041, 0
      %v1062 = vsel %vm1057, %v1042, 0
      %v1065 = vsel %vm1057, %v1043, 0
      %v1068 = vsel %vm1057, %v1044, 0
      %v1071 = vsel %vm1057, %v1045, 0
      %v1074 = vsel %vm1057, %v1046, 0
      %v1077 = vsel %vm1057, %v1047, 0
      %v1080 = vsel %vm1057, %v1048, 0
      %v1083 = vsel %vm1057, %v1049, 0
      %v1086 = vsel %vm1057, %v1050, 0
      %v1089 = vsel %vm1057, %v1051, 0
      %v1092 = vsel %vm1057, %v1052, 0
      %v1095 = vsel %vm1057, %v1053, 0
      %v1098 = vsel %vm1057, %v1054, 0
      %v1101 = vsel %vm1057, %v1055, 0
      %v1104 = vsel %vm1057, %v1056, 0
      %vm1106 = vcmask 1041408
      %v1108 = vsel %vm1106, %v649, 0
      %1110 = vmatprep.subr.bf16.mxu0 0
      %1111 = vmatpush1.bf16.msra.mxu0 %v1108
      %1112 = vmatprep.subr.bf16.mxu0 0
      %1113 = vmatpush1.bf16.msra.mxu0 0
      %1114 = vmatprep.subr.bf16.mxu0 0
      %1115 = vmatpush1.bf16.msra.mxu0 0
      %1116 = vmatprep.subr.bf16.mxu0 0
      %1117 = vmatpush1.bf16.msra.mxu0 0
      %1118 = vmatprep.subr.bf16.mxu0 0
      %1119 = vmatpush1.bf16.msra.mxu0 0
      %1120 = vmatprep.subr.bf16.mxu0 0
      %1121 = vmatpush1.bf16.msra.mxu0 0
      %1122 = vmatprep.subr.bf16.mxu0 0
      %1123 = vmatpush1.bf16.msra.mxu0 0
      %1124 = vmatprep.subr.bf16.mxu0 0
      %1125 = vmatpush1.bf16.msra.mxu0 0
      %1126 = vmatprep.subr.bf16.mxu0 0
      %1127 = vmatpush1.bf16.msra.mxu0 0
      %1128 = vmatprep.subr.bf16.mxu0 0
      %1129 = vmatpush1.bf16.msra.mxu0 0
      %1130 = vmatprep.subr.bf16.mxu0 0
      %1131 = vmatpush1.bf16.msra.mxu0 0
      %1132 = vmatprep.subr.bf16.mxu0 0
      %1133 = vmatpush1.bf16.msra.mxu0 0
      %1134 = vmatprep.subr.bf16.mxu0 0
      %1135 = vmatpush1.bf16.msra.mxu0 0
      %1136 = vmatprep.subr.bf16.mxu0 0
      %1137 = vmatpush1.bf16.msra.mxu0 0
      %1138 = vmatprep.subr.bf16.mxu0 0
      %1139 = vmatpush1.bf16.msra.mxu0 0
      %1140 = vmatprep.subr.bf16.mxu0 0
      %1141 = vmatpush1.bf16.msra.mxu0 0
      %1142 = vmatprep.mubr.bf16.mxu0 0
      %1143 = vmatmul.mubr.bf16.gmra.mrb[0].mxu0 %v1059
      %v1144 = vpop.f32.mrb[0].mxu0
      %v1145 = vadd.f32 %v851, %v1144
      %v1146 = vpop.f32.mrb[0].mxu0
      %v1147 = vpop.f32.mrb[0].mxu0
      %v1148 = vadd.f32 %v854, %v1147
      %v1149 = vpop.f32.mrb[0].mxu0
      %1150 = vmatprep.mubr.bf16.mxu0 0
      %1151 = vmatmul.mubr.bf16.gmra.mrb[0].mxu0 %v1062
      %v1152 = vpop.f32.mrb[0].mxu0
      %v1153 = vadd.f32 %v859, %v1152
      %v1154 = vpop.f32.mrb[0].mxu0
      %v1155 = vpop.f32.mrb[0].mxu0
      %v1156 = vadd.f32 %v862, %v1155
      %v1157 = vpop.f32.mrb[0].mxu0
      %1158 = vmatprep.mubr.bf16.mxu0 0
      %1159 = vmatmul.mubr.bf16.gmra.mrb[0].mxu0 %v1065
      %v1160 = vpop.f32.mrb[0].mxu0
      %v1161 = vadd.f32 %v867, %v1160
      %v1162 = vpop.f32.mrb[0].mxu0
      %v1163 = vpop.f32.mrb[0].mxu0
      %v1164 = vadd.f32 %v870, %v1163
      %v1165 = vpop.f32.mrb[0].mxu0
      %1166 = vmatprep.mubr.bf16.mxu0 0
      %1167 = vmatmul.mubr.bf16.gmra.mrb[0].mxu0 %v1068
      %v1168 = vpop.f32.mrb[0].mxu0
      %v1169 = vadd.f32 %v875, %v1168
      %v1170 = vpop.f32.mrb[0].mxu0
      %v1171 = vpop.f32.mrb[0].mxu0
      %v1172 = vadd.f32 %v878, %v1171
      %v1173 = vpop.f32.mrb[0].mxu0
      %1174 = vmatprep.mubr.bf16.mxu0 0
      %1175 = vmatmul.mubr.bf16.gmra.mrb[0].mxu0 %v1071
      %v1176 = vpop.f32.mrb[0].mxu0
      %v1177 = vadd.f32 %v883, %v1176
      %v1178 = vpop.f32.mrb[0].mxu0
      %v1179 = vpop.f32.mrb[0].mxu0
      %v1180 = vadd.f32 %v886, %v1179
      %v1181 = vpop.f32.mrb[0].mxu0
      %1182 = vmatprep.mubr.bf16.mxu0 0
      %1183 = vmatmul.mubr.bf16.gmra.mrb[0].mxu0 %v1074
      %v1184 = vpop.f32.mrb[0].mxu0
      %v1185 = vadd.f32 %v891, %v1184
      %v1186 = vpop.f32.mrb[0].mxu0
      %v1187 = vpop.f32.mrb[0].mxu0
      %v1188 = vadd.f32 %v894, %v1187
      %v1189 = vpop.f32.mrb[0].mxu0
      %1190 = vmatprep.mubr.bf16.mxu0 0
      %1191 = vmatmul.mubr.bf16.gmra.mrb[0].mxu0 %v1077
      %v1192 = vpop.f32.mrb[0].mxu0
      %v1193 = vadd.f32 %v899, %v1192
      %v1194 = vpop.f32.mrb[0].mxu0
      %v1195 = vpop.f32.mrb[0].mxu0
      %v1196 = vadd.f32 %v902, %v1195
      %v1197 = vpop.f32.mrb[0].mxu0
      %1198 = vmatprep.mubr.bf16.mxu0 0
      %1199 = vmatmul.mubr.bf16.gmra.mrb[0].mxu0 %v1080
      %v1200 = vpop.f32.mrb[0].mxu0
      %v1201 = vadd.f32 %v907, %v1200
      %v1202 = vpop.f32.mrb[0].mxu0
      %v1203 = vpop.f32.mrb[0].mxu0
      %v1204 = vadd.f32 %v910, %v1203
      %v1205 = vpop.f32.mrb[0].mxu0
      %1206 = vmatprep.mubr.bf16.mxu0 0
      %1207 = vmatmul.mubr.bf16.gmra.mrb[0].mxu0 %v1083
      %v1208 = vpop.f32.mrb[0].mxu0
      %v1209 = vadd.f32 %v915, %v1208
      %v1210 = vpop.f32.mrb[0].mxu0
      %v1211 = vpop.f32.mrb[0].mxu0
      %v1212 = vadd.f32 %v918, %v1211
      %v1213 = vpop.f32.mrb[0].mxu0
      %1214 = vmatprep.mubr.bf16.mxu0 0
      %1215 = vmatmul.mubr.bf16.gmra.mrb[0].mxu0 %v1086
      %v1216 = vpop.f32.mrb[0].mxu0
      %v1217 = vadd.f32 %v923, %v1216
      %v1218 = vpop.f32.mrb[0].mxu0
      %v1219 = vpop.f32.mrb[0].mxu0
      %v1220 = vadd.f32 %v926, %v1219
      %v1221 = vpop.f32.mrb[0].mxu0
      %1222 = vmatprep.mubr.bf16.mxu0 0
      %1223 = vmatmul.mubr.bf16.gmra.mrb[0].mxu0 %v1089
      %v1224 = vpop.f32.mrb[0].mxu0
      %v1225 = vadd.f32 %v931, %v1224
      %v1226 = vpop.f32.mrb[0].mxu0
      %v1227 = vpop.f32.mrb[0].mxu0
      %v1228 = vadd.f32 %v934, %v1227
      %v1229 = vpop.f32.mrb[0].mxu0
      %1230 = vmatprep.mubr.bf16.mxu0 0
      %1231 = vmatmul.mubr.bf16.gmra.mrb[0].mxu0 %v1092
      %v1232 = vpop.f32.mrb[0].mxu0
      %v1233 = vadd.f32 %v939, %v1232
      %v1234 = vpop.f32.mrb[0].mxu0
      %v1235 = vpop.f32.mrb[0].mxu0
      %v1236 = vadd.f32 %v942, %v1235
      %v1237 = vpop.f32.mrb[0].mxu0
      %1238 = vmatprep.mubr.bf16.mxu0 0
      %1239 = vmatmul.mubr.bf16.gmra.mrb[0].mxu0 %v1095
      %v1240 = vpop.f32.mrb[0].mxu0
      %v1241 = vadd.f32 %v947, %v1240
      %v1242 = vpop.f32.mrb[0].mxu0
      %v1243 = vpop.f32.mrb[0].mxu0
      %v1244 = vadd.f32 %v950, %v1243
      %v1245 = vpop.f32.mrb[0].mxu0
      %1246 = vmatprep.mubr.bf16.mxu0 0
      %1247 = vmatmul.mubr.bf16.gmra.mrb[0].mxu0 %v1098
      %v1248 = vpop.f32.mrb[0].mxu0
      %v1249 = vadd.f32 %v955, %v1248
      %v1250 = vpop.f32.mrb[0].mxu0
      %v1251 = vpop.f32.mrb[0].mxu0
      %v1252 = vadd.f32 %v958, %v1251
      %v1253 = vpop.f32.mrb[0].mxu0
      %1254 = vmatprep.mubr.bf16.mxu0 0
      %1255 = vmatmul.mubr.bf16.gmra.mrb[0].mxu0 %v1101
      %v1256 = vpop.f32.mrb[0].mxu0
      %v1257 = vadd.f32 %v963, %v1256
      %v1258 = vpop.f32.mrb[0].mxu0
      %v1259 = vpop.f32.mrb[0].mxu0
      %v1260 = vadd.f32 %v966, %v1259
      %v1261 = vpop.f32.mrb[0].mxu0
      %1262 = vmatprep.mubr.bf16.mxu0 0
      %1263 = vmatmul.mubr.bf16.gmra.mrb[0].mxu0 %v1104
      %v1264 = vpop.f32.mrb[0].mxu0
      %v1265 = vadd.f32 %v971, %v1264
      %v1266 = vpop.f32.mrb[0].mxu0
      %v1267 = vpop.f32.mrb[0].mxu0
      %v1268 = vadd.f32 %v974, %v1267
      %v1269 = vpop.f32.mrb[0].mxu0
      %1270 = vdwg.mxu0
      %v1271 = vpack.c.bf16 %v586, %v585
      %v1272 = vpack.c.bf16 %v588, %v587
      %v1273 = vpack.c.bf16 %v590, %v589
      %v1274 = vpack.c.bf16 %v592, %v591
      %v1275 = vpack.c.bf16 %v594, %v593
      %v1276 = vpack.c.bf16 %v596, %v595
      %v1277 = vpack.c.bf16 %v598, %v597
      %v1278 = vpack.c.bf16 %v600, %v599
      %v1279 = vpack.c.bf16 %v602, %v601
      %v1280 = vpack.c.bf16 %v604, %v603
      %v1281 = vpack.c.bf16 %v606, %v605
      %v1282 = vpack.c.bf16 %v608, %v607
      %v1283 = vpack.c.bf16 %v610, %v609
      %v1284 = vpack.c.bf16 %v612, %v611
      %v1285 = vpack.c.bf16 %v614, %v613
      %v1286 = vpack.c.bf16 %v616, %v615
      %v1287 = vld [vmem:[%s8] sm:$0xf]
      %v1289 = vsel %vm763, %v1271, 0
      %v1292 = vsel %vm763, %v1272, 0
      %v1295 = vsel %vm763, %v1273, 0
      %v1298 = vsel %vm763, %v1274, 0
      %v1301 = vsel %vm763, %v1275, 0
      %v1304 = vsel %vm763, %v1276, 0
      %v1307 = vsel %vm763, %v1277, 0
      %v1310 = vsel %vm763, %v1278, 0
      %v1313 = vsel %vm763, %v1279, 0
      %v1316 = vsel %vm763, %v1280, 0
      %v1319 = vsel %vm763, %v1281, 0
      %v1322 = vsel %vm763, %v1282, 0
      %v1325 = vsel %vm763, %v1283, 0
      %v1328 = vsel %vm763, %v1284, 0
      %v1331 = vsel %vm763, %v1285, 0
      %v1334 = vsel %vm763, %v1286, 0
      %v1337 = vsel %vm812, %v1287, 0
      %1339 = vmatprep.subr.bf16.mxu0 0
      %1340 = vmatpush1.bf16.msra.mxu0 %v1337
      %1341 = vmatprep.subr.bf16.mxu0 0
      %1342 = vmatpush1.bf16.msra.mxu0 0
      %1343 = vmatprep.subr.bf16.mxu0 0
      %1344 = vmatpush1.bf16.msra.mxu0 0
      %1345 = vmatprep.subr.bf16.mxu0 0
      %1346 = vmatpush1.bf16.msra.mxu0 0
      %1347 = vmatprep.subr.bf16.mxu0 0
      %1348 = vmatpush1.bf16.msra.mxu0 0
      %1349 = vmatprep.subr.bf16.mxu0 0
      %1350 = vmatpush1.bf16.msra.mxu0 0
      %1351 = vmatprep.subr.bf16.mxu0 0
      %1352 = vmatpush1.bf16.msra.mxu0 0
      %1353 = vmatprep.subr.bf16.mxu0 0
      %1354 = vmatpush1.bf16.msra.mxu0 0
      %1355 = vmatprep.subr.bf16.mxu0 0
      %1356 = vmatpush1.bf16.msra.mxu0 0
      %1357 = vmatprep.subr.bf16.mxu0 0
      %1358 = vmatpush1.bf16.msra.mxu0 0
      %1359 = vmatprep.subr.bf16.mxu0 0
      %1360 = vmatpush1.bf16.msra.mxu0 0
      %1361 = vmatprep.subr.bf16.mxu0 0
      %1362 = vmatpush1.bf16.msra.mxu0 0
      %1363 = vmatprep.subr.bf16.mxu0 0
      %1364 = vmatpush1.bf16.msra.mxu0 0
      %1365 = vmatprep.subr.bf16.mxu0 0
      %1366 = vmatpush1.bf16.msra.mxu0 0
      %1367 = vmatprep.subr.bf16.mxu0 0
      %1368 = vmatpush1.bf16.msra.mxu0 0
      %1369 = vmatprep.subr.bf16.mxu0 0
      %1370 = vmatpush1.bf16.msra.mxu0 0
      %1371 = vmatprep.mubr.bf16.mxu0 0
      %1372 = vmatmul.mubr.bf16.gmra.mrb[0].mxu0 %v1289
      %v1373 = vpop.f32.mrb[0].mxu0
      %v1374 = vadd.f32 0.0, %v1373
      %v1375 = vpop.f32.mrb[0].mxu0
      %v1376 = vpop.f32.mrb[0].mxu0
      %v1377 = vadd.f32 0.0, %v1376
      %v1378 = vpop.f32.mrb[0].mxu0
      %1379 = vmatprep.mubr.bf16.mxu0 0
      %1380 = vmatmul.mubr.bf16.gmra.mrb[0].mxu0 %v1292
      %v1381 = vpop.f32.mrb[0].mxu0
      %v1382 = vadd.f32 0.0, %v1381
      %v1383 = vpop.f32.mrb[0].mxu0
      %v1384 = vpop.f32.mrb[0].mxu0
      %v1385 = vadd.f32 0.0, %v1384
      %v1386 = vpop.f32.mrb[0].mxu0
      %1387 = vmatprep.mubr.bf16.mxu0 0
      %1388 = vmatmul.mubr.bf16.gmra.mrb[0].mxu0 %v1295
      %v1389 = vpop.f32.mrb[0].mxu0
      %v1390 = vadd.f32 0.0, %v1389
      %v1391 = vpop.f32.mrb[0].mxu0
      %v1392 = vpop.f32.mrb[0].mxu0
      %v1393 = vadd.f32 0.0, %v1392
      %v1394 = vpop.f32.mrb[0].mxu0
      %1395 = vmatprep.mubr.bf16.mxu0 0
      %1396 = vmatmul.mubr.bf16.gmra.mrb[0].mxu0 %v1298
      %v1397 = vpop.f32.mrb[0].mxu0
      %v1398 = vadd.f32 0.0, %v1397
      %v1399 = vpop.f32.mrb[0].mxu0
      %v1400 = vpop.f32.mrb[0].mxu0
      %v1401 = vadd.f32 0.0, %v1400
      %v1402 = vpop.f32.mrb[0].mxu0
      %1403 = vmatprep.mubr.bf16.mxu0 0
      %1404 = vmatmul.mubr.bf16.gmra.mrb[0].mxu0 %v1301
      %v1405 = vpop.f32.mrb[0].mxu0
      %v1406 = vadd.f32 0.0, %v1405
      %v1407 = vpop.f32.mrb[0].mxu0
      %v1408 = vpop.f32.mrb[0].mxu0
      %v1409 = vadd.f32 0.0, %v1408
      %v1410 = vpop.f32.mrb[0].mxu0
      %1411 = vmatprep.mubr.bf16.mxu0 0
      %1412 = vmatmul.mubr.bf16.gmra.mrb[0].mxu0 %v1304
      %v1413 = vpop.f32.mrb[0].mxu0
      %v1414 = vadd.f32 0.0, %v1413
      %v1415 = vpop.f32.mrb[0].mxu0
      %v1416 = vpop.f32.mrb[0].mxu0
      %v1417 = vadd.f32 0.0, %v1416
      %v1418 = vpop.f32.mrb[0].mxu0
      %1419 = vmatprep.mubr.bf16.mxu0 0
      %1420 = vmatmul.mubr.bf16.gmra.mrb[0].mxu0 %v1307
      %v1421 = vpop.f32.mrb[0].mxu0
      %v1422 = vadd.f32 0.0, %v1421
      %v1423 = vpop.f32.mrb[0].mxu0
      %v1424 = vpop.f32.mrb[0].mxu0
      %v1425 = vadd.f32 0.0, %v1424
      %v1426 = vpop.f32.mrb[0].mxu0
      %1427 = vmatprep.mubr.bf16.mxu0 0
      %1428 = vmatmul.mubr.bf16.gmra.mrb[0].mxu0 %v1310
      %v1429 = vpop.f32.mrb[0].mxu0
      %v1430 = vadd.f32 0.0, %v1429
      %v1431 = vpop.f32.mrb[0].mxu0
      %v1432 = vpop.f32.mrb[0].mxu0
      %v1433 = vadd.f32 0.0, %v1432
      %v1434 = vpop.f32.mrb[0].mxu0
      %1435 = vmatprep.mubr.bf16.mxu0 0
      %1436 = vmatmul.mubr.bf16.gmra.mrb[0].mxu0 %v1313
      %v1437 = vpop.f32.mrb[0].mxu0
      %v1438 = vadd.f32 0.0, %v1437
      %v1439 = vpop.f32.mrb[0].mxu0
      %v1440 = vpop.f32.mrb[0].mxu0
      %v1441 = vadd.f32 0.0, %v1440
      %v1442 = vpop.f32.mrb[0].mxu0
      %1443 = vmatprep.mubr.bf16.mxu0 0
      %1444 = vmatmul.mubr.bf16.gmra.mrb[0].mxu0 %v1316
      %v1445 = vpop.f32.mrb[0].mxu0
      %v1446 = vadd.f32 0.0, %v1445
      %v1447 = vpop.f32.mrb[0].mxu0
      %v1448 = vpop.f32.mrb[0].mxu0
      %v1449 = vadd.f32 0.0, %v1448
      %v1450 = vpop.f32.mrb[0].mxu0
      %1451 = vmatprep.mubr.bf16.mxu0 0
      %1452 = vmatmul.mubr.bf16.gmra.mrb[0].mxu0 %v1319
      %v1453 = vpop.f32.mrb[0].mxu0
      %v1454 = vadd.f32 0.0, %v1453
      %v1455 = vpop.f32.mrb[0].mxu0
      %v1456 = vpop.f32.mrb[0].mxu0
      %v1457 = vadd.f32 0.0, %v1456
      %v1458 = vpop.f32.mrb[0].mxu0
      %1459 = vmatprep.mubr.bf16.mxu0 0
      %1460 = vmatmul.mubr.bf16.gmra.mrb[0].mxu0 %v1322
      %v1461 = vpop.f32.mrb[0].mxu0
      %v1462 = vadd.f32 0.0, %v1461
      %v1463 = vpop.f32.mrb[0].mxu0
      %v1464 = vpop.f32.mrb[0].mxu0
      %v1465 = vadd.f32 0.0, %v1464
      %v1466 = vpop.f32.mrb[0].mxu0
      %1467 = vmatprep.mubr.bf16.mxu0 0
      %1468 = vmatmul.mubr.bf16.gmra.mrb[0].mxu0 %v1325
      %v1469 = vpop.f32.mrb[0].mxu0
      %v1470 = vadd.f32 0.0, %v1469
      %v1471 = vpop.f32.mrb[0].mxu0
      %v1472 = vpop.f32.mrb[0].mxu0
      %v1473 = vadd.f32 0.0, %v1472
      %v1474 = vpop.f32.mrb[0].mxu0
      %1475 = vmatprep.mubr.bf16.mxu0 0
      %1476 = vmatmul.mubr.bf16.gmra.mrb[0].mxu0 %v1328
      %v1477 = vpop.f32.mrb[0].mxu0
      %v1478 = vadd.f32 0.0, %v1477
      %v1479 = vpop.f32.mrb[0].mxu0
      %v1480 = vpop.f32.mrb[0].mxu0
      %v1481 = vadd.f32 0.0, %v1480
      %v1482 = vpop.f32.mrb[0].mxu0
      %1483 = vmatprep.mubr.bf16.mxu0 0
      %1484 = vmatmul.mubr.bf16.gmra.mrb[0].mxu0 %v1331
      %v1485 = vpop.f32.mrb[0].mxu0
      %v1486 = vadd.f32 0.0, %v1485
      %v1487 = vpop.f32.mrb[0].mxu0
      %v1488 = vpop.f32.mrb[0].mxu0
      %v1489 = vadd.f32 0.0, %v1488
      %v1490 = vpop.f32.mrb[0].mxu0
      %1491 = vmatprep.mubr.bf16.mxu0 0
      %1492 = vmatmul.mubr.bf16.gmra.mrb[0].mxu0 %v1334
      %v1493 = vpop.f32.mrb[0].mxu0
      %v1494 = vadd.f32 0.0, %v1493
      %v1495 = vpop.f32.mrb[0].mxu0
      %v1496 = vpop.f32.mrb[0].mxu0
      %v1497 = vadd.f32 0.0, %v1496
      %v1498 = vpop.f32.mrb[0].mxu0
      %1499 = vdwg.mxu0
      %v1500 = vadd.f32 %v1145, %v1374
      %v1501 = vadd.f32 %v1148, %v1377
      %v1502 = vadd.f32 %v1153, %v1382
      %v1503 = vadd.f32 %v1156, %v1385
      %v1504 = vadd.f32 %v1161, %v1390
      %v1505 = vadd.f32 %v1164, %v1393
      %v1506 = vadd.f32 %v1169, %v1398
      %v1507 = vadd.f32 %v1172, %v1401
      %v1508 = vadd.f32 %v1177, %v1406
      %v1509 = vadd.f32 %v1180, %v1409
      %v1510 = vadd.f32 %v1185, %v1414
      %v1511 = vadd.f32 %v1188, %v1417
      %v1512 = vadd.f32 %v1193, %v1422
      %v1513 = vadd.f32 %v1196, %v1425
      %v1514 = vadd.f32 %v1201, %v1430
      %v1515 = vadd.f32 %v1204, %v1433
      %v1516 = vadd.f32 %v1209, %v1438
      %v1517 = vadd.f32 %v1212, %v1441
      %v1518 = vadd.f32 %v1217, %v1446
      %v1519 = vadd.f32 %v1220, %v1449
      %v1520 = vadd.f32 %v1225, %v1454
      %v1521 = vadd.f32 %v1228, %v1457
      %v1522 = vadd.f32 %v1233, %v1462
      %v1523 = vadd.f32 %v1236, %v1465
      %v1524 = vadd.f32 %v1241, %v1470
      %v1525 = vadd.f32 %v1244, %v1473
      %v1526 = vadd.f32 %v1249, %v1478
      %v1527 = vadd.f32 %v1252, %v1481
      %v1528 = vadd.f32 %v1257, %v1486
      %v1529 = vadd.f32 %v1260, %v1489
      %v1530 = vadd.f32 %v1265, %v1494
      %v1531 = vadd.f32 %v1268, %v1497
      %v1532 = vld [vmem:[%s9] sm:$0x1]
      %v1534 = vlaneseq
      %v1535 = vshrl.u32 %v1534, 7
      %v1536 = vsub.s32 0, %v1535
      %v1537 = vrot.slane %v1532, %v1536
      %v1539 = vadd.f32 %v1500, %v1537
      %v1540 = vadd.f32 %v1501, %v1537
      %v1541 = vadd.f32 %v1502, %v1537
      %v1542 = vadd.f32 %v1503, %v1537
      %v1543 = vadd.f32 %v1504, %v1537
      %v1544 = vadd.f32 %v1505, %v1537
      %v1545 = vadd.f32 %v1506, %v1537
      %v1546 = vadd.f32 %v1507, %v1537
      %v1547 = vadd.f32 %v1508, %v1537
      %v1548 = vadd.f32 %v1509, %v1537
      %v1549 = vadd.f32 %v1510, %v1537
      %v1550 = vadd.f32 %v1511, %v1537
      %v1551 = vadd.f32 %v1512, %v1537
      %v1552 = vadd.f32 %v1513, %v1537
      %v1553 = vadd.f32 %v1514, %v1537
      %v1554 = vadd.f32 %v1515, %v1537
      %v1555 = vadd.f32 %v1516, %v1537
      %v1556 = vadd.f32 %v1517, %v1537
      %v1557 = vadd.f32 %v1518, %v1537
      %v1558 = vadd.f32 %v1519, %v1537
      %v1559 = vadd.f32 %v1520, %v1537
      %v1560 = vadd.f32 %v1521, %v1537
      %v1561 = vadd.f32 %v1522, %v1537
      %v1562 = vadd.f32 %v1523, %v1537
      %v1563 = vadd.f32 %v1524, %v1537
      %v1564 = vadd.f32 %v1525, %v1537
      %v1565 = vadd.f32 %v1526, %v1537
      %v1566 = vadd.f32 %v1527, %v1537
      %v1567 = vadd.f32 %v1528, %v1537
      %v1568 = vadd.f32 %v1529, %v1537
      %v1569 = vadd.f32 %v1530, %v1537
      %v1570 = vadd.f32 %v1531, %v1537
      %1571 = vst.msk [vmem:[%s406] sm:$0xff] %vm763, %v1539
      %1572 = vst.msk [vmem:[%s406 + $0x8] sm:$0xff] %vm763, %v1540
      %1573 = vst.msk [vmem:[%s406 + $0x10] sm:$0xff] %vm763, %v1541
      %1574 = vst.msk [vmem:[%s406 + $0x18] sm:$0xff] %vm763, %v1542
      %1575 = vst.msk [vmem:[%s406 + $0x20] sm:$0xff] %vm763, %v1543
      %1576 = vst.msk [vmem:[%s406 + $0x28] sm:$0xff] %vm763, %v1544
      %1577 = vst.msk [vmem:[%s406 + $0x30] sm:$0xff] %vm763, %v1545
      %1578 = vst.msk [vmem:[%s406 + $0x38] sm:$0xff] %vm763, %v1546
      %1579 = vst.msk [vmem:[%s406 + $0x40] sm:$0xff] %vm763, %v1547
      %1580 = vst.msk [vmem:[%s406 + $0x48] sm:$0xff] %vm763, %v1548
      %1581 = vst.msk [vmem:[%s406 + $0x50] sm:$0xff] %vm763, %v1549
      %1582 = vst.msk [vmem:[%s406 + $0x58] sm:$0xff] %vm763, %v1550
      %1583 = vst.msk [vmem:[%s406 + $0x60] sm:$0xff] %vm763, %v1551
      %1584 = vst.msk [vmem:[%s406 + $0x68] sm:$0xff] %vm763, %v1552
      %1585 = vst.msk [vmem:[%s406 + $0x70] sm:$0xff] %vm763, %v1553
      %1586 = vst.msk [vmem:[%s406 + $0x78] sm:$0xff] %vm763, %v1554
      %1587 = vst.msk [vmem:[%s406 + $0x80] sm:$0xff] %vm763, %v1555
      %1588 = vst.msk [vmem:[%s406 + $0x88] sm:$0xff] %vm763, %v1556
      %1589 = vst.msk [vmem:[%s406 + $0x90] sm:$0xff] %vm763, %v1557
      %1590 = vst.msk [vmem:[%s406 + $0x98] sm:$0xff] %vm763, %v1558
      %1591 = vst.msk [vmem:[%s406 + $0xa0] sm:$0xff] %vm763, %v1559
      %1592 = vst.msk [vmem:[%s406 + $0xa8] sm:$0xff] %vm763, %v1560
      %1593 = vst.msk [vmem:[%s406 + $0xb0] sm:$0xff] %vm763, %v1561
      %1594 = vst.msk [vmem:[%s406 + $0xb8] sm:$0xff] %vm763, %v1562
      %1595 = vst.msk [vmem:[%s406 + $0xc0] sm:$0xff] %vm763, %v1563
      %1596 = vst.msk [vmem:[%s406 + $0xc8] sm:$0xff] %vm763, %v1564
      %1597 = vst.msk [vmem:[%s406 + $0xd0] sm:$0xff] %vm763, %v1565
      %1598 = vst.msk [vmem:[%s406 + $0xd8] sm:$0xff] %vm763, %v1566
      %1599 = vst.msk [vmem:[%s406 + $0xe0] sm:$0xff] %vm763, %v1567
      %1600 = vst.msk [vmem:[%s406 + $0xe8] sm:$0xff] %vm763, %v1568
      %1601 = vst.msk [vmem:[%s406 + $0xf0] sm:$0xff] %vm763, %v1569
      %1602 = vst.msk [vmem:[%s406 + $0xf8] sm:$0xff] %vm763, %v1570
      %s1603 = smul.u32 32, %s22
      %p1604 = scmp.lt.s32.totalorder %s1603, 63
      %s1605 = scalar_select %p1604, %s1603, 63
      %s1606 = smul.addr %s1605, 8
      %s1607 = scalar_lea.vmem %s10, %s1606
      // Predicated region
      $region61: #{dense_block_forward.7} parent=59 // pred_check
        %p1608 = pneg %p265
      $region62: #{dense_block_forward.7} parent=59 // pred_check_branch
        %1610 = sbr.rel (%p1608) target = $region64
      $region63: #{dense_block_forward.7} parent=59 // pred_region
        %s1611 = smul.u32 32, %s22
      $region64: #{dense_block_forward.7} parent=59 // pred_fallthru
        _
    $region60: #{dense_block_forward.7} parent=5 // pred_fallthru
      _
    %p1612 = scmp.le.s32.totalorder 2, %s17
    // Predicated region
    $region65: #{dense_block_forward.7} parent=5 // pred_check
      %p1613 = pneg %p1612
    $region66: #{dense_block_forward.7} parent=5 // pred_check_branch
      %1615 = sbr.rel (%p1613) target = $region68
    $region67: #{dense_block_forward.7} parent=5 // pred_region
      %s1616 = ssub.s32 %s17, 2
      // Predicated region
      $region69: #{dense_block_forward.7} parent=67 // pred_check
        %p1617 = pneg %p271
      $region70: #{dense_block_forward.7} parent=67 // pred_check_branch
        %1619 = sbr.rel (%p1617) target = $region72
      $region71: #{dense_block_forward.7} parent=67 // pred_region
        %s1620 = smul.u32 32, %s23
        %p1621 = scmp.lt.s32.totalorder %s1620, 63
        %s1622 = scalar_select %p1621, %s1620, 63
        %s1623 = smul.addr %s1622, 8
        %s1624 = scalar_lea.vmem %s10, %s1623
      $region72: #{dense_block_forward.7} parent=67 // pred_fallthru
        _
    $region68: #{dense_block_forward.7} parent=5 // pred_fallthru
      _
  $region6: #{dense_block_forward.7} parent=0 // loop_footer
    %s21 = sadd.s32 1, %s17
  $region7: #{dense_block_forward.7} parent=0 // loop_footer_branch
    %16 = sbr.rel target = $region3
  $region8: #{dense_block_forward.7} parent=0 // loop_exit
    _

</llo_original>
